<compile_context>
chip_gen: v6e
topology: v6e:2x2x1
jax: 0.10.0
libtpu: 0.0.40
codegen_flags: <defaults>
</compile_context>

<pallas_src>
import functools

import jax
import jax.numpy as jnp
from jax.experimental import pallas as pl
from jax.experimental.pallas import tpu as pltpu

IN_DIM = 28 * 28      # 784
HID = 500             # true MLP width (nn.Linear(..., 500))
HID_PAD = 512         # HID zero-padded to a lane multiple
ENC_PAD = 128         # bottleneck (hidden_size) zero-padded to one lane width


def _round_up(n, m):
    return ((n + m - 1) // m) * m


def _cdiv(a, b):
    return -(-a // b)


def _softplus(v):
    # Numerically stable softplus (matches torch.nn.Softplus); dtype-preserving.
    return jnp.maximum(v, 0) + jnp.log1p(jnp.exp(-jnp.abs(v)))


def _dense(h, w, b):
    # bf16 x bf16 MXU matmul with f32 accumulation; bias add stays f32.
    return jnp.dot(h.astype(w.dtype), w, preferred_element_type=jnp.float32) + b


def autoencoder_kernel(x_ref,
                       w1, b1, w2, b2, w3, b3,     # encoder params (padded)
                       w4, b4, w5, b5, w6, b6,     # decoder params (padded)
                       enc_ref, dec_ref, *, act_dtype):
    x = x_ref[...]                                   # (tile_b, 784) bf16

    # ---- encoder ----
    h = _softplus(_dense(x, w1[...], b1[...]).astype(act_dtype))
    h = _softplus(_dense(h, w2[...], b2[...]).astype(act_dtype))
    enc = _dense(h, w3[...], b3[...])                # (tile_b, 128) f32; padded cols are exactly 0
    enc_ref[...] = enc.astype(enc_ref.dtype)

    # ---- decoder ----
    h = _softplus(_dense(enc, w4[...], b4[...]).astype(act_dtype))
    h = _softplus(_dense(h, w5[...], b5[...]).astype(act_dtype))
    logits = _dense(h, w6[...], b6[...])             # (tile_b, 784) f32
    # sigmoid via the tanh identity: a single EUP push per element.
    dec = 0.5 * jnp.tanh(0.5 * logits.astype(act_dtype)) + 0.5
    dec_ref[...] = dec.astype(dec_ref.dtype)


def _act_dtype_for_backend():
    """bf16 VPU/EUP exists on v6e / v7x; keep activation math f32 on v5e and older."""
    try:
        kind = jax.devices()[0].device_kind.lower()
    except Exception:
        return jnp.float32
    if ("v6" in kind) or ("v7" in kind) or ("7x" in kind):
        return jnp.bfloat16
    return jnp.float32


@functools.partial(jax.jit, static_argnames=("hidden_size", "tile_b"))
def autoencoder_forward(x, params, *, hidden_size, tile_b=512):
    B = x.shape[0]
    w1, b1, w2, b2, w3, b3, w4, b4, w5, b5, w6, b6 = params
    act_dtype = _act_dtype_for_backend()

    # ---- parameter prep: pad HID 500->512 and bottleneck hidden_size->128 ----
    # Zero padding keeps results exact: padded activation columns are 0 (linear)
    # or softplus(0)=ln2, but every downstream weight ROW multiplying a padded
    # column is zero, so padding never leaks into real outputs.
    hp = HID_PAD - HID
    ep = ENC_PAD - hidden_size
    w1p = jnp.pad(w1, ((0, 0), (0, hp)));  b1p = jnp.pad(b1, ((0, 0), (0, hp)))
    w2p = jnp.pad(w2, ((0, hp), (0, hp))); b2p = jnp.pad(b2, ((0, 0), (0, hp)))
    w3p = jnp.pad(w3, ((0, hp), (0, ep))); b3p = jnp.pad(b3, ((0, 0), (0, ep)))
    w4p = jnp.pad(w4, ((0, ep), (0, hp))); b4p = jnp.pad(b4, ((0, 0), (0, hp)))
    w5p = jnp.pad(w5, ((0, hp), (0, hp))); b5p = jnp.pad(b5, ((0, 0), (0, hp)))
    w6p = jnp.pad(w6, ((0, hp), (0, 0)));  b6p = b6

    weights = [w.astype(jnp.bfloat16) for w in (w1p, w2p, w3p, w4p, w5p, w6p)]
    biases = [b.astype(jnp.float32) for b in (b1p, b2p, b3p, b4p, b5p, b6p)]

    # ---- batch tiling: minimize padding, keep >=2 grid steps for v7x megacore ----
    n_tiles = _cdiv(max(B, 1), tile_b)
    if n_tiles == 1 and B >= 16:
        n_tiles = 2          # let ("parallel",) shard the grid across both v7x TCs
    tb = _round_up(_cdiv(max(B, 1), n_tiles), 8)
    b_pad = tb * n_tiles

    x = x.astype(jnp.bfloat16)      # halve x DMA; MXU truncates to bf16 anyway
    if b_pad != B:
        x = jnp.pad(x, ((0, b_pad - B), (0, 0)))
    grid = (n_tiles,)

    def row_spec(d):
        return pl.BlockSpec((tb, d), lambda i: (i, 0))

    def const_spec(shape):
        # TODO(synk): pipeline_mode=pl.Buffered(1) would drop the useless second
        # buffer for these resident weights; omitted for portability.
        return pl.BlockSpec(shape, lambda i: (0, 0))

    ordered_params = []
    in_specs = [row_spec(IN_DIM)]
    for w, b in zip(weights, biases):
        ordered_params += [w, b]
        in_specs += [const_spec(w.shape), const_spec(b.shape)]

    flops = 2 * b_pad * (IN_DIM * HID_PAD + HID_PAD * HID_PAD + HID_PAD * ENC_PAD
                         + ENC_PAD * HID_PAD + HID_PAD * HID_PAD + HID_PAD * IN_DIM)
    transcendentals = b_pad * (4 * 2 * HID_PAD + IN_DIM)  # softplus=exp+log1p, sigmoid=tanh
    bytes_accessed = (b_pad * IN_DIM * 2            # x in (bf16)
                      + b_pad * IN_DIM * 2          # dec out (bf16)
                      + b_pad * ENC_PAD * 4         # enc out (f32)
                      + sum(w.size * 2 for w in weights)
                      + sum(b.size * 4 for b in biases))

    kernel = functools.partial(autoencoder_kernel, act_dtype=act_dtype)

    enc_padded, dec = pl.pallas_call(
        kernel,
        grid=grid,
        out_shape=(
            jax.ShapeDtypeStruct((b_pad, ENC_PAD), jnp.float32),   # x_encoded (padded)
            jax.ShapeDtypeStruct((b_pad, IN_DIM), jnp.bfloat16),   # x_decoded
        ),
        in_specs=in_specs,
        out_specs=(row_spec(ENC_PAD), row_spec(IN_DIM)),
        compiler_params=pltpu.CompilerParams(
            dimension_semantics=("parallel",),
            vmem_limit_bytes=48 << 20,
        ),
        cost_estimate=pl.CostEstimate(
            flops=flops,
            transcendentals=transcendentals,
            bytes_accessed=bytes_accessed,
        ),
    )(x, *ordered_params)

    return enc_padded[:B, :hidden_size], dec[:B].astype(jnp.float32)


def init_params(key, hidden_size):
    """Deterministic init matching nn.Linear default: U(-1/sqrt(fan_in), +1/sqrt(fan_in))."""
    dims = [
        (IN_DIM, HID), (HID, HID), (HID, hidden_size),     # encoder
        (hidden_size, HID), (HID, HID), (HID, IN_DIM),     # decoder
    ]
    params = []
    for fan_in, fan_out in dims:
        key, kw, kb = jax.random.split(key, 3)
        bound = 1.0 / jnp.sqrt(float(fan_in))
        w = jax.random.uniform(kw, (fan_in, fan_out), jnp.float32, -bound, bound)
        b = jax.random.uniform(kb, (1, fan_out), jnp.float32, -bound, bound)
        params += [w, b]
    return params


def reference_forward(x, params):
    """Pure-JAX reference: bf16 MXU operands (as on TPU), f32 activations, exact sigmoid."""
    w1, b1, w2, b2, w3, b3, w4, b4, w5, b5, w6, b6 = params

    def dense(h, w, b):
        return jnp.dot(h.astype(jnp.bfloat16), w.astype(jnp.bfloat16),
                       preferred_element_type=jnp.float32) + b

    h = jax.nn.softplus(dense(x, w1, b1))
    h = jax.nn.softplus(dense(h, w2, b2))
    enc = dense(h, w3, b3)
    h = jax.nn.softplus(dense(enc, w4, b4))
    h = jax.nn.softplus(dense(h, w5, b5))
    dec = jax.nn.sigmoid(dense(h, w6, b6))
    return enc, dec


if __name__ == "__main__":
    hidden_size = 32
    batch = 8

    key = jax.random.PRNGKey(0)
    key, kx = jax.random.split(key)
    x = jax.random.normal(kx, (batch, IN_DIM), jnp.float32)
    params = init_params(key, hidden_size)

    enc, dec = autoencoder_forward(x, params, hidden_size=hidden_size)
    jax.block_until_ready((enc, dec))

    enc_ref, dec_ref = reference_forward(x, params)
    assert enc.shape == (batch, hidden_size) and dec.shape == (batch, IN_DIM)
    assert jnp.allclose(enc, enc_ref, atol=2e-2, rtol=2e-2), \
        float(jnp.max(jnp.abs(enc - enc_ref)))
    assert jnp.allclose(dec, dec_ref, atol=2e-2, rtol=2e-2), \
        float(jnp.max(jnp.abs(dec - dec_ref)))

    print("KERNEL_OK")
</pallas_src>

<mosaic_0001>
module attributes {stable_mosaic.version = 11 : i64} {
  func.func @autoencoder_kernel(%arg0: i32, %arg1: memref<8x784xbf16, #tpu.memory_space<vmem>>, %arg2: memref<784x512xbf16, #tpu.memory_space<vmem>>, %arg3: memref<1x512xf32, #tpu.memory_space<vmem>>, %arg4: memref<512x512xbf16, #tpu.memory_space<vmem>>, %arg5: memref<1x512xf32, #tpu.memory_space<vmem>>, %arg6: memref<512x128xbf16, #tpu.memory_space<vmem>>, %arg7: memref<1x128xf32, #tpu.memory_space<vmem>>, %arg8: memref<128x512xbf16, #tpu.memory_space<vmem>>, %arg9: memref<1x512xf32, #tpu.memory_space<vmem>>, %arg10: memref<512x512xbf16, #tpu.memory_space<vmem>>, %arg11: memref<1x512xf32, #tpu.memory_space<vmem>>, %arg12: memref<512x784xbf16, #tpu.memory_space<vmem>>, %arg13: memref<1x784xf32, #tpu.memory_space<vmem>>, %arg14: memref<8x128xf32, #tpu.memory_space<vmem>>, %arg15: memref<8x784xbf16, #tpu.memory_space<vmem>>) attributes {dimension_semantics = [#tpu.dimension_semantics<parallel>], iteration_bounds = array<i64: 1>, scalar_prefetch = 0 : i64, scratch_operands = 0 : i64, tpu.core_type = #tpu.core_type<tc>, window_params = [{transform_indices = @transform_0, window_bounds = array<i64: 8, 784>}, {pipeline_mode = #tpu.pipeline_mode<synchronous>, transform_indices = @transform_1, window_bounds = array<i64: 784, 512>}, {pipeline_mode = #tpu.pipeline_mode<synchronous>, transform_indices = @transform_2, window_bounds = array<i64: 1, 512>}, {pipeline_mode = #tpu.pipeline_mode<synchronous>, transform_indices = @transform_3, window_bounds = array<i64: 512, 512>}, {pipeline_mode = #tpu.pipeline_mode<synchronous>, transform_indices = @transform_4, window_bounds = array<i64: 1, 512>}, {pipeline_mode = #tpu.pipeline_mode<synchronous>, transform_indices = @transform_5, window_bounds = array<i64: 512, 128>}, {pipeline_mode = #tpu.pipeline_mode<synchronous>, transform_indices = @transform_6, window_bounds = array<i64: 1, 128>}, {pipeline_mode = #tpu.pipeline_mode<synchronous>, transform_indices = @transform_7, window_bounds = array<i64: 128, 512>}, {pipeline_mode = #tpu.pipeline_mode<synchronous>, transform_indices = @transform_8, window_bounds = array<i64: 1, 512>}, {pipeline_mode = #tpu.pipeline_mode<synchronous>, transform_indices = @transform_9, window_bounds = array<i64: 512, 512>}, {pipeline_mode = #tpu.pipeline_mode<synchronous>, transform_indices = @transform_10, window_bounds = array<i64: 1, 512>}, {pipeline_mode = #tpu.pipeline_mode<synchronous>, transform_indices = @transform_11, window_bounds = array<i64: 512, 784>}, {pipeline_mode = #tpu.pipeline_mode<synchronous>, transform_indices = @transform_12, window_bounds = array<i64: 1, 784>}, {transform_indices = @transform_13, window_bounds = array<i64: 8, 128>}, {transform_indices = @transform_14, window_bounds = array<i64: 8, 784>}]} {
    %c0 = arith.constant 0 : index
    %c0_0 = arith.constant 0 : index
    %0 = vector.load %arg1[%c0, %c0_0] : memref<8x784xbf16, #tpu.memory_space<vmem>>, vector<8x784xbf16>
    %c0_1 = arith.constant 0 : index
    %c0_2 = arith.constant 0 : index
    %1 = vector.load %arg2[%c0_1, %c0_2] : memref<784x512xbf16, #tpu.memory_space<vmem>>, vector<784x512xbf16>
    %c0_3 = arith.constant 0 : index
    %c0_4 = arith.constant 0 : index
    %2 = vector.load %arg3[%c0_3, %c0_4] : memref<1x512xf32, #tpu.memory_space<vmem>>, vector<1x512xf32>
    %cst = arith.constant dense<0.000000e+00> : vector<8x512xf32>
    %3 = tpu.matmul %0, %1, %cst {dimension_numbers = #tpu.dot_dimension_numbers<[1], [0], [0], [1], [0, 0, 1, 1], [], []>} : vector<8x784xbf16>, vector<784x512xbf16>, vector<8x512xf32> -> vector<8x512xf32>
    %4 = vector.broadcast %2 : vector<1x512xf32> to vector<8x512xf32>
    %5 = arith.addf %3, %4 : vector<8x512xf32>
    %cst_5 = arith.constant 0.000000e+00 : f32
    %6 = vector.broadcast %cst_5 : f32 to vector<8x512xf32>
    %7 = arith.maximumf %5, %6 : vector<8x512xf32>
    %8 = math.absf %5 : vector<8x512xf32>
    %cst_6 = arith.constant 0.000000e+00 : f32
    %9 = vector.broadcast %cst_6 : f32 to vector<8x512xf32>
    %10 = arith.subf %9, %8 : vector<8x512xf32>
    %11 = math.exp %10 : vector<8x512xf32>
    %12 = math.log1p %11 : vector<8x512xf32>
    %13 = arith.addf %7, %12 : vector<8x512xf32>
    %c0_7 = arith.constant 0 : index
    %c0_8 = arith.constant 0 : index
    %14 = vector.load %arg4[%c0_7, %c0_8] : memref<512x512xbf16, #tpu.memory_space<vmem>>, vector<512x512xbf16>
    %c0_9 = arith.constant 0 : index
    %c0_10 = arith.constant 0 : index
    %15 = vector.load %arg5[%c0_9, %c0_10] : memref<1x512xf32, #tpu.memory_space<vmem>>, vector<1x512xf32>
    %16 = arith.truncf %13 : vector<8x512xf32> to vector<8x512xbf16>
    %cst_11 = arith.constant dense<0.000000e+00> : vector<8x512xf32>
    %17 = tpu.matmul %16, %14, %cst_11 {dimension_numbers = #tpu.dot_dimension_numbers<[1], [0], [0], [1], [0, 0, 1, 1], [], []>} : vector<8x512xbf16>, vector<512x512xbf16>, vector<8x512xf32> -> vector<8x512xf32>
    %18 = vector.broadcast %15 : vector<1x512xf32> to vector<8x512xf32>
    %19 = arith.addf %17, %18 : vector<8x512xf32>
    %cst_12 = arith.constant 0.000000e+00 : f32
    %20 = vector.broadcast %cst_12 : f32 to vector<8x512xf32>
    %21 = arith.maximumf %19, %20 : vector<8x512xf32>
    %22 = math.absf %19 : vector<8x512xf32>
    %cst_13 = arith.constant 0.000000e+00 : f32
    %23 = vector.broadcast %cst_13 : f32 to vector<8x512xf32>
    %24 = arith.subf %23, %22 : vector<8x512xf32>
    %25 = math.exp %24 : vector<8x512xf32>
    %26 = math.log1p %25 : vector<8x512xf32>
    %27 = arith.addf %21, %26 : vector<8x512xf32>
    %c0_14 = arith.constant 0 : index
    %c0_15 = arith.constant 0 : index
    %28 = vector.load %arg6[%c0_14, %c0_15] : memref<512x128xbf16, #tpu.memory_space<vmem>>, vector<512x128xbf16>
    %c0_16 = arith.constant 0 : index
    %c0_17 = arith.constant 0 : index
    %29 = vector.load %arg7[%c0_16, %c0_17] : memref<1x128xf32, #tpu.memory_space<vmem>>, vector<1x128xf32>
    %30 = arith.truncf %27 : vector<8x512xf32> to vector<8x512xbf16>
    %cst_18 = arith.constant dense<0.000000e+00> : vector<8x128xf32>
    %31 = tpu.matmul %30, %28, %cst_18 {dimension_numbers = #tpu.dot_dimension_numbers<[1], [0], [0], [1], [0, 0, 1, 1], [], []>} : vector<8x512xbf16>, vector<512x128xbf16>, vector<8x128xf32> -> vector<8x128xf32>
    %32 = vector.broadcast %29 : vector<1x128xf32> to vector<8x128xf32>
    %33 = arith.addf %31, %32 : vector<8x128xf32>
    %c0_19 = arith.constant 0 : index
    %c0_20 = arith.constant 0 : index
    %34 = vector.load %arg14[%c0_19, %c0_20] : memref<8x128xf32, #tpu.memory_space<vmem>>, vector<8x128xf32>
    tpu.vector_store %arg14[%c0_19, %c0_20], %33 {strides = array<i32>} : memref<8x128xf32, #tpu.memory_space<vmem>>, vector<8x128xf32>,
    %c0_21 = arith.constant 0 : index
    %c0_22 = arith.constant 0 : index
    %35 = vector.load %arg8[%c0_21, %c0_22] : memref<128x512xbf16, #tpu.memory_space<vmem>>, vector<128x512xbf16>
    %c0_23 = arith.constant 0 : index
    %c0_24 = arith.constant 0 : index
    %36 = vector.load %arg9[%c0_23, %c0_24] : memref<1x512xf32, #tpu.memory_space<vmem>>, vector<1x512xf32>
    %37 = arith.truncf %33 : vector<8x128xf32> to vector<8x128xbf16>
    %cst_25 = arith.constant dense<0.000000e+00> : vector<8x512xf32>
    %38 = tpu.matmul %37, %35, %cst_25 {dimension_numbers = #tpu.dot_dimension_numbers<[1], [0], [0], [1], [0, 0, 1, 1], [], []>} : vector<8x128xbf16>, vector<128x512xbf16>, vector<8x512xf32> -> vector<8x512xf32>
    %39 = vector.broadcast %36 : vector<1x512xf32> to vector<8x512xf32>
    %40 = arith.addf %38, %39 : vector<8x512xf32>
    %cst_26 = arith.constant 0.000000e+00 : f32
    %41 = vector.broadcast %cst_26 : f32 to vector<8x512xf32>
    %42 = arith.maximumf %40, %41 : vector<8x512xf32>
    %43 = math.absf %40 : vector<8x512xf32>
    %cst_27 = arith.constant 0.000000e+00 : f32
    %44 = vector.broadcast %cst_27 : f32 to vector<8x512xf32>
    %45 = arith.subf %44, %43 : vector<8x512xf32>
    %46 = math.exp %45 : vector<8x512xf32>
    %47 = math.log1p %46 : vector<8x512xf32>
    %48 = arith.addf %42, %47 : vector<8x512xf32>
    %c0_28 = arith.constant 0 : index
    %c0_29 = arith.constant 0 : index
    %49 = vector.load %arg10[%c0_28, %c0_29] : memref<512x512xbf16, #tpu.memory_space<vmem>>, vector<512x512xbf16>
    %c0_30 = arith.constant 0 : index
    %c0_31 = arith.constant 0 : index
    %50 = vector.load %arg11[%c0_30, %c0_31] : memref<1x512xf32, #tpu.memory_space<vmem>>, vector<1x512xf32>
    %51 = arith.truncf %48 : vector<8x512xf32> to vector<8x512xbf16>
    %cst_32 = arith.constant dense<0.000000e+00> : vector<8x512xf32>
    %52 = tpu.matmul %51, %49, %cst_32 {dimension_numbers = #tpu.dot_dimension_numbers<[1], [0], [0], [1], [0, 0, 1, 1], [], []>} : vector<8x512xbf16>, vector<512x512xbf16>, vector<8x512xf32> -> vector<8x512xf32>
    %53 = vector.broadcast %50 : vector<1x512xf32> to vector<8x512xf32>
    %54 = arith.addf %52, %53 : vector<8x512xf32>
    %cst_33 = arith.constant 0.000000e+00 : f32
    %55 = vector.broadcast %cst_33 : f32 to vector<8x512xf32>
    %56 = arith.maximumf %54, %55 : vector<8x512xf32>
    %57 = math.absf %54 : vector<8x512xf32>
    %cst_34 = arith.constant 0.000000e+00 : f32
    %58 = vector.broadcast %cst_34 : f32 to vector<8x512xf32>
    %59 = arith.subf %58, %57 : vector<8x512xf32>
    %60 = math.exp %59 : vector<8x512xf32>
    %61 = math.log1p %60 : vector<8x512xf32>
    %62 = arith.addf %56, %61 : vector<8x512xf32>
    %c0_35 = arith.constant 0 : index
    %c0_36 = arith.constant 0 : index
    %63 = vector.load %arg12[%c0_35, %c0_36] : memref<512x784xbf16, #tpu.memory_space<vmem>>, vector<512x784xbf16>
    %c0_37 = arith.constant 0 : index
    %c0_38 = arith.constant 0 : index
    %64 = vector.load %arg13[%c0_37, %c0_38] : memref<1x784xf32, #tpu.memory_space<vmem>>, vector<1x784xf32>
    %65 = arith.truncf %62 : vector<8x512xf32> to vector<8x512xbf16>
    %cst_39 = arith.constant dense<0.000000e+00> : vector<8x784xf32>
    %66 = tpu.matmul %65, %63, %cst_39 {dimension_numbers = #tpu.dot_dimension_numbers<[1], [0], [0], [1], [0, 0, 1, 1], [], []>} : vector<8x512xbf16>, vector<512x784xbf16>, vector<8x784xf32> -> vector<8x784xf32>
    %67 = vector.broadcast %64 : vector<1x784xf32> to vector<8x784xf32>
    %68 = arith.addf %66, %67 : vector<8x784xf32>
    %cst_40 = arith.constant 5.000000e-01 : f32
    %69 = vector.broadcast %cst_40 : f32 to vector<8x784xf32>
    %70 = arith.mulf %69, %68 : vector<8x784xf32>
    %71 = math.tanh %70 : vector<8x784xf32>
    %cst_41 = arith.constant 5.000000e-01 : f32
    %72 = vector.broadcast %cst_41 : f32 to vector<8x784xf32>
    %73 = arith.mulf %72, %71 : vector<8x784xf32>
    %cst_42 = arith.constant 5.000000e-01 : f32
    %74 = vector.broadcast %cst_42 : f32 to vector<8x784xf32>
    %75 = arith.addf %73, %74 : vector<8x784xf32>
    %76 = arith.truncf %75 : vector<8x784xf32> to vector<8x784xbf16>
    %c0_43 = arith.constant 0 : index
    %c0_44 = arith.constant 0 : index
    %77 = vector.load %arg15[%c0_43, %c0_44] : memref<8x784xbf16, #tpu.memory_space<vmem>>, vector<8x784xbf16>
    tpu.vector_store %arg15[%c0_43, %c0_44], %76 {strides = array<i32>} : memref<8x784xbf16, #tpu.memory_space<vmem>>, vector<8x784xbf16>,
    return
  }
  func.func @transform_0(%arg0: i32) -> (i32, i32) {
    %c0_i32 = arith.constant 0 : i32
    %c0_i32_0 = arith.constant 0 : i32
    return %arg0, %c0_i32 : i32, i32
  }
  func.func @transform_1(%arg0: i32) -> (i32, i32) {
    %c0_i32 = arith.constant 0 : i32
    %c0_i32_0 = arith.constant 0 : i32
    %c0_i32_1 = arith.constant 0 : i32
    return %c0_i32, %c0_i32_0 : i32, i32
  }
  func.func @transform_2(%arg0: i32) -> (i32, i32) {
    %c0_i32 = arith.constant 0 : i32
    %c0_i32_0 = arith.constant 0 : i32
    %c0_i32_1 = arith.constant 0 : i32
    return %c0_i32, %c0_i32_0 : i32, i32
  }
  func.func @transform_3(%arg0: i32) -> (i32, i32) {
    %c0_i32 = arith.constant 0 : i32
    %c0_i32_0 = arith.constant 0 : i32
    %c0_i32_1 = arith.constant 0 : i32
    return %c0_i32, %c0_i32_0 : i32, i32
  }
  func.func @transform_4(%arg0: i32) -> (i32, i32) {
    %c0_i32 = arith.constant 0 : i32
    %c0_i32_0 = arith.constant 0 : i32
    %c0_i32_1 = arith.constant 0 : i32
    return %c0_i32, %c0_i32_0 : i32, i32
  }
  func.func @transform_5(%arg0: i32) -> (i32, i32) {
    %c0_i32 = arith.constant 0 : i32
    %c0_i32_0 = arith.constant 0 : i32
    %c0_i32_1 = arith.constant 0 : i32
    return %c0_i32, %c0_i32_0 : i32, i32
  }
  func.func @transform_6(%arg0: i32) -> (i32, i32) {
    %c0_i32 = arith.constant 0 : i32
    %c0_i32_0 = arith.constant 0 : i32
    %c0_i32_1 = arith.constant 0 : i32
    return %c0_i32, %c0_i32_0 : i32, i32
  }
  func.func @transform_7(%arg0: i32) -> (i32, i32) {
    %c0_i32 = arith.constant 0 : i32
    %c0_i32_0 = arith.constant 0 : i32
    %c0_i32_1 = arith.constant 0 : i32
    return %c0_i32, %c0_i32_0 : i32, i32
  }
  func.func @transform_8(%arg0: i32) -> (i32, i32) {
    %c0_i32 = arith.constant 0 : i32
    %c0_i32_0 = arith.constant 0 : i32
    %c0_i32_1 = arith.constant 0 : i32
    return %c0_i32, %c0_i32_0 : i32, i32
  }
  func.func @transform_9(%arg0: i32) -> (i32, i32) {
    %c0_i32 = arith.constant 0 : i32
    %c0_i32_0 = arith.constant 0 : i32
    %c0_i32_1 = arith.constant 0 : i32
    return %c0_i32, %c0_i32_0 : i32, i32
  }
  func.func @transform_10(%arg0: i32) -> (i32, i32) {
    %c0_i32 = arith.constant 0 : i32
    %c0_i32_0 = arith.constant 0 : i32
    %c0_i32_1 = arith.constant 0 : i32
    return %c0_i32, %c0_i32_0 : i32, i32
  }
  func.func @transform_11(%arg0: i32) -> (i32, i32) {
    %c0_i32 = arith.constant 0 : i32
    %c0_i32_0 = arith.constant 0 : i32
    %c0_i32_1 = arith.constant 0 : i32
    return %c0_i32, %c0_i32_0 : i32, i32
  }
  func.func @transform_12(%arg0: i32) -> (i32, i32) {
    %c0_i32 = arith.constant 0 : i32
    %c0_i32_0 = arith.constant 0 : i32
    %c0_i32_1 = arith.constant 0 : i32
    return %c0_i32, %c0_i32_0 : i32, i32
  }
  func.func @transform_13(%arg0: i32) -> (i32, i32) {
    %c0_i32 = arith.constant 0 : i32
    %c0_i32_0 = arith.constant 0 : i32
    return %arg0, %c0_i32 : i32, i32
  }
  func.func @transform_14(%arg0: i32) -> (i32, i32) {
    %c0_i32 = arith.constant 0 : i32
    %c0_i32_0 = arith.constant 0 : i32
    return %arg0, %c0_i32 : i32, i32
  }
}

</mosaic_0001>

<llo_original>
// kernel: autoencoder_forward.1
$region0: #{autoencoder_forward.1}
  #allocation0 [shape = 'u32[]', space=smem, size = 0x4, offset = 0x4, fixed_abs, tag = 'smem constant byte address 0x4 - core index']
  #allocation1 [shape = 'u32[144,128]{1,0:T(1,128)}', space=vmem, size = 0x12000, scoped, tag = 'internal scratch']
  %s0 = inlined_call_operand.vmem [shape: bf16[8,784], index: 0, kind: input, shape index: {}]
  %s1 = inlined_call_operand.vmem [shape: bf16[784,512], index: 1, kind: input, shape index: {}]
  %s2 = inlined_call_operand.vmem [shape: f32[1,512], index: 2, kind: input, shape index: {}]
  %s3 = inlined_call_operand.vmem [shape: bf16[512,512], index: 3, kind: input, shape index: {}]
  %s4 = inlined_call_operand.vmem [shape: f32[1,512], index: 4, kind: input, shape index: {}]
  %s5 = inlined_call_operand.vmem [shape: bf16[512,128], index: 5, kind: input, shape index: {}]
  %s6 = inlined_call_operand.vmem [shape: f32[1,128], index: 6, kind: input, shape index: {}]
  %s7 = inlined_call_operand.vmem [shape: bf16[128,512], index: 7, kind: input, shape index: {}]
  %s8 = inlined_call_operand.vmem [shape: f32[1,512], index: 8, kind: input, shape index: {}]
  %s9 = inlined_call_operand.vmem [shape: bf16[512,512], index: 9, kind: input, shape index: {}]
  %s10 = inlined_call_operand.vmem [shape: f32[1,512], index: 10, kind: input, shape index: {}]
  %s11 = inlined_call_operand.vmem [shape: bf16[512,784], index: 11, kind: input, shape index: {}]
  %s12 = inlined_call_operand.vmem [shape: f32[1,784], index: 12, kind: input, shape index: {}]
  %s13 = inlined_call_operand.hbm [shape: f32[8,128], index: 13, kind: output, shape index: {0}]
  %s14 = inlined_call_operand.vmem [shape: bf16[8,784], index: 14, kind: output, shape index: {1}]
  %15 = xla_tuple %s13, %s14
  %s16 = sld [smem:[#allocation0]]
  $region70: #{autoencoder_forward.1} parent=0
    _
  %s18 = ssub.s32 1, %s16
  %s19 = scalar_select 0, %s18, %s16
  $region1: #{autoencoder_forward.1} parent=0
    #allocation2 [shape = 'u8[4096]{0}', space=vmem, size = 0x1000, scoped, tag = 'output window, operand 0, single buffered']
    #allocation3 [shape = 's32[1]{0}', space=sflag, size = 0x4, scoped, tag = 'scoped memory for autoencoder_forward.1']
    %20 = vsyncpa [#allocation3], 0
    // Predicated region
    $region2: #{autoencoder_forward.1} parent=1 // pred_check
      _
    $region3: #{autoencoder_forward.1} parent=1 // pred_check_branch
      %22 = sbr.rel (0) target = $region5
    $region4: #{autoencoder_forward.1} parent=1 // pred_region
      _
    $region5: #{autoencoder_forward.1} parent=1 // pred_fallthru
      _
    // Predicated region
    $region6: #{autoencoder_forward.1} parent=1 // pred_check
      _
    $region7: #{autoencoder_forward.1} parent=1 // pred_check_branch
      %24 = sbr.rel (0) target = $region9
    $region8: #{autoencoder_forward.1} parent=1 // pred_region
      _
    $region9: #{autoencoder_forward.1} parent=1 // pred_fallthru
      _
    // Predicated region
    $region10: #{autoencoder_forward.1} parent=1 // pred_check
      _
    $region11: #{autoencoder_forward.1} parent=1 // pred_check_branch
      %26 = sbr.rel (0) target = $region13
    $region12: #{autoencoder_forward.1} parent=1 // pred_region
      _
    $region13: #{autoencoder_forward.1} parent=1 // pred_fallthru
      _
    // Predicated region
    $region14: #{autoencoder_forward.1} parent=1 // pred_check
      _
    $region15: #{autoencoder_forward.1} parent=1 // pred_check_branch
      %28 = sbr.rel (0) target = $region17
    $region16: #{autoencoder_forward.1} parent=1 // pred_region
      _
    $region17: #{autoencoder_forward.1} parent=1 // pred_fallthru
      _
    // Predicated region
    $region18: #{autoencoder_forward.1} parent=1 // pred_check
      _
    $region19: #{autoencoder_forward.1} parent=1 // pred_check_branch
      %30 = sbr.rel (0) target = $region21
    $region20: #{autoencoder_forward.1} parent=1 // pred_region
      _
    $region21: #{autoencoder_forward.1} parent=1 // pred_fallthru
      _
    // Predicated region
    $region22: #{autoencoder_forward.1} parent=1 // pred_check
      _
    $region23: #{autoencoder_forward.1} parent=1 // pred_check_branch
      %32 = sbr.rel (0) target = $region25
    $region24: #{autoencoder_forward.1} parent=1 // pred_region
      _
    $region25: #{autoencoder_forward.1} parent=1 // pred_fallthru
      _
    // Predicated region
    $region26: #{autoencoder_forward.1} parent=1 // pred_check
      _
    $region27: #{autoencoder_forward.1} parent=1 // pred_check_branch
      %34 = sbr.rel (0) target = $region29
    $region28: #{autoencoder_forward.1} parent=1 // pred_region
      _
    $region29: #{autoencoder_forward.1} parent=1 // pred_fallthru
      _
    // Predicated region
    $region30: #{autoencoder_forward.1} parent=1 // pred_check
      _
    $region31: #{autoencoder_forward.1} parent=1 // pred_check_branch
      %36 = sbr.rel (0) target = $region33
    $region32: #{autoencoder_forward.1} parent=1 // pred_region
      _
    $region33: #{autoencoder_forward.1} parent=1 // pred_fallthru
      _
    // Predicated region
    $region34: #{autoencoder_forward.1} parent=1 // pred_check
      _
    $region35: #{autoencoder_forward.1} parent=1 // pred_check_branch
      %38 = sbr.rel (0) target = $region37
    $region36: #{autoencoder_forward.1} parent=1 // pred_region
      _
    $region37: #{autoencoder_forward.1} parent=1 // pred_fallthru
      _
    // Predicated region
    $region38: #{autoencoder_forward.1} parent=1 // pred_check
      _
    $region39: #{autoencoder_forward.1} parent=1 // pred_check_branch
      %40 = sbr.rel (0) target = $region41
    $region40: #{autoencoder_forward.1} parent=1 // pred_region
      _
    $region41: #{autoencoder_forward.1} parent=1 // pred_fallthru
      _
    // Predicated region
    $region42: #{autoencoder_forward.1} parent=1 // pred_check
      _
    $region43: #{autoencoder_forward.1} parent=1 // pred_check_branch
      %42 = sbr.rel (0) target = $region45
    $region44: #{autoencoder_forward.1} parent=1 // pred_region
      _
    $region45: #{autoencoder_forward.1} parent=1 // pred_fallthru
      _
    // Predicated region
    $region46: #{autoencoder_forward.1} parent=1 // pred_check
      _
    $region47: #{autoencoder_forward.1} parent=1 // pred_check_branch
      %44 = sbr.rel (0) target = $region49
    $region48: #{autoencoder_forward.1} parent=1 // pred_region
      _
    $region49: #{autoencoder_forward.1} parent=1 // pred_fallthru
      _
    // Predicated region
    $region50: #{autoencoder_forward.1} parent=1 // pred_check
      _
    $region51: #{autoencoder_forward.1} parent=1 // pred_check_branch
      %46 = sbr.rel (0) target = $region53
    $region52: #{autoencoder_forward.1} parent=1 // pred_region
      _
    $region53: #{autoencoder_forward.1} parent=1 // pred_fallthru
      _
    %v48 = vld [vmem:[%s0] sm:$0xff]
    %v49 = vld [vmem:[%s0 + $0x8] sm:$0xff]
    %v50 = vld [vmem:[%s0 + $0x10] sm:$0xff]
    %v51 = vld [vmem:[%s0 + $0x18] sm:$0xf]
    %v52 = vld [vmem:[%s1] sm:$0xff]
    %v53 = vld [vmem:[%s1 + $0x8] sm:$0xff]
    %v54 = vld [vmem:[%s1 + $0x10] sm:$0xff]
    %v55 = vld [vmem:[%s1 + $0x18] sm:$0xff]
    %v56 = vld [vmem:[%s1 + $0x20] sm:$0xff]
    %v57 = vld [vmem:[%s1 + $0x28] sm:$0xff]
    %v58 = vld [vmem:[%s1 + $0x30] sm:$0xff]
    %v59 = vld [vmem:[%s1 + $0x38] sm:$0xff]
    %v60 = vld [vmem:[%s1 + $0x40] sm:$0xff]
    %v61 = vld [vmem:[%s1 + $0x48] sm:$0xff]
    %v62 = vld [vmem:[%s1 + $0x50] sm:$0xff]
    %v63 = vld [vmem:[%s1 + $0x58] sm:$0xff]
    %v64 = vld [vmem:[%s1 + $0x60] sm:$0xff]
    %v65 = vld [vmem:[%s1 + $0x68] sm:$0xff]
    %v66 = vld [vmem:[%s1 + $0x70] sm:$0xff]
    %v67 = vld [vmem:[%s1 + $0x78] sm:$0xff]
    %v68 = vld [vmem:[%s1 + $0x80] sm:$0xff]
    %v69 = vld [vmem:[%s1 + $0x88] sm:$0xff]
    %v70 = vld [vmem:[%s1 + $0x90] sm:$0xff]
    %v71 = vld [vmem:[%s1 + $0x98] sm:$0xff]
    %v72 = vld [vmem:[%s1 + $0xa0] sm:$0xff]
    %v73 = vld [vmem:[%s1 + $0xa8] sm:$0xff]
    %v74 = vld [vmem:[%s1 + $0xb0] sm:$0xff]
    %v75 = vld [vmem:[%s1 + $0xb8] sm:$0xff]
    %v76 = vld [vmem:[%s1 + $0xc0] sm:$0xff]
    %v77 = vld [vmem:[%s1 + $0xc8] sm:$0xff]
    %v78 = vld [vmem:[%s1 + $0xd0] sm:$0xff]
    %v79 = vld [vmem:[%s1 + $0xd8] sm:$0xff]
    %v80 = vld [vmem:[%s1 + $0xe0] sm:$0xff]
    %v81 = vld [vmem:[%s1 + $0xe8] sm:$0xff]
    %v82 = vld [vmem:[%s1 + $0xf0] sm:$0xff]
    %v83 = vld [vmem:[%s1 + $0xf8] sm:$0xff]
    %v84 = vld [vmem:[%s1 + $0x100] sm:$0xff]
    %v85 = vld [vmem:[%s1 + $0x108] sm:$0xff]
    %v86 = vld [vmem:[%s1 + $0x110] sm:$0xff]
    %v87 = vld [vmem:[%s1 + $0x118] sm:$0xff]
    %v88 = vld [vmem:[%s1 + $0x120] sm:$0xff]
    %v89 = vld [vmem:[%s1 + $0x128] sm:$0xff]
    %v90 = vld [vmem:[%s1 + $0x130] sm:$0xff]
    %v91 = vld [vmem:[%s1 + $0x138] sm:$0xff]
    %v92 = vld [vmem:[%s1 + $0x140] sm:$0xff]
    %v93 = vld [vmem:[%s1 + $0x148] sm:$0xff]
    %v94 = vld [vmem:[%s1 + $0x150] sm:$0xff]
    %v95 = vld [vmem:[%s1 + $0x158] sm:$0xff]
    %v96 = vld [vmem:[%s1 + $0x160] sm:$0xff]
    %v97 = vld [vmem:[%s1 + $0x168] sm:$0xff]
    %v98 = vld [vmem:[%s1 + $0x170] sm:$0xff]
    %v99 = vld [vmem:[%s1 + $0x178] sm:$0xff]
    %v100 = vld [vmem:[%s1 + $0x180] sm:$0xff]
    %v101 = vld [vmem:[%s1 + $0x188] sm:$0xff]
    %v102 = vld [vmem:[%s1 + $0x190] sm:$0xff]
    %v103 = vld [vmem:[%s1 + $0x198] sm:$0xff]
    %v104 = vld [vmem:[%s1 + $0x1a0] sm:$0xff]
    %v105 = vld [vmem:[%s1 + $0x1a8] sm:$0xff]
    %v106 = vld [vmem:[%s1 + $0x1b0] sm:$0xff]
    %v107 = vld [vmem:[%s1 + $0x1b8] sm:$0xff]
    %v108 = vld [vmem:[%s1 + $0x1c0] sm:$0xff]
    %v109 = vld [vmem:[%s1 + $0x1c8] sm:$0xff]
    %v110 = vld [vmem:[%s1 + $0x1d0] sm:$0xff]
    %v111 = vld [vmem:[%s1 + $0x1d8] sm:$0xff]
    %v112 = vld [vmem:[%s1 + $0x1e0] sm:$0xff]
    %v113 = vld [vmem:[%s1 + $0x1e8] sm:$0xff]
    %v114 = vld [vmem:[%s1 + $0x1f0] sm:$0xff]
    %v115 = vld [vmem:[%s1 + $0x1f8] sm:$0xff]
    %v116 = vld [vmem:[%s1 + $0x200] sm:$0xff]
    %v117 = vld [vmem:[%s1 + $0x208] sm:$0xff]
    %v118 = vld [vmem:[%s1 + $0x210] sm:$0xff]
    %v119 = vld [vmem:[%s1 + $0x218] sm:$0xff]
    %v120 = vld [vmem:[%s1 + $0x220] sm:$0xff]
    %v121 = vld [vmem:[%s1 + $0x228] sm:$0xff]
    %v122 = vld [vmem:[%s1 + $0x230] sm:$0xff]
    %v123 = vld [vmem:[%s1 + $0x238] sm:$0xff]
    %v124 = vld [vmem:[%s1 + $0x240] sm:$0xff]
    %v125 = vld [vmem:[%s1 + $0x248] sm:$0xff]
    %v126 = vld [vmem:[%s1 + $0x250] sm:$0xff]
    %v127 = vld [vmem:[%s1 + $0x258] sm:$0xff]
    %v128 = vld [vmem:[%s1 + $0x260] sm:$0xff]
    %v129 = vld [vmem:[%s1 + $0x268] sm:$0xff]
    %v130 = vld [vmem:[%s1 + $0x270] sm:$0xff]
    %v131 = vld [vmem:[%s1 + $0x278] sm:$0xff]
    %v132 = vld [vmem:[%s1 + $0x280] sm:$0xff]
    %v133 = vld [vmem:[%s1 + $0x288] sm:$0xff]
    %v134 = vld [vmem:[%s1 + $0x290] sm:$0xff]
    %v135 = vld [vmem:[%s1 + $0x298] sm:$0xff]
    %v136 = vld [vmem:[%s1 + $0x2a0] sm:$0xff]
    %v137 = vld [vmem:[%s1 + $0x2a8] sm:$0xff]
    %v138 = vld [vmem:[%s1 + $0x2b0] sm:$0xff]
    %v139 = vld [vmem:[%s1 + $0x2b8] sm:$0xff]
    %v140 = vld [vmem:[%s1 + $0x2c0] sm:$0xff]
    %v141 = vld [vmem:[%s1 + $0x2c8] sm:$0xff]
    %v142 = vld [vmem:[%s1 + $0x2d0] sm:$0xff]
    %v143 = vld [vmem:[%s1 + $0x2d8] sm:$0xff]
    %v144 = vld [vmem:[%s1 + $0x2e0] sm:$0xff]
    %v145 = vld [vmem:[%s1 + $0x2e8] sm:$0xff]
    %v146 = vld [vmem:[%s1 + $0x2f0] sm:$0xff]
    %v147 = vld [vmem:[%s1 + $0x2f8] sm:$0xff]
    %v148 = vld [vmem:[%s1 + $0x300] sm:$0xff]
    %v149 = vld [vmem:[%s1 + $0x308] sm:$0xff]
    %v150 = vld [vmem:[%s1 + $0x310] sm:$0xff]
    %v151 = vld [vmem:[%s1 + $0x318] sm:$0xff]
    %v152 = vld [vmem:[%s1 + $0x320] sm:$0xff]
    %v153 = vld [vmem:[%s1 + $0x328] sm:$0xff]
    %v154 = vld [vmem:[%s1 + $0x330] sm:$0xff]
    %v155 = vld [vmem:[%s1 + $0x338] sm:$0xff]
    %v156 = vld [vmem:[%s1 + $0x340] sm:$0xff]
    %v157 = vld [vmem:[%s1 + $0x348] sm:$0xff]
    %v158 = vld [vmem:[%s1 + $0x350] sm:$0xff]
    %v159 = vld [vmem:[%s1 + $0x358] sm:$0xff]
    %v160 = vld [vmem:[%s1 + $0x360] sm:$0xff]
    %v161 = vld [vmem:[%s1 + $0x368] sm:$0xff]
    %v162 = vld [vmem:[%s1 + $0x370] sm:$0xff]
    %v163 = vld [vmem:[%s1 + $0x378] sm:$0xff]
    %v164 = vld [vmem:[%s1 + $0x380] sm:$0xff]
    %v165 = vld [vmem:[%s1 + $0x388] sm:$0xff]
    %v166 = vld [vmem:[%s1 + $0x390] sm:$0xff]
    %v167 = vld [vmem:[%s1 + $0x398] sm:$0xff]
    %v168 = vld [vmem:[%s1 + $0x3a0] sm:$0xff]
    %v169 = vld [vmem:[%s1 + $0x3a8] sm:$0xff]
    %v170 = vld [vmem:[%s1 + $0x3b0] sm:$0xff]
    %v171 = vld [vmem:[%s1 + $0x3b8] sm:$0xff]
    %v172 = vld [vmem:[%s1 + $0x3c0] sm:$0xff]
    %v173 = vld [vmem:[%s1 + $0x3c8] sm:$0xff]
    %v174 = vld [vmem:[%s1 + $0x3d0] sm:$0xff]
    %v175 = vld [vmem:[%s1 + $0x3d8] sm:$0xff]
    %v176 = vld [vmem:[%s1 + $0x3e0] sm:$0xff]
    %v177 = vld [vmem:[%s1 + $0x3e8] sm:$0xff]
    %v178 = vld [vmem:[%s1 + $0x3f0] sm:$0xff]
    %v179 = vld [vmem:[%s1 + $0x3f8] sm:$0xff]
    %v180 = vld [vmem:[%s1 + $0x400] sm:$0xff]
    %v181 = vld [vmem:[%s1 + $0x408] sm:$0xff]
    %v182 = vld [vmem:[%s1 + $0x410] sm:$0xff]
    %v183 = vld [vmem:[%s1 + $0x418] sm:$0xff]
    %v184 = vld [vmem:[%s1 + $0x420] sm:$0xff]
    %v185 = vld [vmem:[%s1 + $0x428] sm:$0xff]
    %v186 = vld [vmem:[%s1 + $0x430] sm:$0xff]
    %v187 = vld [vmem:[%s1 + $0x438] sm:$0xff]
    %v188 = vld [vmem:[%s1 + $0x440] sm:$0xff]
    %v189 = vld [vmem:[%s1 + $0x448] sm:$0xff]
    %v190 = vld [vmem:[%s1 + $0x450] sm:$0xff]
    %v191 = vld [vmem:[%s1 + $0x458] sm:$0xff]
    %v192 = vld [vmem:[%s1 + $0x460] sm:$0xff]
    %v193 = vld [vmem:[%s1 + $0x468] sm:$0xff]
    %v194 = vld [vmem:[%s1 + $0x470] sm:$0xff]
    %v195 = vld [vmem:[%s1 + $0x478] sm:$0xff]
    %v196 = vld [vmem:[%s1 + $0x480] sm:$0xff]
    %v197 = vld [vmem:[%s1 + $0x488] sm:$0xff]
    %v198 = vld [vmem:[%s1 + $0x490] sm:$0xff]
    %v199 = vld [vmem:[%s1 + $0x498] sm:$0xff]
    %v200 = vld [vmem:[%s1 + $0x4a0] sm:$0xff]
    %v201 = vld [vmem:[%s1 + $0x4a8] sm:$0xff]
    %v202 = vld [vmem:[%s1 + $0x4b0] sm:$0xff]
    %v203 = vld [vmem:[%s1 + $0x4b8] sm:$0xff]
    %v204 = vld [vmem:[%s1 + $0x4c0] sm:$0xff]
    %v205 = vld [vmem:[%s1 + $0x4c8] sm:$0xff]
    %v206 = vld [vmem:[%s1 + $0x4d0] sm:$0xff]
    %v207 = vld [vmem:[%s1 + $0x4d8] sm:$0xff]
    %v208 = vld [vmem:[%s1 + $0x4e0] sm:$0xff]
    %v209 = vld [vmem:[%s1 + $0x4e8] sm:$0xff]
    %v210 = vld [vmem:[%s1 + $0x4f0] sm:$0xff]
    %v211 = vld [vmem:[%s1 + $0x4f8] sm:$0xff]
    %v212 = vld [vmem:[%s1 + $0x500] sm:$0xff]
    %v213 = vld [vmem:[%s1 + $0x508] sm:$0xff]
    %v214 = vld [vmem:[%s1 + $0x510] sm:$0xff]
    %v215 = vld [vmem:[%s1 + $0x518] sm:$0xff]
    %v216 = vld [vmem:[%s1 + $0x520] sm:$0xff]
    %v217 = vld [vmem:[%s1 + $0x528] sm:$0xff]
    %v218 = vld [vmem:[%s1 + $0x530] sm:$0xff]
    %v219 = vld [vmem:[%s1 + $0x538] sm:$0xff]
    %v220 = vld [vmem:[%s1 + $0x540] sm:$0xff]
    %v221 = vld [vmem:[%s1 + $0x548] sm:$0xff]
    %v222 = vld [vmem:[%s1 + $0x550] sm:$0xff]
    %v223 = vld [vmem:[%s1 + $0x558] sm:$0xff]
    %v224 = vld [vmem:[%s1 + $0x560] sm:$0xff]
    %v225 = vld [vmem:[%s1 + $0x568] sm:$0xff]
    %v226 = vld [vmem:[%s1 + $0x570] sm:$0xff]
    %v227 = vld [vmem:[%s1 + $0x578] sm:$0xff]
    %v228 = vld [vmem:[%s1 + $0x580] sm:$0xff]
    %v229 = vld [vmem:[%s1 + $0x588] sm:$0xff]
    %v230 = vld [vmem:[%s1 + $0x590] sm:$0xff]
    %v231 = vld [vmem:[%s1 + $0x598] sm:$0xff]
    %v232 = vld [vmem:[%s1 + $0x5a0] sm:$0xff]
    %v233 = vld [vmem:[%s1 + $0x5a8] sm:$0xff]
    %v234 = vld [vmem:[%s1 + $0x5b0] sm:$0xff]
    %v235 = vld [vmem:[%s1 + $0x5b8] sm:$0xff]
    %v236 = vld [vmem:[%s1 + $0x5c0] sm:$0xff]
    %v237 = vld [vmem:[%s1 + $0x5c8] sm:$0xff]
    %v238 = vld [vmem:[%s1 + $0x5d0] sm:$0xff]
    %v239 = vld [vmem:[%s1 + $0x5d8] sm:$0xff]
    %v240 = vld [vmem:[%s1 + $0x5e0] sm:$0xff]
    %v241 = vld [vmem:[%s1 + $0x5e8] sm:$0xff]
    %v242 = vld [vmem:[%s1 + $0x5f0] sm:$0xff]
    %v243 = vld [vmem:[%s1 + $0x5f8] sm:$0xff]
    %v244 = vld [vmem:[%s1 + $0x600] sm:$0xff]
    %v245 = vld [vmem:[%s1 + $0x608] sm:$0xff]
    %v246 = vld [vmem:[%s1 + $0x610] sm:$0xff]
    %v247 = vld [vmem:[%s1 + $0x618] sm:$0xff]
    %v248 = vld [vmem:[%s2] sm:$0xf]
    %v250 = vlaneseq
    %v251 = vshrl.u32 %v250, 7
    %v252 = vsub.s32 0, %v251
    %v253 = vrot.slane %v248, %v252
    %v254 = vlaneseq
    %v255 = vshrl.u32 %v254, 7
    %v256 = vsub.s32 1, %v255
    %v257 = vrot.slane %v248, %v256
    %v258 = vlaneseq
    %v259 = vshrl.u32 %v258, 7
    %v260 = vsub.s32 2, %v259
    %v261 = vrot.slane %v248, %v260
    %v262 = vlaneseq
    %v263 = vshrl.u32 %v262, 7
    %v264 = vsub.s32 3, %v263
    %v265 = vrot.slane %v248, %v264
    %v274 = vunpack.c.l.b16 %v48
    %v275 = vunpack.c.h.b16 %v48
    %v276 = vunpack.c.l.b16 %v49
    %v277 = vunpack.c.h.b16 %v49
    %v278 = vunpack.c.l.b16 %v50
    %v279 = vunpack.c.h.b16 %v50
    %v280 = vunpack.c.l.b16 %v51
    %v281 = vpack.c.b16 %v274, %v274
    %v282 = vpack.c.b16 %v275, %v275
    %v283 = vpack.c.b16 %v276, %v276
    %v284 = vpack.c.b16 %v277, %v277
    %v285 = vpack.c.b16 %v278, %v278
    %v286 = vpack.c.b16 %v279, %v279
    %v287 = vpack.c.b16 %v280, %v280
    %v490 = vunpack.c.l.b16 %v52
    %v491 = vunpack.c.h.b16 %v52
    %v492 = vunpack.c.l.b16 %v53
    %v493 = vunpack.c.h.b16 %v53
    %v494 = vunpack.c.l.b16 %v54
    %v495 = vunpack.c.h.b16 %v54
    %v496 = vunpack.c.l.b16 %v55
    %v497 = vunpack.c.h.b16 %v55
    %v498 = vunpack.c.l.b16 %v56
    %v499 = vunpack.c.h.b16 %v56
    %v500 = vunpack.c.l.b16 %v57
    %v501 = vunpack.c.h.b16 %v57
    %v502 = vunpack.c.l.b16 %v58
    %v503 = vunpack.c.h.b16 %v58
    %v504 = vunpack.c.l.b16 %v59
    %v505 = vunpack.c.h.b16 %v59
    %v506 = vunpack.c.l.b16 %v60
    %v507 = vunpack.c.h.b16 %v60
    %v508 = vunpack.c.l.b16 %v61
    %v509 = vunpack.c.h.b16 %v61
    %v510 = vunpack.c.l.b16 %v62
    %v511 = vunpack.c.h.b16 %v62
    %v512 = vunpack.c.l.b16 %v63
    %v513 = vunpack.c.h.b16 %v63
    %v514 = vunpack.c.l.b16 %v64
    %v515 = vunpack.c.h.b16 %v64
    %v516 = vunpack.c.l.b16 %v65
    %v517 = vunpack.c.h.b16 %v65
    %v518 = vunpack.c.l.b16 %v66
    %v519 = vunpack.c.h.b16 %v66
    %v520 = vunpack.c.l.b16 %v67
    %v521 = vunpack.c.h.b16 %v67
    %v522 = vunpack.c.l.b16 %v68
    %v523 = vunpack.c.h.b16 %v68
    %v524 = vunpack.c.l.b16 %v69
    %v525 = vunpack.c.h.b16 %v69
    %v526 = vunpack.c.l.b16 %v70
    %v527 = vunpack.c.h.b16 %v70
    %v528 = vunpack.c.l.b16 %v71
    %v529 = vunpack.c.h.b16 %v71
    %v530 = vunpack.c.l.b16 %v72
    %v531 = vunpack.c.h.b16 %v72
    %v532 = vunpack.c.l.b16 %v73
    %v533 = vunpack.c.h.b16 %v73
    %v534 = vunpack.c.l.b16 %v74
    %v535 = vunpack.c.h.b16 %v74
    %v536 = vunpack.c.l.b16 %v75
    %v537 = vunpack.c.h.b16 %v75
    %v538 = vunpack.c.l.b16 %v76
    %v539 = vunpack.c.h.b16 %v76
    %v540 = vunpack.c.l.b16 %v77
    %v541 = vunpack.c.h.b16 %v77
    %v542 = vunpack.c.l.b16 %v78
    %v543 = vunpack.c.h.b16 %v78
    %v544 = vunpack.c.l.b16 %v79
    %v545 = vunpack.c.h.b16 %v79
    %v546 = vunpack.c.l.b16 %v80
    %v547 = vunpack.c.h.b16 %v80
    %v548 = vunpack.c.l.b16 %v81
    %v549 = vunpack.c.h.b16 %v81
    %v550 = vunpack.c.l.b16 %v82
    %v551 = vunpack.c.h.b16 %v82
    %v552 = vunpack.c.l.b16 %v83
    %v553 = vunpack.c.h.b16 %v83
    %v554 = vunpack.c.l.b16 %v84
    %v555 = vunpack.c.h.b16 %v84
    %v556 = vunpack.c.l.b16 %v85
    %v557 = vunpack.c.h.b16 %v85
    %v558 = vunpack.c.l.b16 %v86
    %v559 = vunpack.c.h.b16 %v86
    %v560 = vunpack.c.l.b16 %v87
    %v561 = vunpack.c.h.b16 %v87
    %v562 = vunpack.c.l.b16 %v88
    %v563 = vunpack.c.h.b16 %v88
    %v564 = vunpack.c.l.b16 %v89
    %v565 = vunpack.c.h.b16 %v89
    %v566 = vunpack.c.l.b16 %v90
    %v567 = vunpack.c.h.b16 %v90
    %v568 = vunpack.c.l.b16 %v91
    %v569 = vunpack.c.h.b16 %v91
    %v570 = vunpack.c.l.b16 %v92
    %v571 = vunpack.c.h.b16 %v92
    %v572 = vunpack.c.l.b16 %v93
    %v573 = vunpack.c.h.b16 %v93
    %v574 = vunpack.c.l.b16 %v94
    %v575 = vunpack.c.h.b16 %v94
    %v576 = vunpack.c.l.b16 %v95
    %v577 = vunpack.c.h.b16 %v95
    %v578 = vunpack.c.l.b16 %v96
    %v579 = vunpack.c.h.b16 %v96
    %v580 = vunpack.c.l.b16 %v97
    %v581 = vunpack.c.h.b16 %v97
    %v582 = vunpack.c.l.b16 %v98
    %v583 = vunpack.c.h.b16 %v98
    %v584 = vunpack.c.l.b16 %v99
    %v585 = vunpack.c.h.b16 %v99
    %v586 = vunpack.c.l.b16 %v100
    %v587 = vunpack.c.h.b16 %v100
    %v588 = vunpack.c.l.b16 %v101
    %v589 = vunpack.c.h.b16 %v101
    %v590 = vunpack.c.l.b16 %v102
    %v591 = vunpack.c.h.b16 %v102
    %v592 = vunpack.c.l.b16 %v103
    %v593 = vunpack.c.h.b16 %v103
    %v594 = vunpack.c.l.b16 %v104
    %v595 = vunpack.c.h.b16 %v104
    %v596 = vunpack.c.l.b16 %v105
    %v597 = vunpack.c.h.b16 %v105
    %v598 = vunpack.c.l.b16 %v106
    %v599 = vunpack.c.h.b16 %v106
    %v600 = vunpack.c.l.b16 %v107
    %v601 = vunpack.c.h.b16 %v107
    %v602 = vunpack.c.l.b16 %v108
    %v603 = vunpack.c.h.b16 %v108
    %v604 = vunpack.c.l.b16 %v109
    %v605 = vunpack.c.h.b16 %v109
    %v606 = vunpack.c.l.b16 %v110
    %v607 = vunpack.c.h.b16 %v110
    %v608 = vunpack.c.l.b16 %v111
    %v609 = vunpack.c.h.b16 %v111
    %v610 = vunpack.c.l.b16 %v112
    %v611 = vunpack.c.h.b16 %v112
    %v612 = vunpack.c.l.b16 %v113
    %v613 = vunpack.c.h.b16 %v113
    %v614 = vunpack.c.l.b16 %v114
    %v615 = vunpack.c.h.b16 %v114
    %v616 = vunpack.c.l.b16 %v115
    %v617 = vunpack.c.h.b16 %v115
    %v618 = vunpack.c.l.b16 %v116
    %v619 = vunpack.c.h.b16 %v116
    %v620 = vunpack.c.l.b16 %v117
    %v621 = vunpack.c.h.b16 %v117
    %v622 = vunpack.c.l.b16 %v118
    %v623 = vunpack.c.h.b16 %v118
    %v624 = vunpack.c.l.b16 %v119
    %v625 = vunpack.c.h.b16 %v119
    %v626 = vunpack.c.l.b16 %v120
    %v627 = vunpack.c.h.b16 %v120
    %v628 = vunpack.c.l.b16 %v121
    %v629 = vunpack.c.h.b16 %v121
    %v630 = vunpack.c.l.b16 %v122
    %v631 = vunpack.c.h.b16 %v122
    %v632 = vunpack.c.l.b16 %v123
    %v633 = vunpack.c.h.b16 %v123
    %v634 = vunpack.c.l.b16 %v124
    %v635 = vunpack.c.h.b16 %v124
    %v636 = vunpack.c.l.b16 %v125
    %v637 = vunpack.c.h.b16 %v125
    %v638 = vunpack.c.l.b16 %v126
    %v639 = vunpack.c.h.b16 %v126
    %v640 = vunpack.c.l.b16 %v127
    %v641 = vunpack.c.h.b16 %v127
    %v642 = vunpack.c.l.b16 %v128
    %v643 = vunpack.c.h.b16 %v128
    %v644 = vunpack.c.l.b16 %v129
    %v645 = vunpack.c.h.b16 %v129
    %v646 = vunpack.c.l.b16 %v130
    %v647 = vunpack.c.h.b16 %v130
    %v648 = vunpack.c.l.b16 %v131
    %v649 = vunpack.c.h.b16 %v131
    %v650 = vunpack.c.l.b16 %v132
    %v651 = vunpack.c.h.b16 %v132
    %v652 = vunpack.c.l.b16 %v133
    %v653 = vunpack.c.h.b16 %v133
    %v654 = vunpack.c.l.b16 %v134
    %v655 = vunpack.c.h.b16 %v134
    %v656 = vunpack.c.l.b16 %v135
    %v657 = vunpack.c.h.b16 %v135
    %v658 = vunpack.c.l.b16 %v136
    %v659 = vunpack.c.h.b16 %v136
    %v660 = vunpack.c.l.b16 %v137
    %v661 = vunpack.c.h.b16 %v137
    %v662 = vunpack.c.l.b16 %v138
    %v663 = vunpack.c.h.b16 %v138
    %v664 = vunpack.c.l.b16 %v139
    %v665 = vunpack.c.h.b16 %v139
    %v666 = vunpack.c.l.b16 %v140
    %v667 = vunpack.c.h.b16 %v140
    %v668 = vunpack.c.l.b16 %v141
    %v669 = vunpack.c.h.b16 %v141
    %v670 = vunpack.c.l.b16 %v142
    %v671 = vunpack.c.h.b16 %v142
    %v672 = vunpack.c.l.b16 %v143
    %v673 = vunpack.c.h.b16 %v143
    %v674 = vunpack.c.l.b16 %v144
    %v675 = vunpack.c.h.b16 %v144
    %v676 = vunpack.c.l.b16 %v145
    %v677 = vunpack.c.h.b16 %v145
    %v678 = vunpack.c.l.b16 %v146
    %v679 = vunpack.c.h.b16 %v146
    %v680 = vunpack.c.l.b16 %v147
    %v681 = vunpack.c.h.b16 %v147
    %v682 = vunpack.c.l.b16 %v148
    %v683 = vunpack.c.h.b16 %v148
    %v684 = vunpack.c.l.b16 %v149
    %v685 = vunpack.c.h.b16 %v149
    %v686 = vunpack.c.l.b16 %v150
    %v687 = vunpack.c.h.b16 %v150
    %v688 = vunpack.c.l.b16 %v151
    %v689 = vunpack.c.h.b16 %v151
    %v690 = vunpack.c.l.b16 %v152
    %v691 = vunpack.c.h.b16 %v152
    %v692 = vunpack.c.l.b16 %v153
    %v693 = vunpack.c.h.b16 %v153
    %v694 = vunpack.c.l.b16 %v154
    %v695 = vunpack.c.h.b16 %v154
    %v696 = vunpack.c.l.b16 %v155
    %v697 = vunpack.c.h.b16 %v155
    %v698 = vunpack.c.l.b16 %v156
    %v699 = vunpack.c.h.b16 %v156
    %v700 = vunpack.c.l.b16 %v157
    %v701 = vunpack.c.h.b16 %v157
    %v702 = vunpack.c.l.b16 %v158
    %v703 = vunpack.c.h.b16 %v158
    %v704 = vunpack.c.l.b16 %v159
    %v705 = vunpack.c.h.b16 %v159
    %v706 = vunpack.c.l.b16 %v160
    %v707 = vunpack.c.h.b16 %v160
    %v708 = vunpack.c.l.b16 %v161
    %v709 = vunpack.c.h.b16 %v161
    %v710 = vunpack.c.l.b16 %v162
    %v711 = vunpack.c.h.b16 %v162
    %v712 = vunpack.c.l.b16 %v163
    %v713 = vunpack.c.h.b16 %v163
    %v714 = vunpack.c.l.b16 %v164
    %v715 = vunpack.c.h.b16 %v164
    %v716 = vunpack.c.l.b16 %v165
    %v717 = vunpack.c.h.b16 %v165
    %v718 = vunpack.c.l.b16 %v166
    %v719 = vunpack.c.h.b16 %v166
    %v720 = vunpack.c.l.b16 %v167
    %v721 = vunpack.c.h.b16 %v167
    %v722 = vunpack.c.l.b16 %v168
    %v723 = vunpack.c.h.b16 %v168
    %v724 = vunpack.c.l.b16 %v169
    %v725 = vunpack.c.h.b16 %v169
    %v726 = vunpack.c.l.b16 %v170
    %v727 = vunpack.c.h.b16 %v170
    %v728 = vunpack.c.l.b16 %v171
    %v729 = vunpack.c.h.b16 %v171
    %v730 = vunpack.c.l.b16 %v172
    %v731 = vunpack.c.h.b16 %v172
    %v732 = vunpack.c.l.b16 %v173
    %v733 = vunpack.c.h.b16 %v173
    %v734 = vunpack.c.l.b16 %v174
    %v735 = vunpack.c.h.b16 %v174
    %v736 = vunpack.c.l.b16 %v175
    %v737 = vunpack.c.h.b16 %v175
    %v738 = vunpack.c.l.b16 %v176
    %v739 = vunpack.c.h.b16 %v176
    %v740 = vunpack.c.l.b16 %v177
    %v741 = vunpack.c.h.b16 %v177
    %v742 = vunpack.c.l.b16 %v178
    %v743 = vunpack.c.h.b16 %v178
    %v744 = vunpack.c.l.b16 %v179
    %v745 = vunpack.c.h.b16 %v179
    %v746 = vunpack.c.l.b16 %v180
    %v747 = vunpack.c.h.b16 %v180
    %v748 = vunpack.c.l.b16 %v181
    %v749 = vunpack.c.h.b16 %v181
    %v750 = vunpack.c.l.b16 %v182
    %v751 = vunpack.c.h.b16 %v182
    %v752 = vunpack.c.l.b16 %v183
    %v753 = vunpack.c.h.b16 %v183
    %v754 = vunpack.c.l.b16 %v184
    %v755 = vunpack.c.h.b16 %v184
    %v756 = vunpack.c.l.b16 %v185
    %v757 = vunpack.c.h.b16 %v185
    %v758 = vunpack.c.l.b16 %v186
    %v759 = vunpack.c.h.b16 %v186
    %v760 = vunpack.c.l.b16 %v187
    %v761 = vunpack.c.h.b16 %v187
    %v762 = vunpack.c.l.b16 %v188
    %v763 = vunpack.c.h.b16 %v188
    %v764 = vunpack.c.l.b16 %v189
    %v765 = vunpack.c.h.b16 %v189
    %v766 = vunpack.c.l.b16 %v190
    %v767 = vunpack.c.h.b16 %v190
    %v768 = vunpack.c.l.b16 %v191
    %v769 = vunpack.c.h.b16 %v191
    %v770 = vunpack.c.l.b16 %v192
    %v771 = vunpack.c.h.b16 %v192
    %v772 = vunpack.c.l.b16 %v193
    %v773 = vunpack.c.h.b16 %v193
    %v774 = vunpack.c.l.b16 %v194
    %v775 = vunpack.c.h.b16 %v194
    %v776 = vunpack.c.l.b16 %v195
    %v777 = vunpack.c.h.b16 %v195
    %v778 = vunpack.c.l.b16 %v196
    %v779 = vunpack.c.h.b16 %v196
    %v780 = vunpack.c.l.b16 %v197
    %v781 = vunpack.c.h.b16 %v197
    %v782 = vunpack.c.l.b16 %v198
    %v783 = vunpack.c.h.b16 %v198
    %v784 = vunpack.c.l.b16 %v199
    %v785 = vunpack.c.h.b16 %v199
    %v786 = vunpack.c.l.b16 %v200
    %v787 = vunpack.c.h.b16 %v200
    %v788 = vunpack.c.l.b16 %v201
    %v789 = vunpack.c.h.b16 %v201
    %v790 = vunpack.c.l.b16 %v202
    %v791 = vunpack.c.h.b16 %v202
    %v792 = vunpack.c.l.b16 %v203
    %v793 = vunpack.c.h.b16 %v203
    %v794 = vunpack.c.l.b16 %v204
    %v795 = vunpack.c.h.b16 %v204
    %v796 = vunpack.c.l.b16 %v205
    %v797 = vunpack.c.h.b16 %v205
    %v798 = vunpack.c.l.b16 %v206
    %v799 = vunpack.c.h.b16 %v206
    %v800 = vunpack.c.l.b16 %v207
    %v801 = vunpack.c.h.b16 %v207
    %v802 = vunpack.c.l.b16 %v208
    %v803 = vunpack.c.h.b16 %v208
    %v804 = vunpack.c.l.b16 %v209
    %v805 = vunpack.c.h.b16 %v209
    %v806 = vunpack.c.l.b16 %v210
    %v807 = vunpack.c.h.b16 %v210
    %v808 = vunpack.c.l.b16 %v211
    %v809 = vunpack.c.h.b16 %v211
    %v810 = vunpack.c.l.b16 %v212
    %v811 = vunpack.c.h.b16 %v212
    %v812 = vunpack.c.l.b16 %v213
    %v813 = vunpack.c.h.b16 %v213
    %v814 = vunpack.c.l.b16 %v214
    %v815 = vunpack.c.h.b16 %v214
    %v816 = vunpack.c.l.b16 %v215
    %v817 = vunpack.c.h.b16 %v215
    %v818 = vunpack.c.l.b16 %v216
    %v819 = vunpack.c.h.b16 %v216
    %v820 = vunpack.c.l.b16 %v217
    %v821 = vunpack.c.h.b16 %v217
    %v822 = vunpack.c.l.b16 %v218
    %v823 = vunpack.c.h.b16 %v218
    %v824 = vunpack.c.l.b16 %v219
    %v825 = vunpack.c.h.b16 %v219
    %v826 = vunpack.c.l.b16 %v220
    %v827 = vunpack.c.h.b16 %v220
    %v828 = vunpack.c.l.b16 %v221
    %v829 = vunpack.c.h.b16 %v221
    %v830 = vunpack.c.l.b16 %v222
    %v831 = vunpack.c.h.b16 %v222
    %v832 = vunpack.c.l.b16 %v223
    %v833 = vunpack.c.h.b16 %v223
    %v834 = vunpack.c.l.b16 %v224
    %v835 = vunpack.c.h.b16 %v224
    %v836 = vunpack.c.l.b16 %v225
    %v837 = vunpack.c.h.b16 %v225
    %v838 = vunpack.c.l.b16 %v226
    %v839 = vunpack.c.h.b16 %v226
    %v840 = vunpack.c.l.b16 %v227
    %v841 = vunpack.c.h.b16 %v227
    %v842 = vunpack.c.l.b16 %v228
    %v843 = vunpack.c.h.b16 %v228
    %v844 = vunpack.c.l.b16 %v229
    %v845 = vunpack.c.h.b16 %v229
    %v846 = vunpack.c.l.b16 %v230
    %v847 = vunpack.c.h.b16 %v230
    %v848 = vunpack.c.l.b16 %v231
    %v849 = vunpack.c.h.b16 %v231
    %v850 = vunpack.c.l.b16 %v232
    %v851 = vunpack.c.h.b16 %v232
    %v852 = vunpack.c.l.b16 %v233
    %v853 = vunpack.c.h.b16 %v233
    %v854 = vunpack.c.l.b16 %v234
    %v855 = vunpack.c.h.b16 %v234
    %v856 = vunpack.c.l.b16 %v235
    %v857 = vunpack.c.h.b16 %v235
    %v858 = vunpack.c.l.b16 %v236
    %v859 = vunpack.c.h.b16 %v236
    %v860 = vunpack.c.l.b16 %v237
    %v861 = vunpack.c.h.b16 %v237
    %v862 = vunpack.c.l.b16 %v238
    %v863 = vunpack.c.h.b16 %v238
    %v864 = vunpack.c.l.b16 %v239
    %v865 = vunpack.c.h.b16 %v239
    %v866 = vunpack.c.l.b16 %v240
    %v867 = vunpack.c.h.b16 %v240
    %v868 = vunpack.c.l.b16 %v241
    %v869 = vunpack.c.h.b16 %v241
    %v870 = vunpack.c.l.b16 %v242
    %v871 = vunpack.c.h.b16 %v242
    %v872 = vunpack.c.l.b16 %v243
    %v873 = vunpack.c.h.b16 %v243
    %v874 = vunpack.c.l.b16 %v244
    %v875 = vunpack.c.h.b16 %v244
    %v876 = vunpack.c.l.b16 %v245
    %v877 = vunpack.c.h.b16 %v245
    %v878 = vunpack.c.l.b16 %v246
    %v879 = vunpack.c.h.b16 %v246
    %v880 = vunpack.c.l.b16 %v247
    %v881 = vunpack.c.h.b16 %v247
    %v882 = vpack.c.b16 %v494, %v490
    %v883 = vpack.c.b16 %v495, %v491
    %v884 = vpack.c.b16 %v496, %v492
    %v885 = vpack.c.b16 %v497, %v493
    %v886 = vpack.c.b16 %v502, %v498
    %v887 = vpack.c.b16 %v503, %v499
    %v888 = vpack.c.b16 %v504, %v500
    %v889 = vpack.c.b16 %v505, %v501
    %v890 = vpack.c.b16 %v510, %v506
    %v891 = vpack.c.b16 %v511, %v507
    %v892 = vpack.c.b16 %v512, %v508
    %v893 = vpack.c.b16 %v513, %v509
    %v894 = vpack.c.b16 %v518, %v514
    %v895 = vpack.c.b16 %v519, %v515
    %v896 = vpack.c.b16 %v520, %v516
    %v897 = vpack.c.b16 %v521, %v517
    %v898 = vpack.c.b16 %v526, %v522
    %v899 = vpack.c.b16 %v527, %v523
    %v900 = vpack.c.b16 %v528, %v524
    %v901 = vpack.c.b16 %v529, %v525
    %v902 = vpack.c.b16 %v534, %v530
    %v903 = vpack.c.b16 %v535, %v531
    %v904 = vpack.c.b16 %v536, %v532
    %v905 = vpack.c.b16 %v537, %v533
    %v906 = vpack.c.b16 %v542, %v538
    %v907 = vpack.c.b16 %v543, %v539
    %v908 = vpack.c.b16 %v544, %v540
    %v909 = vpack.c.b16 %v545, %v541
    %v910 = vpack.c.b16 %v550, %v546
    %v911 = vpack.c.b16 %v551, %v547
    %v912 = vpack.c.b16 %v552, %v548
    %v913 = vpack.c.b16 %v553, %v549
    %v914 = vpack.c.b16 %v558, %v554
    %v915 = vpack.c.b16 %v559, %v555
    %v916 = vpack.c.b16 %v560, %v556
    %v917 = vpack.c.b16 %v561, %v557
    %v918 = vpack.c.b16 %v566, %v562
    %v919 = vpack.c.b16 %v567, %v563
    %v920 = vpack.c.b16 %v568, %v564
    %v921 = vpack.c.b16 %v569, %v565
    %v922 = vpack.c.b16 %v574, %v570
    %v923 = vpack.c.b16 %v575, %v571
    %v924 = vpack.c.b16 %v576, %v572
    %v925 = vpack.c.b16 %v577, %v573
    %v926 = vpack.c.b16 %v582, %v578
    %v927 = vpack.c.b16 %v583, %v579
    %v928 = vpack.c.b16 %v584, %v580
    %v929 = vpack.c.b16 %v585, %v581
    %v930 = vpack.c.b16 %v590, %v586
    %v931 = vpack.c.b16 %v591, %v587
    %v932 = vpack.c.b16 %v592, %v588
    %v933 = vpack.c.b16 %v593, %v589
    %v934 = vpack.c.b16 %v598, %v594
    %v935 = vpack.c.b16 %v599, %v595
    %v936 = vpack.c.b16 %v600, %v596
    %v937 = vpack.c.b16 %v601, %v597
    %v938 = vpack.c.b16 %v606, %v602
    %v939 = vpack.c.b16 %v607, %v603
    %v940 = vpack.c.b16 %v608, %v604
    %v941 = vpack.c.b16 %v609, %v605
    %v942 = vpack.c.b16 %v614, %v610
    %v943 = vpack.c.b16 %v615, %v611
    %v944 = vpack.c.b16 %v616, %v612
    %v945 = vpack.c.b16 %v617, %v613
    %v946 = vpack.c.b16 %v622, %v618
    %v947 = vpack.c.b16 %v623, %v619
    %v948 = vpack.c.b16 %v624, %v620
    %v949 = vpack.c.b16 %v625, %v621
    %v950 = vpack.c.b16 %v630, %v626
    %v951 = vpack.c.b16 %v631, %v627
    %v952 = vpack.c.b16 %v632, %v628
    %v953 = vpack.c.b16 %v633, %v629
    %v954 = vpack.c.b16 %v638, %v634
    %v955 = vpack.c.b16 %v639, %v635
    %v956 = vpack.c.b16 %v640, %v636
    %v957 = vpack.c.b16 %v641, %v637
    %v958 = vpack.c.b16 %v646, %v642
    %v959 = vpack.c.b16 %v647, %v643
    %v960 = vpack.c.b16 %v648, %v644
    %v961 = vpack.c.b16 %v649, %v645
    %v962 = vpack.c.b16 %v654, %v650
    %v963 = vpack.c.b16 %v655, %v651
    %v964 = vpack.c.b16 %v656, %v652
    %v965 = vpack.c.b16 %v657, %v653
    %v966 = vpack.c.b16 %v662, %v658
    %v967 = vpack.c.b16 %v663, %v659
    %v968 = vpack.c.b16 %v664, %v660
    %v969 = vpack.c.b16 %v665, %v661
    %v970 = vpack.c.b16 %v670, %v666
    %v971 = vpack.c.b16 %v671, %v667
    %v972 = vpack.c.b16 %v672, %v668
    %v973 = vpack.c.b16 %v673, %v669
    %v974 = vpack.c.b16 %v678, %v674
    %v975 = vpack.c.b16 %v679, %v675
    %v976 = vpack.c.b16 %v680, %v676
    %v977 = vpack.c.b16 %v681, %v677
    %v978 = vpack.c.b16 %v686, %v682
    %v979 = vpack.c.b16 %v687, %v683
    %v980 = vpack.c.b16 %v688, %v684
    %v981 = vpack.c.b16 %v689, %v685
    %v982 = vpack.c.b16 %v694, %v690
    %v983 = vpack.c.b16 %v695, %v691
    %v984 = vpack.c.b16 %v696, %v692
    %v985 = vpack.c.b16 %v697, %v693
    %v986 = vpack.c.b16 %v702, %v698
    %v987 = vpack.c.b16 %v703, %v699
    %v988 = vpack.c.b16 %v704, %v700
    %v989 = vpack.c.b16 %v705, %v701
    %v990 = vpack.c.b16 %v710, %v706
    %v991 = vpack.c.b16 %v711, %v707
    %v992 = vpack.c.b16 %v712, %v708
    %v993 = vpack.c.b16 %v713, %v709
    %v994 = vpack.c.b16 %v718, %v714
    %v995 = vpack.c.b16 %v719, %v715
    %v996 = vpack.c.b16 %v720, %v716
    %v997 = vpack.c.b16 %v721, %v717
    %v998 = vpack.c.b16 %v726, %v722
    %v999 = vpack.c.b16 %v727, %v723
    %v1000 = vpack.c.b16 %v728, %v724
    %v1001 = vpack.c.b16 %v729, %v725
    %v1002 = vpack.c.b16 %v734, %v730
    %v1003 = vpack.c.b16 %v735, %v731
    %v1004 = vpack.c.b16 %v736, %v732
    %v1005 = vpack.c.b16 %v737, %v733
    %v1006 = vpack.c.b16 %v742, %v738
    %v1007 = vpack.c.b16 %v743, %v739
    %v1008 = vpack.c.b16 %v744, %v740
    %v1009 = vpack.c.b16 %v745, %v741
    %v1010 = vpack.c.b16 %v750, %v746
    %v1011 = vpack.c.b16 %v751, %v747
    %v1012 = vpack.c.b16 %v752, %v748
    %v1013 = vpack.c.b16 %v753, %v749
    %v1014 = vpack.c.b16 %v758, %v754
    %v1015 = vpack.c.b16 %v759, %v755
    %v1016 = vpack.c.b16 %v760, %v756
    %v1017 = vpack.c.b16 %v761, %v757
    %v1018 = vpack.c.b16 %v766, %v762
    %v1019 = vpack.c.b16 %v767, %v763
    %v1020 = vpack.c.b16 %v768, %v764
    %v1021 = vpack.c.b16 %v769, %v765
    %v1022 = vpack.c.b16 %v774, %v770
    %v1023 = vpack.c.b16 %v775, %v771
    %v1024 = vpack.c.b16 %v776, %v772
    %v1025 = vpack.c.b16 %v777, %v773
    %v1026 = vpack.c.b16 %v782, %v778
    %v1027 = vpack.c.b16 %v783, %v779
    %v1028 = vpack.c.b16 %v784, %v780
    %v1029 = vpack.c.b16 %v785, %v781
    %v1030 = vpack.c.b16 %v790, %v786
    %v1031 = vpack.c.b16 %v791, %v787
    %v1032 = vpack.c.b16 %v792, %v788
    %v1033 = vpack.c.b16 %v793, %v789
    %v1034 = vpack.c.b16 %v798, %v794
    %v1035 = vpack.c.b16 %v799, %v795
    %v1036 = vpack.c.b16 %v800, %v796
    %v1037 = vpack.c.b16 %v801, %v797
    %v1038 = vpack.c.b16 %v806, %v802
    %v1039 = vpack.c.b16 %v807, %v803
    %v1040 = vpack.c.b16 %v808, %v804
    %v1041 = vpack.c.b16 %v809, %v805
    %v1042 = vpack.c.b16 %v814, %v810
    %v1043 = vpack.c.b16 %v815, %v811
    %v1044 = vpack.c.b16 %v816, %v812
    %v1045 = vpack.c.b16 %v817, %v813
    %v1046 = vpack.c.b16 %v822, %v818
    %v1047 = vpack.c.b16 %v823, %v819
    %v1048 = vpack.c.b16 %v824, %v820
    %v1049 = vpack.c.b16 %v825, %v821
    %v1050 = vpack.c.b16 %v830, %v826
    %v1051 = vpack.c.b16 %v831, %v827
    %v1052 = vpack.c.b16 %v832, %v828
    %v1053 = vpack.c.b16 %v833, %v829
    %v1054 = vpack.c.b16 %v838, %v834
    %v1055 = vpack.c.b16 %v839, %v835
    %v1056 = vpack.c.b16 %v840, %v836
    %v1057 = vpack.c.b16 %v841, %v837
    %v1058 = vpack.c.b16 %v846, %v842
    %v1059 = vpack.c.b16 %v847, %v843
    %v1060 = vpack.c.b16 %v848, %v844
    %v1061 = vpack.c.b16 %v849, %v845
    %v1062 = vpack.c.b16 %v854, %v850
    %v1063 = vpack.c.b16 %v855, %v851
    %v1064 = vpack.c.b16 %v856, %v852
    %v1065 = vpack.c.b16 %v857, %v853
    %v1066 = vpack.c.b16 %v862, %v858
    %v1067 = vpack.c.b16 %v863, %v859
    %v1068 = vpack.c.b16 %v864, %v860
    %v1069 = vpack.c.b16 %v865, %v861
    %v1070 = vpack.c.b16 %v870, %v866
    %v1071 = vpack.c.b16 %v871, %v867
    %v1072 = vpack.c.b16 %v872, %v868
    %v1073 = vpack.c.b16 %v873, %v869
    %v1074 = vpack.c.b16 %v878, %v874
    %v1075 = vpack.c.b16 %v879, %v875
    %v1076 = vpack.c.b16 %v880, %v876
    %v1077 = vpack.c.b16 %v881, %v877
    %vm1274 = vcmask 130048
    %v1276 = vsel %vm1274, %v287, 0
    %1278 = vmatprep.subr.bf16.mxu0 %v911
    %1279 = vmatpush1.bf16.msra.mxu0 %v910
    %1280 = vmatprep.subr.bf16.mxu0 %v907
    %1281 = vmatpush1.bf16.msra.mxu0 %v906
    %1282 = vmatprep.subr.bf16.mxu0 %v903
    %1283 = vmatpush1.bf16.msra.mxu0 %v902
    %1284 = vmatprep.subr.bf16.mxu0 %v899
    %1285 = vmatpush1.bf16.msra.mxu0 %v898
    %1286 = vmatprep.subr.bf16.mxu0 %v895
    %1287 = vmatpush1.bf16.msra.mxu0 %v894
    %1288 = vmatprep.subr.bf16.mxu0 %v891
    %1289 = vmatpush1.bf16.msra.mxu0 %v890
    %1290 = vmatprep.subr.bf16.mxu0 %v887
    %1291 = vmatpush1.bf16.msra.mxu0 %v886
    %1292 = vmatprep.subr.bf16.mxu0 %v883
    %1293 = vmatpush1.bf16.msra.mxu0 %v882
    %1294 = vmatprep.subr.bf16.mxu0 %v943
    %1295 = vmatpush2.bf16.msra.mxu0 %v942
    %1296 = vmatprep.subr.bf16.mxu0 %v939
    %1297 = vmatpush2.bf16.msra.mxu0 %v938
    %1298 = vmatprep.subr.bf16.mxu0 %v935
    %1299 = vmatpush2.bf16.msra.mxu0 %v934
    %1300 = vmatprep.subr.bf16.mxu0 %v931
    %1301 = vmatpush2.bf16.msra.mxu0 %v930
    %1302 = vmatprep.subr.bf16.mxu0 %v927
    %1303 = vmatpush2.bf16.msra.mxu0 %v926
    %1304 = vmatprep.subr.bf16.mxu0 %v923
    %1305 = vmatpush2.bf16.msra.mxu0 %v922
    %1306 = vmatprep.subr.bf16.mxu0 %v919
    %1307 = vmatpush2.bf16.msra.mxu0 %v918
    %1308 = vmatprep.subr.bf16.mxu0 %v915
    %1309 = vmatpush2.bf16.msra.mxu0 %v914
    %1310 = vmatprep.mubr.bf16.mxu0 %v282
    %1311 = vmatmul.mubr.bf16.gmra.mxu0 %v281
    %v1312 = vpop.f32.mrf.mxu0
    %v1313 = vadd.f32 %v253, %v1312
    %v1314 = vpop.f32.mrf.mxu0
    %v1315 = vadd.f32 %v257, %v1314
    %v1316 = vpop.f32.mrf.mxu0
    %v1317 = vpop.f32.mrf.mxu0
    %1318 = vdwg.mxu0
    %1319 = vmatprep.subr.bf16.mxu0 %v975
    %1320 = vmatpush1.bf16.msra.mxu0 %v974
    %1321 = vmatprep.subr.bf16.mxu0 %v971
    %1322 = vmatpush1.bf16.msra.mxu0 %v970
    %1323 = vmatprep.subr.bf16.mxu0 %v967
    %1324 = vmatpush1.bf16.msra.mxu0 %v966
    %1325 = vmatprep.subr.bf16.mxu0 %v963
    %1326 = vmatpush1.bf16.msra.mxu0 %v962
    %1327 = vmatprep.subr.bf16.mxu0 %v959
    %1328 = vmatpush1.bf16.msra.mxu0 %v958
    %1329 = vmatprep.subr.bf16.mxu0 %v955
    %1330 = vmatpush1.bf16.msra.mxu0 %v954
    %1331 = vmatprep.subr.bf16.mxu0 %v951
    %1332 = vmatpush1.bf16.msra.mxu0 %v950
    %1333 = vmatprep.subr.bf16.mxu0 %v947
    %1334 = vmatpush1.bf16.msra.mxu0 %v946
    %1335 = vmatprep.subr.bf16.mxu0 %v1007
    %1336 = vmatpush2.bf16.msra.mxu0 %v1006
    %1337 = vmatprep.subr.bf16.mxu0 %v1003
    %1338 = vmatpush2.bf16.msra.mxu0 %v1002
    %1339 = vmatprep.subr.bf16.mxu0 %v999
    %1340 = vmatpush2.bf16.msra.mxu0 %v998
    %1341 = vmatprep.subr.bf16.mxu0 %v995
    %1342 = vmatpush2.bf16.msra.mxu0 %v994
    %1343 = vmatprep.subr.bf16.mxu0 %v991
    %1344 = vmatpush2.bf16.msra.mxu0 %v990
    %1345 = vmatprep.subr.bf16.mxu0 %v987
    %1346 = vmatpush2.bf16.msra.mxu0 %v986
    %1347 = vmatprep.subr.bf16.mxu0 %v983
    %1348 = vmatpush2.bf16.msra.mxu0 %v982
    %1349 = vmatprep.subr.bf16.mxu0 %v979
    %1350 = vmatpush2.bf16.msra.mxu0 %v978
    %1351 = vmatprep.mubr.bf16.mxu0 %v284
    %1352 = vmatmul.mubr.bf16.gmra.mxu0 %v283
    %v1353 = vpop.f32.mrf.mxu0
    %v1354 = vadd.f32 %v1313, %v1353
    %v1355 = vpop.f32.mrf.mxu0
    %v1356 = vadd.f32 %v1315, %v1355
    %v1357 = vpop.f32.mrf.mxu0
    %v1358 = vpop.f32.mrf.mxu0
    %1359 = vdwg.mxu0
    %1360 = vmatprep.subr.bf16.mxu0 %v1039
    %1361 = vmatpush1.bf16.msra.mxu0 %v1038
    %1362 = vmatprep.subr.bf16.mxu0 %v1035
    %1363 = vmatpush1.bf16.msra.mxu0 %v1034
    %1364 = vmatprep.subr.bf16.mxu0 %v1031
    %1365 = vmatpush1.bf16.msra.mxu0 %v1030
    %1366 = vmatprep.subr.bf16.mxu0 %v1027
    %1367 = vmatpush1.bf16.msra.mxu0 %v1026
    %1368 = vmatprep.subr.bf16.mxu0 %v1023
    %1369 = vmatpush1.bf16.msra.mxu0 %v1022
    %1370 = vmatprep.subr.bf16.mxu0 %v1019
    %1371 = vmatpush1.bf16.msra.mxu0 %v1018
    %1372 = vmatprep.subr.bf16.mxu0 %v1015
    %1373 = vmatpush1.bf16.msra.mxu0 %v1014
    %1374 = vmatprep.subr.bf16.mxu0 %v1011
    %1375 = vmatpush1.bf16.msra.mxu0 %v1010
    %1376 = vmatprep.subr.bf16.mxu0 %v1071
    %1377 = vmatpush2.bf16.msra.mxu0 %v1070
    %1378 = vmatprep.subr.bf16.mxu0 %v1067
    %1379 = vmatpush2.bf16.msra.mxu0 %v1066
    %1380 = vmatprep.subr.bf16.mxu0 %v1063
    %1381 = vmatpush2.bf16.msra.mxu0 %v1062
    %1382 = vmatprep.subr.bf16.mxu0 %v1059
    %1383 = vmatpush2.bf16.msra.mxu0 %v1058
    %1384 = vmatprep.subr.bf16.mxu0 %v1055
    %1385 = vmatpush2.bf16.msra.mxu0 %v1054
    %1386 = vmatprep.subr.bf16.mxu0 %v1051
    %1387 = vmatpush2.bf16.msra.mxu0 %v1050
    %1388 = vmatprep.subr.bf16.mxu0 %v1047
    %1389 = vmatpush2.bf16.msra.mxu0 %v1046
    %1390 = vmatprep.subr.bf16.mxu0 %v1043
    %1391 = vmatpush2.bf16.msra.mxu0 %v1042
    %1392 = vmatprep.mubr.bf16.mxu0 %v286
    %1393 = vmatmul.mubr.bf16.gmra.mxu0 %v285
    %v1394 = vpop.f32.mrf.mxu0
    %v1395 = vadd.f32 %v1354, %v1394
    %v1396 = vpop.f32.mrf.mxu0
    %v1397 = vadd.f32 %v1356, %v1396
    %v1398 = vpop.f32.mrf.mxu0
    %v1399 = vpop.f32.mrf.mxu0
    %1400 = vdwg.mxu0
    %1401 = vmatprep.subr.bf16.mxu0 0
    %1402 = vmatpush1.bf16.msra.mxu0 0
    %1403 = vmatprep.subr.bf16.mxu0 0
    %1404 = vmatpush1.bf16.msra.mxu0 0
    %1405 = vmatprep.subr.bf16.mxu0 0
    %1406 = vmatpush1.bf16.msra.mxu0 0
    %1407 = vmatprep.subr.bf16.mxu0 0
    %1408 = vmatpush1.bf16.msra.mxu0 0
    %1409 = vmatprep.subr.bf16.mxu0 0
    %1410 = vmatpush1.bf16.msra.mxu0 0
    %1411 = vmatprep.subr.bf16.mxu0 0
    %1412 = vmatpush1.bf16.msra.mxu0 0
    %1413 = vmatprep.subr.bf16.mxu0 0
    %1414 = vmatpush1.bf16.msra.mxu0 0
    %1415 = vmatprep.subr.bf16.mxu0 %v1075
    %1416 = vmatpush1.bf16.msra.mxu0 %v1074
    %1417 = vmatprep.subr.bf16.mxu0 0
    %1418 = vmatpush2.bf16.msra.mxu0 0
    %1419 = vmatprep.subr.bf16.mxu0 0
    %1420 = vmatpush2.bf16.msra.mxu0 0
    %1421 = vmatprep.subr.bf16.mxu0 0
    %1422 = vmatpush2.bf16.msra.mxu0 0
    %1423 = vmatprep.subr.bf16.mxu0 0
    %1424 = vmatpush2.bf16.msra.mxu0 0
    %1425 = vmatprep.subr.bf16.mxu0 0
    %1426 = vmatpush2.bf16.msra.mxu0 0
    %1427 = vmatprep.subr.bf16.mxu0 0
    %1428 = vmatpush2.bf16.msra.mxu0 0
    %1429 = vmatprep.subr.bf16.mxu0 0
    %1430 = vmatpush2.bf16.msra.mxu0 0
    %1431 = vmatprep.subr.bf16.mxu0 0
    %1432 = vmatpush2.bf16.msra.mxu0 0
    %1433 = vmatprep.mubr.bf16.mxu0 0
    %1434 = vmatmul.mubr.bf16.gmra.mxu0 %v1276
    %v1435 = vpop.f32.mrf.mxu0
    %v1436 = vadd.f32 %v1395, %v1435
    %v1437 = vpop.f32.mrf.mxu0
    %v1438 = vadd.f32 %v1397, %v1437
    %v1439 = vpop.f32.mrf.mxu0
    %v1440 = vpop.f32.mrf.mxu0
    %1441 = vdwg.mxu0
    %1442 = vmatprep.subr.bf16.mxu0 %v913
    %1443 = vmatpush1.bf16.msra.mxu0 %v912
    %1444 = vmatprep.subr.bf16.mxu0 %v909
    %1445 = vmatpush1.bf16.msra.mxu0 %v908
    %1446 = vmatprep.subr.bf16.mxu0 %v905
    %1447 = vmatpush1.bf16.msra.mxu0 %v904
    %1448 = vmatprep.subr.bf16.mxu0 %v901
    %1449 = vmatpush1.bf16.msra.mxu0 %v900
    %1450 = vmatprep.subr.bf16.mxu0 %v897
    %1451 = vmatpush1.bf16.msra.mxu0 %v896
    %1452 = vmatprep.subr.bf16.mxu0 %v893
    %1453 = vmatpush1.bf16.msra.mxu0 %v892
    %1454 = vmatprep.subr.bf16.mxu0 %v889
    %1455 = vmatpush1.bf16.msra.mxu0 %v888
    %1456 = vmatprep.subr.bf16.mxu0 %v885
    %1457 = vmatpush1.bf16.msra.mxu0 %v884
    %1458 = vmatprep.subr.bf16.mxu0 %v945
    %1459 = vmatpush2.bf16.msra.mxu0 %v944
    %1460 = vmatprep.subr.bf16.mxu0 %v941
    %1461 = vmatpush2.bf16.msra.mxu0 %v940
    %1462 = vmatprep.subr.bf16.mxu0 %v937
    %1463 = vmatpush2.bf16.msra.mxu0 %v936
    %1464 = vmatprep.subr.bf16.mxu0 %v933
    %1465 = vmatpush2.bf16.msra.mxu0 %v932
    %1466 = vmatprep.subr.bf16.mxu0 %v929
    %1467 = vmatpush2.bf16.msra.mxu0 %v928
    %1468 = vmatprep.subr.bf16.mxu0 %v925
    %1469 = vmatpush2.bf16.msra.mxu0 %v924
    %1470 = vmatprep.subr.bf16.mxu0 %v921
    %1471 = vmatpush2.bf16.msra.mxu0 %v920
    %1472 = vmatprep.subr.bf16.mxu0 %v917
    %1473 = vmatpush2.bf16.msra.mxu0 %v916
    %1474 = vmatprep.mubr.bf16.mxu0 %v282
    %1475 = vmatmul.mubr.bf16.gmra.mxu0 %v281
    %v1476 = vpop.f32.mrf.mxu0
    %v1477 = vadd.f32 %v261, %v1476
    %v1478 = vpop.f32.mrf.mxu0
    %v1479 = vadd.f32 %v265, %v1478
    %v1480 = vpop.f32.mrf.mxu0
    %v1481 = vpop.f32.mrf.mxu0
    %1482 = vdwg.mxu0
    %1483 = vmatprep.subr.bf16.mxu0 %v977
    %1484 = vmatpush1.bf16.msra.mxu0 %v976
    %1485 = vmatprep.subr.bf16.mxu0 %v973
    %1486 = vmatpush1.bf16.msra.mxu0 %v972
    %1487 = vmatprep.subr.bf16.mxu0 %v969
    %1488 = vmatpush1.bf16.msra.mxu0 %v968
    %1489 = vmatprep.subr.bf16.mxu0 %v965
    %1490 = vmatpush1.bf16.msra.mxu0 %v964
    %1491 = vmatprep.subr.bf16.mxu0 %v961
    %1492 = vmatpush1.bf16.msra.mxu0 %v960
    %1493 = vmatprep.subr.bf16.mxu0 %v957
    %1494 = vmatpush1.bf16.msra.mxu0 %v956
    %1495 = vmatprep.subr.bf16.mxu0 %v953
    %1496 = vmatpush1.bf16.msra.mxu0 %v952
    %1497 = vmatprep.subr.bf16.mxu0 %v949
    %1498 = vmatpush1.bf16.msra.mxu0 %v948
    %1499 = vmatprep.subr.bf16.mxu0 %v1009
    %1500 = vmatpush2.bf16.msra.mxu0 %v1008
    %1501 = vmatprep.subr.bf16.mxu0 %v1005
    %1502 = vmatpush2.bf16.msra.mxu0 %v1004
    %1503 = vmatprep.subr.bf16.mxu0 %v1001
    %1504 = vmatpush2.bf16.msra.mxu0 %v1000
    %1505 = vmatprep.subr.bf16.mxu0 %v997
    %1506 = vmatpush2.bf16.msra.mxu0 %v996
    %1507 = vmatprep.subr.bf16.mxu0 %v993
    %1508 = vmatpush2.bf16.msra.mxu0 %v992
    %1509 = vmatprep.subr.bf16.mxu0 %v989
    %1510 = vmatpush2.bf16.msra.mxu0 %v988
    %1511 = vmatprep.subr.bf16.mxu0 %v985
    %1512 = vmatpush2.bf16.msra.mxu0 %v984
    %1513 = vmatprep.subr.bf16.mxu0 %v981
    %1514 = vmatpush2.bf16.msra.mxu0 %v980
    %1515 = vmatprep.mubr.bf16.mxu0 %v284
    %1516 = vmatmul.mubr.bf16.gmra.mxu0 %v283
    %v1517 = vpop.f32.mrf.mxu0
    %v1518 = vadd.f32 %v1477, %v1517
    %v1519 = vpop.f32.mrf.mxu0
    %v1520 = vadd.f32 %v1479, %v1519
    %v1521 = vpop.f32.mrf.mxu0
    %v1522 = vpop.f32.mrf.mxu0
    %1523 = vdwg.mxu0
    %1524 = vmatprep.subr.bf16.mxu0 %v1041
    %1525 = vmatpush1.bf16.msra.mxu0 %v1040
    %1526 = vmatprep.subr.bf16.mxu0 %v1037
    %1527 = vmatpush1.bf16.msra.mxu0 %v1036
    %1528 = vmatprep.subr.bf16.mxu0 %v1033
    %1529 = vmatpush1.bf16.msra.mxu0 %v1032
    %1530 = vmatprep.subr.bf16.mxu0 %v1029
    %1531 = vmatpush1.bf16.msra.mxu0 %v1028
    %1532 = vmatprep.subr.bf16.mxu0 %v1025
    %1533 = vmatpush1.bf16.msra.mxu0 %v1024
    %1534 = vmatprep.subr.bf16.mxu0 %v1021
    %1535 = vmatpush1.bf16.msra.mxu0 %v1020
    %1536 = vmatprep.subr.bf16.mxu0 %v1017
    %1537 = vmatpush1.bf16.msra.mxu0 %v1016
    %1538 = vmatprep.subr.bf16.mxu0 %v1013
    %1539 = vmatpush1.bf16.msra.mxu0 %v1012
    %1540 = vmatprep.subr.bf16.mxu0 %v1073
    %1541 = vmatpush2.bf16.msra.mxu0 %v1072
    %1542 = vmatprep.subr.bf16.mxu0 %v1069
    %1543 = vmatpush2.bf16.msra.mxu0 %v1068
    %1544 = vmatprep.subr.bf16.mxu0 %v1065
    %1545 = vmatpush2.bf16.msra.mxu0 %v1064
    %1546 = vmatprep.subr.bf16.mxu0 %v1061
    %1547 = vmatpush2.bf16.msra.mxu0 %v1060
    %1548 = vmatprep.subr.bf16.mxu0 %v1057
    %1549 = vmatpush2.bf16.msra.mxu0 %v1056
    %1550 = vmatprep.subr.bf16.mxu0 %v1053
    %1551 = vmatpush2.bf16.msra.mxu0 %v1052
    %1552 = vmatprep.subr.bf16.mxu0 %v1049
    %1553 = vmatpush2.bf16.msra.mxu0 %v1048
    %1554 = vmatprep.subr.bf16.mxu0 %v1045
    %1555 = vmatpush2.bf16.msra.mxu0 %v1044
    %1556 = vmatprep.mubr.bf16.mxu0 %v286
    %1557 = vmatmul.mubr.bf16.gmra.mxu0 %v285
    %v1558 = vpop.f32.mrf.mxu0
    %v1559 = vadd.f32 %v1518, %v1558
    %v1560 = vpop.f32.mrf.mxu0
    %v1561 = vadd.f32 %v1520, %v1560
    %v1562 = vpop.f32.mrf.mxu0
    %v1563 = vpop.f32.mrf.mxu0
    %1564 = vdwg.mxu0
    %1565 = vmatprep.subr.bf16.mxu0 0
    %1566 = vmatpush1.bf16.msra.mxu0 0
    %1567 = vmatprep.subr.bf16.mxu0 0
    %1568 = vmatpush1.bf16.msra.mxu0 0
    %1569 = vmatprep.subr.bf16.mxu0 0
    %1570 = vmatpush1.bf16.msra.mxu0 0
    %1571 = vmatprep.subr.bf16.mxu0 0
    %1572 = vmatpush1.bf16.msra.mxu0 0
    %1573 = vmatprep.subr.bf16.mxu0 0
    %1574 = vmatpush1.bf16.msra.mxu0 0
    %1575 = vmatprep.subr.bf16.mxu0 0
    %1576 = vmatpush1.bf16.msra.mxu0 0
    %1577 = vmatprep.subr.bf16.mxu0 0
    %1578 = vmatpush1.bf16.msra.mxu0 0
    %1579 = vmatprep.subr.bf16.mxu0 %v1077
    %1580 = vmatpush1.bf16.msra.mxu0 %v1076
    %1581 = vmatprep.subr.bf16.mxu0 0
    %1582 = vmatpush2.bf16.msra.mxu0 0
    %1583 = vmatprep.subr.bf16.mxu0 0
    %1584 = vmatpush2.bf16.msra.mxu0 0
    %1585 = vmatprep.subr.bf16.mxu0 0
    %1586 = vmatpush2.bf16.msra.mxu0 0
    %1587 = vmatprep.subr.bf16.mxu0 0
    %1588 = vmatpush2.bf16.msra.mxu0 0
    %1589 = vmatprep.subr.bf16.mxu0 0
    %1590 = vmatpush2.bf16.msra.mxu0 0
    %1591 = vmatprep.subr.bf16.mxu0 0
    %1592 = vmatpush2.bf16.msra.mxu0 0
    %1593 = vmatprep.subr.bf16.mxu0 0
    %1594 = vmatpush2.bf16.msra.mxu0 0
    %1595 = vmatprep.subr.bf16.mxu0 0
    %1596 = vmatpush2.bf16.msra.mxu0 0
    %1597 = vmatprep.mubr.bf16.mxu0 0
    %1598 = vmatmul.mubr.bf16.gmra.mxu0 %v1276
    %v1599 = vpop.f32.mrf.mxu0
    %v1600 = vadd.f32 %v1559, %v1599
    %v1601 = vpop.f32.mrf.mxu0
    %v1602 = vadd.f32 %v1561, %v1601
    %v1603 = vpop.f32.mrf.mxu0
    %v1604 = vpop.f32.mrf.mxu0
    %1605 = vdwg.mxu0
    %v1606 = vmax.f32 %v1436, 0.0
    %v1607 = vmax.f32 %v1438, 0.0
    %v1608 = vmax.f32 %v1600, 0.0
    %v1609 = vmax.f32 %v1602, 0.0
    %v1610 = vand.u32 2147483647, %v1436
    %v1611 = vand.u32 2147483647, %v1438
    %v1612 = vand.u32 2147483647, %v1600
    %v1613 = vand.u32 2147483647, %v1602
    %v1614 = vsub.f32 0.0, %v1610
    %v1615 = vsub.f32 0.0, %v1611
    %v1616 = vsub.f32 0.0, %v1612
    %v1617 = vsub.f32 0.0, %v1613
    %v1618 = vmul.f32 %v1614, 1.442695
    %v1619 = vpow.pop %v1618
    %v1620 = vmul.f32 %v1615, 1.442695
    %v1621 = vpow.pop %v1620
    %v1622 = vmul.f32 %v1616, 1.442695
    %v1623 = vpow.pop %v1622
    %v1624 = vmul.f32 %v1617, 1.442695
    %v1625 = vpow.pop %v1624
    %v1626 = vadd.f32 %v1619, 1.0
    %v1627 = vlog2.pop %v1626
    %v1628 = vmul.f32 %v1627, 0.6931472
    %v1629 = vmul.f32 -0.5, %v1619
    %v1630 = vadd.f32 %v1629, 1.0
    %v1631 = vmul.f32 %v1630, %v1619
    %v1632 = vand.u32 2147483647, %v1619
    %vm1633 = vcmp.lt.f32.partialorder %v1632, 0.0004427343
    %v1634 = vsel %vm1633, %v1631, %v1628
    %v1635 = vadd.f32 %v1621, 1.0
    %v1636 = vlog2.pop %v1635
    %v1637 = vmul.f32 %v1636, 0.6931472
    %v1638 = vmul.f32 -0.5, %v1621
    %v1639 = vadd.f32 %v1638, 1.0
    %v1640 = vmul.f32 %v1639, %v1621
    %v1641 = vand.u32 2147483647, %v1621
    %vm1642 = vcmp.lt.f32.partialorder %v1641, 0.0004427343
    %v1643 = vsel %vm1642, %v1640, %v1637
    %v1644 = vadd.f32 %v1623, 1.0
    %v1645 = vlog2.pop %v1644
    %v1646 = vmul.f32 %v1645, 0.6931472
    %v1647 = vmul.f32 -0.5, %v1623
    %v1648 = vadd.f32 %v1647, 1.0
    %v1649 = vmul.f32 %v1648, %v1623
    %v1650 = vand.u32 2147483647, %v1623
    %vm1651 = vcmp.lt.f32.partialorder %v1650, 0.0004427343
    %v1652 = vsel %vm1651, %v1649, %v1646
    %v1653 = vadd.f32 %v1625, 1.0
    %v1654 = vlog2.pop %v1653
    %v1655 = vmul.f32 %v1654, 0.6931472
    %v1656 = vmul.f32 -0.5, %v1625
    %v1657 = vadd.f32 %v1656, 1.0
    %v1658 = vmul.f32 %v1657, %v1625
    %v1659 = vand.u32 2147483647, %v1625
    %vm1660 = vcmp.lt.f32.partialorder %v1659, 0.0004427343
    %v1661 = vsel %vm1660, %v1658, %v1655
    %v1662 = vadd.f32 %v1606, %v1634
    %v1663 = vadd.f32 %v1607, %v1643
    %v1664 = vadd.f32 %v1608, %v1652
    %v1665 = vadd.f32 %v1609, %v1661
    %v1666 = vld [vmem:[%s3] sm:$0xff]
    %v1667 = vld [vmem:[%s3 + $0x8] sm:$0xff]
    %v1668 = vld [vmem:[%s3 + $0x10] sm:$0xff]
    %v1669 = vld [vmem:[%s3 + $0x18] sm:$0xff]
    %v1670 = vld [vmem:[%s3 + $0x20] sm:$0xff]
    %v1671 = vld [vmem:[%s3 + $0x28] sm:$0xff]
    %v1672 = vld [vmem:[%s3 + $0x30] sm:$0xff]
    %v1673 = vld [vmem:[%s3 + $0x38] sm:$0xff]
    %v1674 = vld [vmem:[%s3 + $0x40] sm:$0xff]
    %v1675 = vld [vmem:[%s3 + $0x48] sm:$0xff]
    %v1676 = vld [vmem:[%s3 + $0x50] sm:$0xff]
    %v1677 = vld [vmem:[%s3 + $0x58] sm:$0xff]
    %v1678 = vld [vmem:[%s3 + $0x60] sm:$0xff]
    %v1679 = vld [vmem:[%s3 + $0x68] sm:$0xff]
    %v1680 = vld [vmem:[%s3 + $0x70] sm:$0xff]
    %v1681 = vld [vmem:[%s3 + $0x78] sm:$0xff]
    %v1682 = vld [vmem:[%s3 + $0x80] sm:$0xff]
    %v1683 = vld [vmem:[%s3 + $0x88] sm:$0xff]
    %v1684 = vld [vmem:[%s3 + $0x90] sm:$0xff]
    %v1685 = vld [vmem:[%s3 + $0x98] sm:$0xff]
    %v1686 = vld [vmem:[%s3 + $0xa0] sm:$0xff]
    %v1687 = vld [vmem:[%s3 + $0xa8] sm:$0xff]
    %v1688 = vld [vmem:[%s3 + $0xb0] sm:$0xff]
    %v1689 = vld [vmem:[%s3 + $0xb8] sm:$0xff]
    %v1690 = vld [vmem:[%s3 + $0xc0] sm:$0xff]
    %v1691 = vld [vmem:[%s3 + $0xc8] sm:$0xff]
    %v1692 = vld [vmem:[%s3 + $0xd0] sm:$0xff]
    %v1693 = vld [vmem:[%s3 + $0xd8] sm:$0xff]
    %v1694 = vld [vmem:[%s3 + $0xe0] sm:$0xff]
    %v1695 = vld [vmem:[%s3 + $0xe8] sm:$0xff]
    %v1696 = vld [vmem:[%s3 + $0xf0] sm:$0xff]
    %v1697 = vld [vmem:[%s3 + $0xf8] sm:$0xff]
    %v1698 = vld [vmem:[%s3 + $0x100] sm:$0xff]
    %v1699 = vld [vmem:[%s3 + $0x108] sm:$0xff]
    %v1700 = vld [vmem:[%s3 + $0x110] sm:$0xff]
    %v1701 = vld [vmem:[%s3 + $0x118] sm:$0xff]
    %v1702 = vld [vmem:[%s3 + $0x120] sm:$0xff]
    %v1703 = vld [vmem:[%s3 + $0x128] sm:$0xff]
    %v1704 = vld [vmem:[%s3 + $0x130] sm:$0xff]
    %v1705 = vld [vmem:[%s3 + $0x138] sm:$0xff]
    %v1706 = vld [vmem:[%s3 + $0x140] sm:$0xff]
    %v1707 = vld [vmem:[%s3 + $0x148] sm:$0xff]
    %v1708 = vld [vmem:[%s3 + $0x150] sm:$0xff]
    %v1709 = vld [vmem:[%s3 + $0x158] sm:$0xff]
    %v1710 = vld [vmem:[%s3 + $0x160] sm:$0xff]
    %v1711 = vld [vmem:[%s3 + $0x168] sm:$0xff]
    %v1712 = vld [vmem:[%s3 + $0x170] sm:$0xff]
    %v1713 = vld [vmem:[%s3 + $0x178] sm:$0xff]
    %v1714 = vld [vmem:[%s3 + $0x180] sm:$0xff]
    %v1715 = vld [vmem:[%s3 + $0x188] sm:$0xff]
    %v1716 = vld [vmem:[%s3 + $0x190] sm:$0xff]
    %v1717 = vld [vmem:[%s3 + $0x198] sm:$0xff]
    %v1718 = vld [vmem:[%s3 + $0x1a0] sm:$0xff]
    %v1719 = vld [vmem:[%s3 + $0x1a8] sm:$0xff]
    %v1720 = vld [vmem:[%s3 + $0x1b0] sm:$0xff]
    %v1721 = vld [vmem:[%s3 + $0x1b8] sm:$0xff]
    %v1722 = vld [vmem:[%s3 + $0x1c0] sm:$0xff]
    %v1723 = vld [vmem:[%s3 + $0x1c8] sm:$0xff]
    %v1724 = vld [vmem:[%s3 + $0x1d0] sm:$0xff]
    %v1725 = vld [vmem:[%s3 + $0x1d8] sm:$0xff]
    %v1726 = vld [vmem:[%s3 + $0x1e0] sm:$0xff]
    %v1727 = vld [vmem:[%s3 + $0x1e8] sm:$0xff]
    %v1728 = vld [vmem:[%s3 + $0x1f0] sm:$0xff]
    %v1729 = vld [vmem:[%s3 + $0x1f8] sm:$0xff]
    %v1730 = vld [vmem:[%s3 + $0x200] sm:$0xff]
    %v1731 = vld [vmem:[%s3 + $0x208] sm:$0xff]
    %v1732 = vld [vmem:[%s3 + $0x210] sm:$0xff]
    %v1733 = vld [vmem:[%s3 + $0x218] sm:$0xff]
    %v1734 = vld [vmem:[%s3 + $0x220] sm:$0xff]
    %v1735 = vld [vmem:[%s3 + $0x228] sm:$0xff]
    %v1736 = vld [vmem:[%s3 + $0x230] sm:$0xff]
    %v1737 = vld [vmem:[%s3 + $0x238] sm:$0xff]
    %v1738 = vld [vmem:[%s3 + $0x240] sm:$0xff]
    %v1739 = vld [vmem:[%s3 + $0x248] sm:$0xff]
    %v1740 = vld [vmem:[%s3 + $0x250] sm:$0xff]
    %v1741 = vld [vmem:[%s3 + $0x258] sm:$0xff]
    %v1742 = vld [vmem:[%s3 + $0x260] sm:$0xff]
    %v1743 = vld [vmem:[%s3 + $0x268] sm:$0xff]
    %v1744 = vld [vmem:[%s3 + $0x270] sm:$0xff]
    %v1745 = vld [vmem:[%s3 + $0x278] sm:$0xff]
    %v1746 = vld [vmem:[%s3 + $0x280] sm:$0xff]
    %v1747 = vld [vmem:[%s3 + $0x288] sm:$0xff]
    %v1748 = vld [vmem:[%s3 + $0x290] sm:$0xff]
    %v1749 = vld [vmem:[%s3 + $0x298] sm:$0xff]
    %v1750 = vld [vmem:[%s3 + $0x2a0] sm:$0xff]
    %v1751 = vld [vmem:[%s3 + $0x2a8] sm:$0xff]
    %v1752 = vld [vmem:[%s3 + $0x2b0] sm:$0xff]
    %v1753 = vld [vmem:[%s3 + $0x2b8] sm:$0xff]
    %v1754 = vld [vmem:[%s3 + $0x2c0] sm:$0xff]
    %v1755 = vld [vmem:[%s3 + $0x2c8] sm:$0xff]
    %v1756 = vld [vmem:[%s3 + $0x2d0] sm:$0xff]
    %v1757 = vld [vmem:[%s3 + $0x2d8] sm:$0xff]
    %v1758 = vld [vmem:[%s3 + $0x2e0] sm:$0xff]
    %v1759 = vld [vmem:[%s3 + $0x2e8] sm:$0xff]
    %v1760 = vld [vmem:[%s3 + $0x2f0] sm:$0xff]
    %v1761 = vld [vmem:[%s3 + $0x2f8] sm:$0xff]
    %v1762 = vld [vmem:[%s3 + $0x300] sm:$0xff]
    %v1763 = vld [vmem:[%s3 + $0x308] sm:$0xff]
    %v1764 = vld [vmem:[%s3 + $0x310] sm:$0xff]
    %v1765 = vld [vmem:[%s3 + $0x318] sm:$0xff]
    %v1766 = vld [vmem:[%s3 + $0x320] sm:$0xff]
    %v1767 = vld [vmem:[%s3 + $0x328] sm:$0xff]
    %v1768 = vld [vmem:[%s3 + $0x330] sm:$0xff]
    %v1769 = vld [vmem:[%s3 + $0x338] sm:$0xff]
    %v1770 = vld [vmem:[%s3 + $0x340] sm:$0xff]
    %v1771 = vld [vmem:[%s3 + $0x348] sm:$0xff]
    %v1772 = vld [vmem:[%s3 + $0x350] sm:$0xff]
    %v1773 = vld [vmem:[%s3 + $0x358] sm:$0xff]
    %v1774 = vld [vmem:[%s3 + $0x360] sm:$0xff]
    %v1775 = vld [vmem:[%s3 + $0x368] sm:$0xff]
    %v1776 = vld [vmem:[%s3 + $0x370] sm:$0xff]
    %v1777 = vld [vmem:[%s3 + $0x378] sm:$0xff]
    %v1778 = vld [vmem:[%s3 + $0x380] sm:$0xff]
    %v1779 = vld [vmem:[%s3 + $0x388] sm:$0xff]
    %v1780 = vld [vmem:[%s3 + $0x390] sm:$0xff]
    %v1781 = vld [vmem:[%s3 + $0x398] sm:$0xff]
    %v1782 = vld [vmem:[%s3 + $0x3a0] sm:$0xff]
    %v1783 = vld [vmem:[%s3 + $0x3a8] sm:$0xff]
    %v1784 = vld [vmem:[%s3 + $0x3b0] sm:$0xff]
    %v1785 = vld [vmem:[%s3 + $0x3b8] sm:$0xff]
    %v1786 = vld [vmem:[%s3 + $0x3c0] sm:$0xff]
    %v1787 = vld [vmem:[%s3 + $0x3c8] sm:$0xff]
    %v1788 = vld [vmem:[%s3 + $0x3d0] sm:$0xff]
    %v1789 = vld [vmem:[%s3 + $0x3d8] sm:$0xff]
    %v1790 = vld [vmem:[%s3 + $0x3e0] sm:$0xff]
    %v1791 = vld [vmem:[%s3 + $0x3e8] sm:$0xff]
    %v1792 = vld [vmem:[%s3 + $0x3f0] sm:$0xff]
    %v1793 = vld [vmem:[%s3 + $0x3f8] sm:$0xff]
    %v1794 = vld [vmem:[%s4] sm:$0xf]
    %v1795 = vpack.c.bf16 %v1662, %v1662
    %v1796 = vpack.c.bf16 %v1663, %v1663
    %v1797 = vpack.c.bf16 %v1664, %v1664
    %v1798 = vpack.c.bf16 %v1665, %v1665
    %v1800 = vlaneseq
    %v1801 = vshrl.u32 %v1800, 7
    %v1802 = vsub.s32 0, %v1801
    %v1803 = vrot.slane %v1794, %v1802
    %v1804 = vlaneseq
    %v1805 = vshrl.u32 %v1804, 7
    %v1806 = vsub.s32 1, %v1805
    %v1807 = vrot.slane %v1794, %v1806
    %v1808 = vlaneseq
    %v1809 = vshrl.u32 %v1808, 7
    %v1810 = vsub.s32 2, %v1809
    %v1811 = vrot.slane %v1794, %v1810
    %v1812 = vlaneseq
    %v1813 = vshrl.u32 %v1812, 7
    %v1814 = vsub.s32 3, %v1813
    %v1815 = vrot.slane %v1794, %v1814
    %v1948 = vunpack.c.l.b16 %v1666
    %v1949 = vunpack.c.h.b16 %v1666
    %v1950 = vunpack.c.l.b16 %v1667
    %v1951 = vunpack.c.h.b16 %v1667
    %v1952 = vunpack.c.l.b16 %v1668
    %v1953 = vunpack.c.h.b16 %v1668
    %v1954 = vunpack.c.l.b16 %v1669
    %v1955 = vunpack.c.h.b16 %v1669
    %v1956 = vunpack.c.l.b16 %v1670
    %v1957 = vunpack.c.h.b16 %v1670
    %v1958 = vunpack.c.l.b16 %v1671
    %v1959 = vunpack.c.h.b16 %v1671
    %v1960 = vunpack.c.l.b16 %v1672
    %v1961 = vunpack.c.h.b16 %v1672
    %v1962 = vunpack.c.l.b16 %v1673
    %v1963 = vunpack.c.h.b16 %v1673
    %v1964 = vunpack.c.l.b16 %v1674
    %v1965 = vunpack.c.h.b16 %v1674
    %v1966 = vunpack.c.l.b16 %v1675
    %v1967 = vunpack.c.h.b16 %v1675
    %v1968 = vunpack.c.l.b16 %v1676
    %v1969 = vunpack.c.h.b16 %v1676
    %v1970 = vunpack.c.l.b16 %v1677
    %v1971 = vunpack.c.h.b16 %v1677
    %v1972 = vunpack.c.l.b16 %v1678
    %v1973 = vunpack.c.h.b16 %v1678
    %v1974 = vunpack.c.l.b16 %v1679
    %v1975 = vunpack.c.h.b16 %v1679
    %v1976 = vunpack.c.l.b16 %v1680
    %v1977 = vunpack.c.h.b16 %v1680
    %v1978 = vunpack.c.l.b16 %v1681
    %v1979 = vunpack.c.h.b16 %v1681
    %v1980 = vunpack.c.l.b16 %v1682
    %v1981 = vunpack.c.h.b16 %v1682
    %v1982 = vunpack.c.l.b16 %v1683
    %v1983 = vunpack.c.h.b16 %v1683
    %v1984 = vunpack.c.l.b16 %v1684
    %v1985 = vunpack.c.h.b16 %v1684
    %v1986 = vunpack.c.l.b16 %v1685
    %v1987 = vunpack.c.h.b16 %v1685
    %v1988 = vunpack.c.l.b16 %v1686
    %v1989 = vunpack.c.h.b16 %v1686
    %v1990 = vunpack.c.l.b16 %v1687
    %v1991 = vunpack.c.h.b16 %v1687
    %v1992 = vunpack.c.l.b16 %v1688
    %v1993 = vunpack.c.h.b16 %v1688
    %v1994 = vunpack.c.l.b16 %v1689
    %v1995 = vunpack.c.h.b16 %v1689
    %v1996 = vunpack.c.l.b16 %v1690
    %v1997 = vunpack.c.h.b16 %v1690
    %v1998 = vunpack.c.l.b16 %v1691
    %v1999 = vunpack.c.h.b16 %v1691
    %v2000 = vunpack.c.l.b16 %v1692
    %v2001 = vunpack.c.h.b16 %v1692
    %v2002 = vunpack.c.l.b16 %v1693
    %v2003 = vunpack.c.h.b16 %v1693
    %v2004 = vunpack.c.l.b16 %v1694
    %v2005 = vunpack.c.h.b16 %v1694
    %v2006 = vunpack.c.l.b16 %v1695
    %v2007 = vunpack.c.h.b16 %v1695
    %v2008 = vunpack.c.l.b16 %v1696
    %v2009 = vunpack.c.h.b16 %v1696
    %v2010 = vunpack.c.l.b16 %v1697
    %v2011 = vunpack.c.h.b16 %v1697
    %v2012 = vunpack.c.l.b16 %v1698
    %v2013 = vunpack.c.h.b16 %v1698
    %v2014 = vunpack.c.l.b16 %v1699
    %v2015 = vunpack.c.h.b16 %v1699
    %v2016 = vunpack.c.l.b16 %v1700
    %v2017 = vunpack.c.h.b16 %v1700
    %v2018 = vunpack.c.l.b16 %v1701
    %v2019 = vunpack.c.h.b16 %v1701
    %v2020 = vunpack.c.l.b16 %v1702
    %v2021 = vunpack.c.h.b16 %v1702
    %v2022 = vunpack.c.l.b16 %v1703
    %v2023 = vunpack.c.h.b16 %v1703
    %v2024 = vunpack.c.l.b16 %v1704
    %v2025 = vunpack.c.h.b16 %v1704
    %v2026 = vunpack.c.l.b16 %v1705
    %v2027 = vunpack.c.h.b16 %v1705
    %v2028 = vunpack.c.l.b16 %v1706
    %v2029 = vunpack.c.h.b16 %v1706
    %v2030 = vunpack.c.l.b16 %v1707
    %v2031 = vunpack.c.h.b16 %v1707
    %v2032 = vunpack.c.l.b16 %v1708
    %v2033 = vunpack.c.h.b16 %v1708
    %v2034 = vunpack.c.l.b16 %v1709
    %v2035 = vunpack.c.h.b16 %v1709
    %v2036 = vunpack.c.l.b16 %v1710
    %v2037 = vunpack.c.h.b16 %v1710
    %v2038 = vunpack.c.l.b16 %v1711
    %v2039 = vunpack.c.h.b16 %v1711
    %v2040 = vunpack.c.l.b16 %v1712
    %v2041 = vunpack.c.h.b16 %v1712
    %v2042 = vunpack.c.l.b16 %v1713
    %v2043 = vunpack.c.h.b16 %v1713
    %v2044 = vunpack.c.l.b16 %v1714
    %v2045 = vunpack.c.h.b16 %v1714
    %v2046 = vunpack.c.l.b16 %v1715
    %v2047 = vunpack.c.h.b16 %v1715
    %v2048 = vunpack.c.l.b16 %v1716
    %v2049 = vunpack.c.h.b16 %v1716
    %v2050 = vunpack.c.l.b16 %v1717
    %v2051 = vunpack.c.h.b16 %v1717
    %v2052 = vunpack.c.l.b16 %v1718
    %v2053 = vunpack.c.h.b16 %v1718
    %v2054 = vunpack.c.l.b16 %v1719
    %v2055 = vunpack.c.h.b16 %v1719
    %v2056 = vunpack.c.l.b16 %v1720
    %v2057 = vunpack.c.h.b16 %v1720
    %v2058 = vunpack.c.l.b16 %v1721
    %v2059 = vunpack.c.h.b16 %v1721
    %v2060 = vunpack.c.l.b16 %v1722
    %v2061 = vunpack.c.h.b16 %v1722
    %v2062 = vunpack.c.l.b16 %v1723
    %v2063 = vunpack.c.h.b16 %v1723
    %v2064 = vunpack.c.l.b16 %v1724
    %v2065 = vunpack.c.h.b16 %v1724
    %v2066 = vunpack.c.l.b16 %v1725
    %v2067 = vunpack.c.h.b16 %v1725
    %v2068 = vunpack.c.l.b16 %v1726
    %v2069 = vunpack.c.h.b16 %v1726
    %v2070 = vunpack.c.l.b16 %v1727
    %v2071 = vunpack.c.h.b16 %v1727
    %v2072 = vunpack.c.l.b16 %v1728
    %v2073 = vunpack.c.h.b16 %v1728
    %v2074 = vunpack.c.l.b16 %v1729
    %v2075 = vunpack.c.h.b16 %v1729
    %v2076 = vunpack.c.l.b16 %v1730
    %v2077 = vunpack.c.h.b16 %v1730
    %v2078 = vunpack.c.l.b16 %v1731
    %v2079 = vunpack.c.h.b16 %v1731
    %v2080 = vunpack.c.l.b16 %v1732
    %v2081 = vunpack.c.h.b16 %v1732
    %v2082 = vunpack.c.l.b16 %v1733
    %v2083 = vunpack.c.h.b16 %v1733
    %v2084 = vunpack.c.l.b16 %v1734
    %v2085 = vunpack.c.h.b16 %v1734
    %v2086 = vunpack.c.l.b16 %v1735
    %v2087 = vunpack.c.h.b16 %v1735
    %v2088 = vunpack.c.l.b16 %v1736
    %v2089 = vunpack.c.h.b16 %v1736
    %v2090 = vunpack.c.l.b16 %v1737
    %v2091 = vunpack.c.h.b16 %v1737
    %v2092 = vunpack.c.l.b16 %v1738
    %v2093 = vunpack.c.h.b16 %v1738
    %v2094 = vunpack.c.l.b16 %v1739
    %v2095 = vunpack.c.h.b16 %v1739
    %v2096 = vunpack.c.l.b16 %v1740
    %v2097 = vunpack.c.h.b16 %v1740
    %v2098 = vunpack.c.l.b16 %v1741
    %v2099 = vunpack.c.h.b16 %v1741
    %v2100 = vunpack.c.l.b16 %v1742
    %v2101 = vunpack.c.h.b16 %v1742
    %v2102 = vunpack.c.l.b16 %v1743
    %v2103 = vunpack.c.h.b16 %v1743
    %v2104 = vunpack.c.l.b16 %v1744
    %v2105 = vunpack.c.h.b16 %v1744
    %v2106 = vunpack.c.l.b16 %v1745
    %v2107 = vunpack.c.h.b16 %v1745
    %v2108 = vunpack.c.l.b16 %v1746
    %v2109 = vunpack.c.h.b16 %v1746
    %v2110 = vunpack.c.l.b16 %v1747
    %v2111 = vunpack.c.h.b16 %v1747
    %v2112 = vunpack.c.l.b16 %v1748
    %v2113 = vunpack.c.h.b16 %v1748
    %v2114 = vunpack.c.l.b16 %v1749
    %v2115 = vunpack.c.h.b16 %v1749
    %v2116 = vunpack.c.l.b16 %v1750
    %v2117 = vunpack.c.h.b16 %v1750
    %v2118 = vunpack.c.l.b16 %v1751
    %v2119 = vunpack.c.h.b16 %v1751
    %v2120 = vunpack.c.l.b16 %v1752
    %v2121 = vunpack.c.h.b16 %v1752
    %v2122 = vunpack.c.l.b16 %v1753
    %v2123 = vunpack.c.h.b16 %v1753
    %v2124 = vunpack.c.l.b16 %v1754
    %v2125 = vunpack.c.h.b16 %v1754
    %v2126 = vunpack.c.l.b16 %v1755
    %v2127 = vunpack.c.h.b16 %v1755
    %v2128 = vunpack.c.l.b16 %v1756
    %v2129 = vunpack.c.h.b16 %v1756
    %v2130 = vunpack.c.l.b16 %v1757
    %v2131 = vunpack.c.h.b16 %v1757
    %v2132 = vunpack.c.l.b16 %v1758
    %v2133 = vunpack.c.h.b16 %v1758
    %v2134 = vunpack.c.l.b16 %v1759
    %v2135 = vunpack.c.h.b16 %v1759
    %v2136 = vunpack.c.l.b16 %v1760
    %v2137 = vunpack.c.h.b16 %v1760
    %v2138 = vunpack.c.l.b16 %v1761
    %v2139 = vunpack.c.h.b16 %v1761
    %v2140 = vunpack.c.l.b16 %v1762
    %v2141 = vunpack.c.h.b16 %v1762
    %v2142 = vunpack.c.l.b16 %v1763
    %v2143 = vunpack.c.h.b16 %v1763
    %v2144 = vunpack.c.l.b16 %v1764
    %v2145 = vunpack.c.h.b16 %v1764
    %v2146 = vunpack.c.l.b16 %v1765
    %v2147 = vunpack.c.h.b16 %v1765
    %v2148 = vunpack.c.l.b16 %v1766
    %v2149 = vunpack.c.h.b16 %v1766
    %v2150 = vunpack.c.l.b16 %v1767
    %v2151 = vunpack.c.h.b16 %v1767
    %v2152 = vunpack.c.l.b16 %v1768
    %v2153 = vunpack.c.h.b16 %v1768
    %v2154 = vunpack.c.l.b16 %v1769
    %v2155 = vunpack.c.h.b16 %v1769
    %v2156 = vunpack.c.l.b16 %v1770
    %v2157 = vunpack.c.h.b16 %v1770
    %v2158 = vunpack.c.l.b16 %v1771
    %v2159 = vunpack.c.h.b16 %v1771
    %v2160 = vunpack.c.l.b16 %v1772
    %v2161 = vunpack.c.h.b16 %v1772
    %v2162 = vunpack.c.l.b16 %v1773
    %v2163 = vunpack.c.h.b16 %v1773
    %v2164 = vunpack.c.l.b16 %v1774
    %v2165 = vunpack.c.h.b16 %v1774
    %v2166 = vunpack.c.l.b16 %v1775
    %v2167 = vunpack.c.h.b16 %v1775
    %v2168 = vunpack.c.l.b16 %v1776
    %v2169 = vunpack.c.h.b16 %v1776
    %v2170 = vunpack.c.l.b16 %v1777
    %v2171 = vunpack.c.h.b16 %v1777
    %v2172 = vunpack.c.l.b16 %v1778
    %v2173 = vunpack.c.h.b16 %v1778
    %v2174 = vunpack.c.l.b16 %v1779
    %v2175 = vunpack.c.h.b16 %v1779
    %v2176 = vunpack.c.l.b16 %v1780
    %v2177 = vunpack.c.h.b16 %v1780
    %v2178 = vunpack.c.l.b16 %v1781
    %v2179 = vunpack.c.h.b16 %v1781
    %v2180 = vunpack.c.l.b16 %v1782
    %v2181 = vunpack.c.h.b16 %v1782
    %v2182 = vunpack.c.l.b16 %v1783
    %v2183 = vunpack.c.h.b16 %v1783
    %v2184 = vunpack.c.l.b16 %v1784
    %v2185 = vunpack.c.h.b16 %v1784
    %v2186 = vunpack.c.l.b16 %v1785
    %v2187 = vunpack.c.h.b16 %v1785
    %v2188 = vunpack.c.l.b16 %v1786
    %v2189 = vunpack.c.h.b16 %v1786
    %v2190 = vunpack.c.l.b16 %v1787
    %v2191 = vunpack.c.h.b16 %v1787
    %v2192 = vunpack.c.l.b16 %v1788
    %v2193 = vunpack.c.h.b16 %v1788
    %v2194 = vunpack.c.l.b16 %v1789
    %v2195 = vunpack.c.h.b16 %v1789
    %v2196 = vunpack.c.l.b16 %v1790
    %v2197 = vunpack.c.h.b16 %v1790
    %v2198 = vunpack.c.l.b16 %v1791
    %v2199 = vunpack.c.h.b16 %v1791
    %v2200 = vunpack.c.l.b16 %v1792
    %v2201 = vunpack.c.h.b16 %v1792
    %v2202 = vunpack.c.l.b16 %v1793
    %v2203 = vunpack.c.h.b16 %v1793
    %v2204 = vpack.c.b16 %v1952, %v1948
    %v2205 = vpack.c.b16 %v1953, %v1949
    %v2206 = vpack.c.b16 %v1954, %v1950
    %v2207 = vpack.c.b16 %v1955, %v1951
    %v2208 = vpack.c.b16 %v1960, %v1956
    %v2209 = vpack.c.b16 %v1961, %v1957
    %v2210 = vpack.c.b16 %v1962, %v1958
    %v2211 = vpack.c.b16 %v1963, %v1959
    %v2212 = vpack.c.b16 %v1968, %v1964
    %v2213 = vpack.c.b16 %v1969, %v1965
    %v2214 = vpack.c.b16 %v1970, %v1966
    %v2215 = vpack.c.b16 %v1971, %v1967
    %v2216 = vpack.c.b16 %v1976, %v1972
    %v2217 = vpack.c.b16 %v1977, %v1973
    %v2218 = vpack.c.b16 %v1978, %v1974
    %v2219 = vpack.c.b16 %v1979, %v1975
    %v2220 = vpack.c.b16 %v1984, %v1980
    %v2221 = vpack.c.b16 %v1985, %v1981
    %v2222 = vpack.c.b16 %v1986, %v1982
    %v2223 = vpack.c.b16 %v1987, %v1983
    %v2224 = vpack.c.b16 %v1992, %v1988
    %v2225 = vpack.c.b16 %v1993, %v1989
    %v2226 = vpack.c.b16 %v1994, %v1990
    %v2227 = vpack.c.b16 %v1995, %v1991
    %v2228 = vpack.c.b16 %v2000, %v1996
    %v2229 = vpack.c.b16 %v2001, %v1997
    %v2230 = vpack.c.b16 %v2002, %v1998
    %v2231 = vpack.c.b16 %v2003, %v1999
    %v2232 = vpack.c.b16 %v2008, %v2004
    %v2233 = vpack.c.b16 %v2009, %v2005
    %v2234 = vpack.c.b16 %v2010, %v2006
    %v2235 = vpack.c.b16 %v2011, %v2007
    %v2236 = vpack.c.b16 %v2016, %v2012
    %v2237 = vpack.c.b16 %v2017, %v2013
    %v2238 = vpack.c.b16 %v2018, %v2014
    %v2239 = vpack.c.b16 %v2019, %v2015
    %v2240 = vpack.c.b16 %v2024, %v2020
    %v2241 = vpack.c.b16 %v2025, %v2021
    %v2242 = vpack.c.b16 %v2026, %v2022
    %v2243 = vpack.c.b16 %v2027, %v2023
    %v2244 = vpack.c.b16 %v2032, %v2028
    %v2245 = vpack.c.b16 %v2033, %v2029
    %v2246 = vpack.c.b16 %v2034, %v2030
    %v2247 = vpack.c.b16 %v2035, %v2031
    %v2248 = vpack.c.b16 %v2040, %v2036
    %v2249 = vpack.c.b16 %v2041, %v2037
    %v2250 = vpack.c.b16 %v2042, %v2038
    %v2251 = vpack.c.b16 %v2043, %v2039
    %v2252 = vpack.c.b16 %v2048, %v2044
    %v2253 = vpack.c.b16 %v2049, %v2045
    %v2254 = vpack.c.b16 %v2050, %v2046
    %v2255 = vpack.c.b16 %v2051, %v2047
    %v2256 = vpack.c.b16 %v2056, %v2052
    %v2257 = vpack.c.b16 %v2057, %v2053
    %v2258 = vpack.c.b16 %v2058, %v2054
    %v2259 = vpack.c.b16 %v2059, %v2055
    %v2260 = vpack.c.b16 %v2064, %v2060
    %v2261 = vpack.c.b16 %v2065, %v2061
    %v2262 = vpack.c.b16 %v2066, %v2062
    %v2263 = vpack.c.b16 %v2067, %v2063
    %v2264 = vpack.c.b16 %v2072, %v2068
    %v2265 = vpack.c.b16 %v2073, %v2069
    %v2266 = vpack.c.b16 %v2074, %v2070
    %v2267 = vpack.c.b16 %v2075, %v2071
    %v2268 = vpack.c.b16 %v2080, %v2076
    %v2269 = vpack.c.b16 %v2081, %v2077
    %v2270 = vpack.c.b16 %v2082, %v2078
    %v2271 = vpack.c.b16 %v2083, %v2079
    %v2272 = vpack.c.b16 %v2088, %v2084
    %v2273 = vpack.c.b16 %v2089, %v2085
    %v2274 = vpack.c.b16 %v2090, %v2086
    %v2275 = vpack.c.b16 %v2091, %v2087
    %v2276 = vpack.c.b16 %v2096, %v2092
    %v2277 = vpack.c.b16 %v2097, %v2093
    %v2278 = vpack.c.b16 %v2098, %v2094
    %v2279 = vpack.c.b16 %v2099, %v2095
    %v2280 = vpack.c.b16 %v2104, %v2100
    %v2281 = vpack.c.b16 %v2105, %v2101
    %v2282 = vpack.c.b16 %v2106, %v2102
    %v2283 = vpack.c.b16 %v2107, %v2103
    %v2284 = vpack.c.b16 %v2112, %v2108
    %v2285 = vpack.c.b16 %v2113, %v2109
    %v2286 = vpack.c.b16 %v2114, %v2110
    %v2287 = vpack.c.b16 %v2115, %v2111
    %v2288 = vpack.c.b16 %v2120, %v2116
    %v2289 = vpack.c.b16 %v2121, %v2117
    %v2290 = vpack.c.b16 %v2122, %v2118
    %v2291 = vpack.c.b16 %v2123, %v2119
    %v2292 = vpack.c.b16 %v2128, %v2124
    %v2293 = vpack.c.b16 %v2129, %v2125
    %v2294 = vpack.c.b16 %v2130, %v2126
    %v2295 = vpack.c.b16 %v2131, %v2127
    %v2296 = vpack.c.b16 %v2136, %v2132
    %v2297 = vpack.c.b16 %v2137, %v2133
    %v2298 = vpack.c.b16 %v2138, %v2134
    %v2299 = vpack.c.b16 %v2139, %v2135
    %v2300 = vpack.c.b16 %v2144, %v2140
    %v2301 = vpack.c.b16 %v2145, %v2141
    %v2302 = vpack.c.b16 %v2146, %v2142
    %v2303 = vpack.c.b16 %v2147, %v2143
    %v2304 = vpack.c.b16 %v2152, %v2148
    %v2305 = vpack.c.b16 %v2153, %v2149
    %v2306 = vpack.c.b16 %v2154, %v2150
    %v2307 = vpack.c.b16 %v2155, %v2151
    %v2308 = vpack.c.b16 %v2160, %v2156
    %v2309 = vpack.c.b16 %v2161, %v2157
    %v2310 = vpack.c.b16 %v2162, %v2158
    %v2311 = vpack.c.b16 %v2163, %v2159
    %v2312 = vpack.c.b16 %v2168, %v2164
    %v2313 = vpack.c.b16 %v2169, %v2165
    %v2314 = vpack.c.b16 %v2170, %v2166
    %v2315 = vpack.c.b16 %v2171, %v2167
    %v2316 = vpack.c.b16 %v2176, %v2172
    %v2317 = vpack.c.b16 %v2177, %v2173
    %v2318 = vpack.c.b16 %v2178, %v2174
    %v2319 = vpack.c.b16 %v2179, %v2175
    %v2320 = vpack.c.b16 %v2184, %v2180
    %v2321 = vpack.c.b16 %v2185, %v2181
    %v2322 = vpack.c.b16 %v2186, %v2182
    %v2323 = vpack.c.b16 %v2187, %v2183
    %v2324 = vpack.c.b16 %v2192, %v2188
    %v2325 = vpack.c.b16 %v2193, %v2189
    %v2326 = vpack.c.b16 %v2194, %v2190
    %v2327 = vpack.c.b16 %v2195, %v2191
    %v2328 = vpack.c.b16 %v2200, %v2196
    %v2329 = vpack.c.b16 %v2201, %v2197
    %v2330 = vpack.c.b16 %v2202, %v2198
    %v2331 = vpack.c.b16 %v2203, %v2199
    %2460 = vmatprep.subr.bf16.mxu0 %v2233
    %2461 = vmatpush1.bf16.msra.mxu0 %v2232
    %2462 = vmatprep.subr.bf16.mxu0 %v2229
    %2463 = vmatpush1.bf16.msra.mxu0 %v2228
    %2464 = vmatprep.subr.bf16.mxu0 %v2225
    %2465 = vmatpush1.bf16.msra.mxu0 %v2224
    %2466 = vmatprep.subr.bf16.mxu0 %v2221
    %2467 = vmatpush1.bf16.msra.mxu0 %v2220
    %2468 = vmatprep.subr.bf16.mxu0 %v2217
    %2469 = vmatpush1.bf16.msra.mxu0 %v2216
    %2470 = vmatprep.subr.bf16.mxu0 %v2213
    %2471 = vmatpush1.bf16.msra.mxu0 %v2212
    %2472 = vmatprep.subr.bf16.mxu0 %v2209
    %2473 = vmatpush1.bf16.msra.mxu0 %v2208
    %2474 = vmatprep.subr.bf16.mxu0 %v2205
    %2475 = vmatpush1.bf16.msra.mxu0 %v2204
    %2476 = vmatprep.subr.bf16.mxu0 %v2265
    %2477 = vmatpush2.bf16.msra.mxu0 %v2264
    %2478 = vmatprep.subr.bf16.mxu0 %v2261
    %2479 = vmatpush2.bf16.msra.mxu0 %v2260
    %2480 = vmatprep.subr.bf16.mxu0 %v2257
    %2481 = vmatpush2.bf16.msra.mxu0 %v2256
    %2482 = vmatprep.subr.bf16.mxu0 %v2253
    %2483 = vmatpush2.bf16.msra.mxu0 %v2252
    %2484 = vmatprep.subr.bf16.mxu0 %v2249
    %2485 = vmatpush2.bf16.msra.mxu0 %v2248
    %2486 = vmatprep.subr.bf16.mxu0 %v2245
    %2487 = vmatpush2.bf16.msra.mxu0 %v2244
    %2488 = vmatprep.subr.bf16.mxu0 %v2241
    %2489 = vmatpush2.bf16.msra.mxu0 %v2240
    %2490 = vmatprep.subr.bf16.mxu0 %v2237
    %2491 = vmatpush2.bf16.msra.mxu0 %v2236
    %2492 = vmatprep.mubr.bf16.mxu0 %v1796
    %2493 = vmatmul.mubr.bf16.gmra.mxu0 %v1795
    %v2494 = vpop.f32.mrf.mxu0
    %v2495 = vadd.f32 %v1803, %v2494
    %v2496 = vpop.f32.mrf.mxu0
    %v2497 = vadd.f32 %v1807, %v2496
    %v2498 = vpop.f32.mrf.mxu0
    %v2499 = vpop.f32.mrf.mxu0
    %2500 = vdwg.mxu0
    %2501 = vmatprep.subr.bf16.mxu0 %v2297
    %2502 = vmatpush1.bf16.msra.mxu0 %v2296
    %2503 = vmatprep.subr.bf16.mxu0 %v2293
    %2504 = vmatpush1.bf16.msra.mxu0 %v2292
    %2505 = vmatprep.subr.bf16.mxu0 %v2289
    %2506 = vmatpush1.bf16.msra.mxu0 %v2288
    %2507 = vmatprep.subr.bf16.mxu0 %v2285
    %2508 = vmatpush1.bf16.msra.mxu0 %v2284
    %2509 = vmatprep.subr.bf16.mxu0 %v2281
    %2510 = vmatpush1.bf16.msra.mxu0 %v2280
    %2511 = vmatprep.subr.bf16.mxu0 %v2277
    %2512 = vmatpush1.bf16.msra.mxu0 %v2276
    %2513 = vmatprep.subr.bf16.mxu0 %v2273
    %2514 = vmatpush1.bf16.msra.mxu0 %v2272
    %2515 = vmatprep.subr.bf16.mxu0 %v2269
    %2516 = vmatpush1.bf16.msra.mxu0 %v2268
    %2517 = vmatprep.subr.bf16.mxu0 %v2329
    %2518 = vmatpush2.bf16.msra.mxu0 %v2328
    %2519 = vmatprep.subr.bf16.mxu0 %v2325
    %2520 = vmatpush2.bf16.msra.mxu0 %v2324
    %2521 = vmatprep.subr.bf16.mxu0 %v2321
    %2522 = vmatpush2.bf16.msra.mxu0 %v2320
    %2523 = vmatprep.subr.bf16.mxu0 %v2317
    %2524 = vmatpush2.bf16.msra.mxu0 %v2316
    %2525 = vmatprep.subr.bf16.mxu0 %v2313
    %2526 = vmatpush2.bf16.msra.mxu0 %v2312
    %2527 = vmatprep.subr.bf16.mxu0 %v2309
    %2528 = vmatpush2.bf16.msra.mxu0 %v2308
    %2529 = vmatprep.subr.bf16.mxu0 %v2305
    %2530 = vmatpush2.bf16.msra.mxu0 %v2304
    %2531 = vmatprep.subr.bf16.mxu0 %v2301
    %2532 = vmatpush2.bf16.msra.mxu0 %v2300
    %2533 = vmatprep.mubr.bf16.mxu0 %v1798
    %2534 = vmatmul.mubr.bf16.gmra.mxu0 %v1797
    %v2535 = vpop.f32.mrf.mxu0
    %v2536 = vadd.f32 %v2495, %v2535
    %v2537 = vpop.f32.mrf.mxu0
    %v2538 = vadd.f32 %v2497, %v2537
    %v2539 = vpop.f32.mrf.mxu0
    %v2540 = vpop.f32.mrf.mxu0
    %2541 = vdwg.mxu0
    %2542 = vmatprep.subr.bf16.mxu0 %v2235
    %2543 = vmatpush1.bf16.msra.mxu0 %v2234
    %2544 = vmatprep.subr.bf16.mxu0 %v2231
    %2545 = vmatpush1.bf16.msra.mxu0 %v2230
    %2546 = vmatprep.subr.bf16.mxu0 %v2227
    %2547 = vmatpush1.bf16.msra.mxu0 %v2226
    %2548 = vmatprep.subr.bf16.mxu0 %v2223
    %2549 = vmatpush1.bf16.msra.mxu0 %v2222
    %2550 = vmatprep.subr.bf16.mxu0 %v2219
    %2551 = vmatpush1.bf16.msra.mxu0 %v2218
    %2552 = vmatprep.subr.bf16.mxu0 %v2215
    %2553 = vmatpush1.bf16.msra.mxu0 %v2214
    %2554 = vmatprep.subr.bf16.mxu0 %v2211
    %2555 = vmatpush1.bf16.msra.mxu0 %v2210
    %2556 = vmatprep.subr.bf16.mxu0 %v2207
    %2557 = vmatpush1.bf16.msra.mxu0 %v2206
    %2558 = vmatprep.subr.bf16.mxu0 %v2267
    %2559 = vmatpush2.bf16.msra.mxu0 %v2266
    %2560 = vmatprep.subr.bf16.mxu0 %v2263
    %2561 = vmatpush2.bf16.msra.mxu0 %v2262
    %2562 = vmatprep.subr.bf16.mxu0 %v2259
    %2563 = vmatpush2.bf16.msra.mxu0 %v2258
    %2564 = vmatprep.subr.bf16.mxu0 %v2255
    %2565 = vmatpush2.bf16.msra.mxu0 %v2254
    %2566 = vmatprep.subr.bf16.mxu0 %v2251
    %2567 = vmatpush2.bf16.msra.mxu0 %v2250
    %2568 = vmatprep.subr.bf16.mxu0 %v2247
    %2569 = vmatpush2.bf16.msra.mxu0 %v2246
    %2570 = vmatprep.subr.bf16.mxu0 %v2243
    %2571 = vmatpush2.bf16.msra.mxu0 %v2242
    %2572 = vmatprep.subr.bf16.mxu0 %v2239
    %2573 = vmatpush2.bf16.msra.mxu0 %v2238
    %2574 = vmatprep.mubr.bf16.mxu0 %v1796
    %2575 = vmatmul.mubr.bf16.gmra.mxu0 %v1795
    %v2576 = vpop.f32.mrf.mxu0
    %v2577 = vadd.f32 %v1811, %v2576
    %v2578 = vpop.f32.mrf.mxu0
    %v2579 = vadd.f32 %v1815, %v2578
    %v2580 = vpop.f32.mrf.mxu0
    %v2581 = vpop.f32.mrf.mxu0
    %2582 = vdwg.mxu0
    %2583 = vmatprep.subr.bf16.mxu0 %v2299
    %2584 = vmatpush1.bf16.msra.mxu0 %v2298
    %2585 = vmatprep.subr.bf16.mxu0 %v2295
    %2586 = vmatpush1.bf16.msra.mxu0 %v2294
    %2587 = vmatprep.subr.bf16.mxu0 %v2291
    %2588 = vmatpush1.bf16.msra.mxu0 %v2290
    %2589 = vmatprep.subr.bf16.mxu0 %v2287
    %2590 = vmatpush1.bf16.msra.mxu0 %v2286
    %2591 = vmatprep.subr.bf16.mxu0 %v2283
    %2592 = vmatpush1.bf16.msra.mxu0 %v2282
    %2593 = vmatprep.subr.bf16.mxu0 %v2279
    %2594 = vmatpush1.bf16.msra.mxu0 %v2278
    %2595 = vmatprep.subr.bf16.mxu0 %v2275
    %2596 = vmatpush1.bf16.msra.mxu0 %v2274
    %2597 = vmatprep.subr.bf16.mxu0 %v2271
    %2598 = vmatpush1.bf16.msra.mxu0 %v2270
    %2599 = vmatprep.subr.bf16.mxu0 %v2331
    %2600 = vmatpush2.bf16.msra.mxu0 %v2330
    %2601 = vmatprep.subr.bf16.mxu0 %v2327
    %2602 = vmatpush2.bf16.msra.mxu0 %v2326
    %2603 = vmatprep.subr.bf16.mxu0 %v2323
    %2604 = vmatpush2.bf16.msra.mxu0 %v2322
    %2605 = vmatprep.subr.bf16.mxu0 %v2319
    %2606 = vmatpush2.bf16.msra.mxu0 %v2318
    %2607 = vmatprep.subr.bf16.mxu0 %v2315
    %2608 = vmatpush2.bf16.msra.mxu0 %v2314
    %2609 = vmatprep.subr.bf16.mxu0 %v2311
    %2610 = vmatpush2.bf16.msra.mxu0 %v2310
    %2611 = vmatprep.subr.bf16.mxu0 %v2307
    %2612 = vmatpush2.bf16.msra.mxu0 %v2306
    %2613 = vmatprep.subr.bf16.mxu0 %v2303
    %2614 = vmatpush2.bf16.msra.mxu0 %v2302
    %2615 = vmatprep.mubr.bf16.mxu0 %v1798
    %2616 = vmatmul.mubr.bf16.gmra.mxu0 %v1797
    %v2617 = vpop.f32.mrf.mxu0
    %v2618 = vadd.f32 %v2577, %v2617
    %v2619 = vpop.f32.mrf.mxu0
    %v2620 = vadd.f32 %v2579, %v2619
    %v2621 = vpop.f32.mrf.mxu0
    %v2622 = vpop.f32.mrf.mxu0
    %2623 = vdwg.mxu0
    %v2624 = vmax.f32 %v2536, 0.0
    %v2625 = vmax.f32 %v2538, 0.0
    %v2626 = vmax.f32 %v2618, 0.0
    %v2627 = vmax.f32 %v2620, 0.0
    %v2628 = vand.u32 2147483647, %v2536
    %v2629 = vand.u32 2147483647, %v2538
    %v2630 = vand.u32 2147483647, %v2618
    %v2631 = vand.u32 2147483647, %v2620
    %v2632 = vsub.f32 0.0, %v2628
    %v2633 = vsub.f32 0.0, %v2629
    %v2634 = vsub.f32 0.0, %v2630
    %v2635 = vsub.f32 0.0, %v2631
    %v2636 = vmul.f32 %v2632, 1.442695
    %v2637 = vpow.pop %v2636
    %v2638 = vmul.f32 %v2633, 1.442695
    %v2639 = vpow.pop %v2638
    %v2640 = vmul.f32 %v2634, 1.442695
    %v2641 = vpow.pop %v2640
    %v2642 = vmul.f32 %v2635, 1.442695
    %v2643 = vpow.pop %v2642
    %v2644 = vadd.f32 %v2637, 1.0
    %v2645 = vlog2.pop %v2644
    %v2646 = vmul.f32 %v2645, 0.6931472
    %v2647 = vmul.f32 -0.5, %v2637
    %v2648 = vadd.f32 %v2647, 1.0
    %v2649 = vmul.f32 %v2648, %v2637
    %v2650 = vand.u32 2147483647, %v2637
    %vm2651 = vcmp.lt.f32.partialorder %v2650, 0.0004427343
    %v2652 = vsel %vm2651, %v2649, %v2646
    %v2653 = vadd.f32 %v2639, 1.0
    %v2654 = vlog2.pop %v2653
    %v2655 = vmul.f32 %v2654, 0.6931472
    %v2656 = vmul.f32 -0.5, %v2639
    %v2657 = vadd.f32 %v2656, 1.0
    %v2658 = vmul.f32 %v2657, %v2639
    %v2659 = vand.u32 2147483647, %v2639
    %vm2660 = vcmp.lt.f32.partialorder %v2659, 0.0004427343
    %v2661 = vsel %vm2660, %v2658, %v2655
    %v2662 = vadd.f32 %v2641, 1.0
    %v2663 = vlog2.pop %v2662
    %v2664 = vmul.f32 %v2663, 0.6931472
    %v2665 = vmul.f32 -0.5, %v2641
    %v2666 = vadd.f32 %v2665, 1.0
    %v2667 = vmul.f32 %v2666, %v2641
    %v2668 = vand.u32 2147483647, %v2641
    %vm2669 = vcmp.lt.f32.partialorder %v2668, 0.0004427343
    %v2670 = vsel %vm2669, %v2667, %v2664
    %v2671 = vadd.f32 %v2643, 1.0
    %v2672 = vlog2.pop %v2671
    %v2673 = vmul.f32 %v2672, 0.6931472
    %v2674 = vmul.f32 -0.5, %v2643
    %v2675 = vadd.f32 %v2674, 1.0
    %v2676 = vmul.f32 %v2675, %v2643
    %v2677 = vand.u32 2147483647, %v2643
    %vm2678 = vcmp.lt.f32.partialorder %v2677, 0.0004427343
    %v2679 = vsel %vm2678, %v2676, %v2673
    %v2680 = vadd.f32 %v2624, %v2652
    %v2681 = vadd.f32 %v2625, %v2661
    %v2682 = vadd.f32 %v2626, %v2670
    %v2683 = vadd.f32 %v2627, %v2679
    %v2684 = vld [vmem:[%s5] sm:$0xf]
    %v2685 = vld [vmem:[%s5 + $0x4] sm:$0xf]
    %v2686 = vld [vmem:[%s5 + $0x8] sm:$0xf]
    %v2687 = vld [vmem:[%s5 + $0xc] sm:$0xf]
    %v2688 = vld [vmem:[%s5 + $0x10] sm:$0xf]
    %v2689 = vld [vmem:[%s5 + $0x14] sm:$0xf]
    %v2690 = vld [vmem:[%s5 + $0x18] sm:$0xf]
    %v2691 = vld [vmem:[%s5 + $0x1c] sm:$0xf]
    %v2692 = vld [vmem:[%s5 + $0x20] sm:$0xf]
    %v2693 = vld [vmem:[%s5 + $0x24] sm:$0xf]
    %v2694 = vld [vmem:[%s5 + $0x28] sm:$0xf]
    %v2695 = vld [vmem:[%s5 + $0x2c] sm:$0xf]
    %v2696 = vld [vmem:[%s5 + $0x30] sm:$0xf]
    %v2697 = vld [vmem:[%s5 + $0x34] sm:$0xf]
    %v2698 = vld [vmem:[%s5 + $0x38] sm:$0xf]
    %v2699 = vld [vmem:[%s5 + $0x3c] sm:$0xf]
    %v2700 = vld [vmem:[%s5 + $0x40] sm:$0xf]
    %v2701 = vld [vmem:[%s5 + $0x44] sm:$0xf]
    %v2702 = vld [vmem:[%s5 + $0x48] sm:$0xf]
    %v2703 = vld [vmem:[%s5 + $0x4c] sm:$0xf]
    %v2704 = vld [vmem:[%s5 + $0x50] sm:$0xf]
    %v2705 = vld [vmem:[%s5 + $0x54] sm:$0xf]
    %v2706 = vld [vmem:[%s5 + $0x58] sm:$0xf]
    %v2707 = vld [vmem:[%s5 + $0x5c] sm:$0xf]
    %v2708 = vld [vmem:[%s5 + $0x60] sm:$0xf]
    %v2709 = vld [vmem:[%s5 + $0x64] sm:$0xf]
    %v2710 = vld [vmem:[%s5 + $0x68] sm:$0xf]
    %v2711 = vld [vmem:[%s5 + $0x6c] sm:$0xf]
    %v2712 = vld [vmem:[%s5 + $0x70] sm:$0xf]
    %v2713 = vld [vmem:[%s5 + $0x74] sm:$0xf]
    %v2714 = vld [vmem:[%s5 + $0x78] sm:$0xf]
    %v2715 = vld [vmem:[%s5 + $0x7c] sm:$0xf]
    %v2716 = vld [vmem:[%s5 + $0x80] sm:$0xf]
    %v2717 = vld [vmem:[%s5 + $0x84] sm:$0xf]
    %v2718 = vld [vmem:[%s5 + $0x88] sm:$0xf]
    %v2719 = vld [vmem:[%s5 + $0x8c] sm:$0xf]
    %v2720 = vld [vmem:[%s5 + $0x90] sm:$0xf]
    %v2721 = vld [vmem:[%s5 + $0x94] sm:$0xf]
    %v2722 = vld [vmem:[%s5 + $0x98] sm:$0xf]
    %v2723 = vld [vmem:[%s5 + $0x9c] sm:$0xf]
    %v2724 = vld [vmem:[%s5 + $0xa0] sm:$0xf]
    %v2725 = vld [vmem:[%s5 + $0xa4] sm:$0xf]
    %v2726 = vld [vmem:[%s5 + $0xa8] sm:$0xf]
    %v2727 = vld [vmem:[%s5 + $0xac] sm:$0xf]
    %v2728 = vld [vmem:[%s5 + $0xb0] sm:$0xf]
    %v2729 = vld [vmem:[%s5 + $0xb4] sm:$0xf]
    %v2730 = vld [vmem:[%s5 + $0xb8] sm:$0xf]
    %v2731 = vld [vmem:[%s5 + $0xbc] sm:$0xf]
    %v2732 = vld [vmem:[%s5 + $0xc0] sm:$0xf]
    %v2733 = vld [vmem:[%s5 + $0xc4] sm:$0xf]
    %v2734 = vld [vmem:[%s5 + $0xc8] sm:$0xf]
    %v2735 = vld [vmem:[%s5 + $0xcc] sm:$0xf]
    %v2736 = vld [vmem:[%s5 + $0xd0] sm:$0xf]
    %v2737 = vld [vmem:[%s5 + $0xd4] sm:$0xf]
    %v2738 = vld [vmem:[%s5 + $0xd8] sm:$0xf]
    %v2739 = vld [vmem:[%s5 + $0xdc] sm:$0xf]
    %v2740 = vld [vmem:[%s5 + $0xe0] sm:$0xf]
    %v2741 = vld [vmem:[%s5 + $0xe4] sm:$0xf]
    %v2742 = vld [vmem:[%s5 + $0xe8] sm:$0xf]
    %v2743 = vld [vmem:[%s5 + $0xec] sm:$0xf]
    %v2744 = vld [vmem:[%s5 + $0xf0] sm:$0xf]
    %v2745 = vld [vmem:[%s5 + $0xf4] sm:$0xf]
    %v2746 = vld [vmem:[%s5 + $0xf8] sm:$0xf]
    %v2747 = vld [vmem:[%s5 + $0xfc] sm:$0xf]
    %v2748 = vld [vmem:[%s6] sm:$0x1]
    %v2749 = vpack.c.bf16 %v2680, %v2680
    %v2750 = vpack.c.bf16 %v2681, %v2681
    %v2751 = vpack.c.bf16 %v2682, %v2682
    %v2752 = vpack.c.bf16 %v2683, %v2683
    %v2754 = vlaneseq
    %v2755 = vshrl.u32 %v2754, 7
    %v2756 = vsub.s32 0, %v2755
    %v2757 = vrot.slane %v2748, %v2756
    %v2823 = vunpack.c.l.b16 %v2684
    %v2824 = vunpack.c.l.b16 %v2685
    %v2825 = vunpack.c.l.b16 %v2686
    %v2826 = vunpack.c.l.b16 %v2687
    %v2827 = vunpack.c.l.b16 %v2688
    %v2828 = vunpack.c.l.b16 %v2689
    %v2829 = vunpack.c.l.b16 %v2690
    %v2830 = vunpack.c.l.b16 %v2691
    %v2831 = vunpack.c.l.b16 %v2692
    %v2832 = vunpack.c.l.b16 %v2693
    %v2833 = vunpack.c.l.b16 %v2694
    %v2834 = vunpack.c.l.b16 %v2695
    %v2835 = vunpack.c.l.b16 %v2696
    %v2836 = vunpack.c.l.b16 %v2697
    %v2837 = vunpack.c.l.b16 %v2698
    %v2838 = vunpack.c.l.b16 %v2699
    %v2839 = vunpack.c.l.b16 %v2700
    %v2840 = vunpack.c.l.b16 %v2701
    %v2841 = vunpack.c.l.b16 %v2702
    %v2842 = vunpack.c.l.b16 %v2703
    %v2843 = vunpack.c.l.b16 %v2704
    %v2844 = vunpack.c.l.b16 %v2705
    %v2845 = vunpack.c.l.b16 %v2706
    %v2846 = vunpack.c.l.b16 %v2707
    %v2847 = vunpack.c.l.b16 %v2708
    %v2848 = vunpack.c.l.b16 %v2709
    %v2849 = vunpack.c.l.b16 %v2710
    %v2850 = vunpack.c.l.b16 %v2711
    %v2851 = vunpack.c.l.b16 %v2712
    %v2852 = vunpack.c.l.b16 %v2713
    %v2853 = vunpack.c.l.b16 %v2714
    %v2854 = vunpack.c.l.b16 %v2715
    %v2855 = vunpack.c.l.b16 %v2716
    %v2856 = vunpack.c.l.b16 %v2717
    %v2857 = vunpack.c.l.b16 %v2718
    %v2858 = vunpack.c.l.b16 %v2719
    %v2859 = vunpack.c.l.b16 %v2720
    %v2860 = vunpack.c.l.b16 %v2721
    %v2861 = vunpack.c.l.b16 %v2722
    %v2862 = vunpack.c.l.b16 %v2723
    %v2863 = vunpack.c.l.b16 %v2724
    %v2864 = vunpack.c.l.b16 %v2725
    %v2865 = vunpack.c.l.b16 %v2726
    %v2866 = vunpack.c.l.b16 %v2727
    %v2867 = vunpack.c.l.b16 %v2728
    %v2868 = vunpack.c.l.b16 %v2729
    %v2869 = vunpack.c.l.b16 %v2730
    %v2870 = vunpack.c.l.b16 %v2731
    %v2871 = vunpack.c.l.b16 %v2732
    %v2872 = vunpack.c.l.b16 %v2733
    %v2873 = vunpack.c.l.b16 %v2734
    %v2874 = vunpack.c.l.b16 %v2735
    %v2875 = vunpack.c.l.b16 %v2736
    %v2876 = vunpack.c.l.b16 %v2737
    %v2877 = vunpack.c.l.b16 %v2738
    %v2878 = vunpack.c.l.b16 %v2739
    %v2879 = vunpack.c.l.b16 %v2740
    %v2880 = vunpack.c.l.b16 %v2741
    %v2881 = vunpack.c.l.b16 %v2742
    %v2882 = vunpack.c.l.b16 %v2743
    %v2883 = vunpack.c.l.b16 %v2744
    %v2884 = vunpack.c.l.b16 %v2745
    %v2885 = vunpack.c.l.b16 %v2746
    %v2886 = vunpack.c.l.b16 %v2747
    %v2887 = vpack.c.b16 %v2824, %v2823
    %v2888 = vpack.c.b16 %v2826, %v2825
    %v2889 = vpack.c.b16 %v2828, %v2827
    %v2890 = vpack.c.b16 %v2830, %v2829
    %v2891 = vpack.c.b16 %v2832, %v2831
    %v2892 = vpack.c.b16 %v2834, %v2833
    %v2893 = vpack.c.b16 %v2836, %v2835
    %v2894 = vpack.c.b16 %v2838, %v2837
    %v2895 = vpack.c.b16 %v2840, %v2839
    %v2896 = vpack.c.b16 %v2842, %v2841
    %v2897 = vpack.c.b16 %v2844, %v2843
    %v2898 = vpack.c.b16 %v2846, %v2845
    %v2899 = vpack.c.b16 %v2848, %v2847
    %v2900 = vpack.c.b16 %v2850, %v2849
    %v2901 = vpack.c.b16 %v2852, %v2851
    %v2902 = vpack.c.b16 %v2854, %v2853
    %v2903 = vpack.c.b16 %v2856, %v2855
    %v2904 = vpack.c.b16 %v2858, %v2857
    %v2905 = vpack.c.b16 %v2860, %v2859
    %v2906 = vpack.c.b16 %v2862, %v2861
    %v2907 = vpack.c.b16 %v2864, %v2863
    %v2908 = vpack.c.b16 %v2866, %v2865
    %v2909 = vpack.c.b16 %v2868, %v2867
    %v2910 = vpack.c.b16 %v2870, %v2869
    %v2911 = vpack.c.b16 %v2872, %v2871
    %v2912 = vpack.c.b16 %v2874, %v2873
    %v2913 = vpack.c.b16 %v2876, %v2875
    %v2914 = vpack.c.b16 %v2878, %v2877
    %v2915 = vpack.c.b16 %v2880, %v2879
    %v2916 = vpack.c.b16 %v2882, %v2881
    %v2917 = vpack.c.b16 %v2884, %v2883
    %v2918 = vpack.c.b16 %v2886, %v2885
    %2951 = vmatprep.subr.bf16.mxu0 0
    %2952 = vmatpush1.bf16.msra.mxu0 %v2894
    %2953 = vmatprep.subr.bf16.mxu0 0
    %2954 = vmatpush1.bf16.msra.mxu0 %v2893
    %2955 = vmatprep.subr.bf16.mxu0 0
    %2956 = vmatpush1.bf16.msra.mxu0 %v2892
    %2957 = vmatprep.subr.bf16.mxu0 0
    %2958 = vmatpush1.bf16.msra.mxu0 %v2891
    %2959 = vmatprep.subr.bf16.mxu0 0
    %2960 = vmatpush1.bf16.msra.mxu0 %v2890
    %2961 = vmatprep.subr.bf16.mxu0 0
    %2962 = vmatpush1.bf16.msra.mxu0 %v2889
    %2963 = vmatprep.subr.bf16.mxu0 0
    %2964 = vmatpush1.bf16.msra.mxu0 %v2888
    %2965 = vmatprep.subr.bf16.mxu0 0
    %2966 = vmatpush1.bf16.msra.mxu0 %v2887
    %2967 = vmatprep.subr.bf16.mxu0 0
    %2968 = vmatpush2.bf16.msra.mxu0 %v2902
    %2969 = vmatprep.subr.bf16.mxu0 0
    %2970 = vmatpush2.bf16.msra.mxu0 %v2901
    %2971 = vmatprep.subr.bf16.mxu0 0
    %2972 = vmatpush2.bf16.msra.mxu0 %v2900
    %2973 = vmatprep.subr.bf16.mxu0 0
    %2974 = vmatpush2.bf16.msra.mxu0 %v2899
    %2975 = vmatprep.subr.bf16.mxu0 0
    %2976 = vmatpush2.bf16.msra.mxu0 %v2898
    %2977 = vmatprep.subr.bf16.mxu0 0
    %2978 = vmatpush2.bf16.msra.mxu0 %v2897
    %2979 = vmatprep.subr.bf16.mxu0 0
    %2980 = vmatpush2.bf16.msra.mxu0 %v2896
    %2981 = vmatprep.subr.bf16.mxu0 0
    %2982 = vmatpush2.bf16.msra.mxu0 %v2895
    %2983 = vmatprep.mubr.bf16.mxu0 %v2750
    %2984 = vmatmul.mubr.bf16.gmra.mxu0 %v2749
    %v2985 = vpop.f32.mrf.mxu0
    %v2986 = vadd.f32 %v2757, %v2985
    %v2987 = vpop.f32.mrf.mxu0
    %v2988 = vpop.f32.mrf.mxu0
    %v2989 = vpop.f32.mrf.mxu0
    %2990 = vdwg.mxu0
    %2991 = vmatprep.subr.bf16.mxu0 0
    %2992 = vmatpush1.bf16.msra.mxu0 %v2910
    %2993 = vmatprep.subr.bf16.mxu0 0
    %2994 = vmatpush1.bf16.msra.mxu0 %v2909
    %2995 = vmatprep.subr.bf16.mxu0 0
    %2996 = vmatpush1.bf16.msra.mxu0 %v2908
    %2997 = vmatprep.subr.bf16.mxu0 0
    %2998 = vmatpush1.bf16.msra.mxu0 %v2907
    %2999 = vmatprep.subr.bf16.mxu0 0
    %3000 = vmatpush1.bf16.msra.mxu0 %v2906
    %3001 = vmatprep.subr.bf16.mxu0 0
    %3002 = vmatpush1.bf16.msra.mxu0 %v2905
    %3003 = vmatprep.subr.bf16.mxu0 0
    %3004 = vmatpush1.bf16.msra.mxu0 %v2904
    %3005 = vmatprep.subr.bf16.mxu0 0
    %3006 = vmatpush1.bf16.msra.mxu0 %v2903
    %3007 = vmatprep.subr.bf16.mxu0 0
    %3008 = vmatpush2.bf16.msra.mxu0 %v2918
    %3009 = vmatprep.subr.bf16.mxu0 0
    %3010 = vmatpush2.bf16.msra.mxu0 %v2917
    %3011 = vmatprep.subr.bf16.mxu0 0
    %3012 = vmatpush2.bf16.msra.mxu0 %v2916
    %3013 = vmatprep.subr.bf16.mxu0 0
    %3014 = vmatpush2.bf16.msra.mxu0 %v2915
    %3015 = vmatprep.subr.bf16.mxu0 0
    %3016 = vmatpush2.bf16.msra.mxu0 %v2914
    %3017 = vmatprep.subr.bf16.mxu0 0
    %3018 = vmatpush2.bf16.msra.mxu0 %v2913
    %3019 = vmatprep.subr.bf16.mxu0 0
    %3020 = vmatpush2.bf16.msra.mxu0 %v2912
    %3021 = vmatprep.subr.bf16.mxu0 0
    %3022 = vmatpush2.bf16.msra.mxu0 %v2911
    %3023 = vmatprep.mubr.bf16.mxu0 %v2752
    %3024 = vmatmul.mubr.bf16.gmra.mxu0 %v2751
    %v3025 = vpop.f32.mrf.mxu0
    %v3026 = vadd.f32 %v2986, %v3025
    %v3027 = vpop.f32.mrf.mxu0
    %v3028 = vpop.f32.mrf.mxu0
    %v3029 = vpop.f32.mrf.mxu0
    %3030 = vdwg.mxu0
    %3031 = vst [vmem:[#allocation2] sm:$0xff] %v3026
    %v3032 = vld [vmem:[%s7] sm:$0xff]
    %v3033 = vld [vmem:[%s7 + $0x8] sm:$0xff]
    %v3034 = vld [vmem:[%s7 + $0x10] sm:$0xff]
    %v3035 = vld [vmem:[%s7 + $0x18] sm:$0xff]
    %v3036 = vld [vmem:[%s7 + $0x20] sm:$0xff]
    %v3037 = vld [vmem:[%s7 + $0x28] sm:$0xff]
    %v3038 = vld [vmem:[%s7 + $0x30] sm:$0xff]
    %v3039 = vld [vmem:[%s7 + $0x38] sm:$0xff]
    %v3040 = vld [vmem:[%s7 + $0x40] sm:$0xff]
    %v3041 = vld [vmem:[%s7 + $0x48] sm:$0xff]
    %v3042 = vld [vmem:[%s7 + $0x50] sm:$0xff]
    %v3043 = vld [vmem:[%s7 + $0x58] sm:$0xff]
    %v3044 = vld [vmem:[%s7 + $0x60] sm:$0xff]
    %v3045 = vld [vmem:[%s7 + $0x68] sm:$0xff]
    %v3046 = vld [vmem:[%s7 + $0x70] sm:$0xff]
    %v3047 = vld [vmem:[%s7 + $0x78] sm:$0xff]
    %v3048 = vld [vmem:[%s7 + $0x80] sm:$0xff]
    %v3049 = vld [vmem:[%s7 + $0x88] sm:$0xff]
    %v3050 = vld [vmem:[%s7 + $0x90] sm:$0xff]
    %v3051 = vld [vmem:[%s7 + $0x98] sm:$0xff]
    %v3052 = vld [vmem:[%s7 + $0xa0] sm:$0xff]
    %v3053 = vld [vmem:[%s7 + $0xa8] sm:$0xff]
    %v3054 = vld [vmem:[%s7 + $0xb0] sm:$0xff]
    %v3055 = vld [vmem:[%s7 + $0xb8] sm:$0xff]
    %v3056 = vld [vmem:[%s7 + $0xc0] sm:$0xff]
    %v3057 = vld [vmem:[%s7 + $0xc8] sm:$0xff]
    %v3058 = vld [vmem:[%s7 + $0xd0] sm:$0xff]
    %v3059 = vld [vmem:[%s7 + $0xd8] sm:$0xff]
    %v3060 = vld [vmem:[%s7 + $0xe0] sm:$0xff]
    %v3061 = vld [vmem:[%s7 + $0xe8] sm:$0xff]
    %v3062 = vld [vmem:[%s7 + $0xf0] sm:$0xff]
    %v3063 = vld [vmem:[%s7 + $0xf8] sm:$0xff]
    %v3064 = vld [vmem:[%s8] sm:$0xf]
    %v3065 = vpack.c.bf16 %v3026, %v3026
    %v3067 = vlaneseq
    %v3068 = vshrl.u32 %v3067, 7
    %v3069 = vsub.s32 0, %v3068
    %v3070 = vrot.slane %v3064, %v3069
    %v3071 = vlaneseq
    %v3072 = vshrl.u32 %v3071, 7
    %v3073 = vsub.s32 1, %v3072
    %v3074 = vrot.slane %v3064, %v3073
    %v3075 = vlaneseq
    %v3076 = vshrl.u32 %v3075, 7
    %v3077 = vsub.s32 2, %v3076
    %v3078 = vrot.slane %v3064, %v3077
    %v3079 = vlaneseq
    %v3080 = vshrl.u32 %v3079, 7
    %v3081 = vsub.s32 3, %v3080
    %v3082 = vrot.slane %v3064, %v3081
    %v3119 = vunpack.c.l.b16 %v3032
    %v3120 = vunpack.c.h.b16 %v3032
    %v3121 = vunpack.c.l.b16 %v3033
    %v3122 = vunpack.c.h.b16 %v3033
    %v3123 = vunpack.c.l.b16 %v3034
    %v3124 = vunpack.c.h.b16 %v3034
    %v3125 = vunpack.c.l.b16 %v3035
    %v3126 = vunpack.c.h.b16 %v3035
    %v3127 = vunpack.c.l.b16 %v3036
    %v3128 = vunpack.c.h.b16 %v3036
    %v3129 = vunpack.c.l.b16 %v3037
    %v3130 = vunpack.c.h.b16 %v3037
    %v3131 = vunpack.c.l.b16 %v3038
    %v3132 = vunpack.c.h.b16 %v3038
    %v3133 = vunpack.c.l.b16 %v3039
    %v3134 = vunpack.c.h.b16 %v3039
    %v3135 = vunpack.c.l.b16 %v3040
    %v3136 = vunpack.c.h.b16 %v3040
    %v3137 = vunpack.c.l.b16 %v3041
    %v3138 = vunpack.c.h.b16 %v3041
    %v3139 = vunpack.c.l.b16 %v3042
    %v3140 = vunpack.c.h.b16 %v3042
    %v3141 = vunpack.c.l.b16 %v3043
    %v3142 = vunpack.c.h.b16 %v3043
    %v3143 = vunpack.c.l.b16 %v3044
    %v3144 = vunpack.c.h.b16 %v3044
    %v3145 = vunpack.c.l.b16 %v3045
    %v3146 = vunpack.c.h.b16 %v3045
    %v3147 = vunpack.c.l.b16 %v3046
    %v3148 = vunpack.c.h.b16 %v3046
    %v3149 = vunpack.c.l.b16 %v3047
    %v3150 = vunpack.c.h.b16 %v3047
    %v3151 = vunpack.c.l.b16 %v3048
    %v3152 = vunpack.c.h.b16 %v3048
    %v3153 = vunpack.c.l.b16 %v3049
    %v3154 = vunpack.c.h.b16 %v3049
    %v3155 = vunpack.c.l.b16 %v3050
    %v3156 = vunpack.c.h.b16 %v3050
    %v3157 = vunpack.c.l.b16 %v3051
    %v3158 = vunpack.c.h.b16 %v3051
    %v3159 = vunpack.c.l.b16 %v3052
    %v3160 = vunpack.c.h.b16 %v3052
    %v3161 = vunpack.c.l.b16 %v3053
    %v3162 = vunpack.c.h.b16 %v3053
    %v3163 = vunpack.c.l.b16 %v3054
    %v3164 = vunpack.c.h.b16 %v3054
    %v3165 = vunpack.c.l.b16 %v3055
    %v3166 = vunpack.c.h.b16 %v3055
    %v3167 = vunpack.c.l.b16 %v3056
    %v3168 = vunpack.c.h.b16 %v3056
    %v3169 = vunpack.c.l.b16 %v3057
    %v3170 = vunpack.c.h.b16 %v3057
    %v3171 = vunpack.c.l.b16 %v3058
    %v3172 = vunpack.c.h.b16 %v3058
    %v3173 = vunpack.c.l.b16 %v3059
    %v3174 = vunpack.c.h.b16 %v3059
    %v3175 = vunpack.c.l.b16 %v3060
    %v3176 = vunpack.c.h.b16 %v3060
    %v3177 = vunpack.c.l.b16 %v3061
    %v3178 = vunpack.c.h.b16 %v3061
    %v3179 = vunpack.c.l.b16 %v3062
    %v3180 = vunpack.c.h.b16 %v3062
    %v3181 = vunpack.c.l.b16 %v3063
    %v3182 = vunpack.c.h.b16 %v3063
    %v3183 = vpack.c.b16 %v3123, %v3119
    %v3184 = vpack.c.b16 %v3124, %v3120
    %v3185 = vpack.c.b16 %v3125, %v3121
    %v3186 = vpack.c.b16 %v3126, %v3122
    %v3187 = vpack.c.b16 %v3131, %v3127
    %v3188 = vpack.c.b16 %v3132, %v3128
    %v3189 = vpack.c.b16 %v3133, %v3129
    %v3190 = vpack.c.b16 %v3134, %v3130
    %v3191 = vpack.c.b16 %v3139, %v3135
    %v3192 = vpack.c.b16 %v3140, %v3136
    %v3193 = vpack.c.b16 %v3141, %v3137
    %v3194 = vpack.c.b16 %v3142, %v3138
    %v3195 = vpack.c.b16 %v3147, %v3143
    %v3196 = vpack.c.b16 %v3148, %v3144
    %v3197 = vpack.c.b16 %v3149, %v3145
    %v3198 = vpack.c.b16 %v3150, %v3146
    %v3199 = vpack.c.b16 %v3155, %v3151
    %v3200 = vpack.c.b16 %v3156, %v3152
    %v3201 = vpack.c.b16 %v3157, %v3153
    %v3202 = vpack.c.b16 %v3158, %v3154
    %v3203 = vpack.c.b16 %v3163, %v3159
    %v3204 = vpack.c.b16 %v3164, %v3160
    %v3205 = vpack.c.b16 %v3165, %v3161
    %v3206 = vpack.c.b16 %v3166, %v3162
    %v3207 = vpack.c.b16 %v3171, %v3167
    %v3208 = vpack.c.b16 %v3172, %v3168
    %v3209 = vpack.c.b16 %v3173, %v3169
    %v3210 = vpack.c.b16 %v3174, %v3170
    %v3211 = vpack.c.b16 %v3179, %v3175
    %v3212 = vpack.c.b16 %v3180, %v3176
    %v3213 = vpack.c.b16 %v3181, %v3177
    %v3214 = vpack.c.b16 %v3182, %v3178
    %3247 = vmatprep.subr.bf16.mxu0 %v3212
    %3248 = vmatpush1.bf16.msra.mxu0 %v3211
    %3249 = vmatprep.subr.bf16.mxu0 %v3208
    %3250 = vmatpush1.bf16.msra.mxu0 %v3207
    %3251 = vmatprep.subr.bf16.mxu0 %v3204
    %3252 = vmatpush1.bf16.msra.mxu0 %v3203
    %3253 = vmatprep.subr.bf16.mxu0 %v3200
    %3254 = vmatpush1.bf16.msra.mxu0 %v3199
    %3255 = vmatprep.subr.bf16.mxu0 %v3196
    %3256 = vmatpush1.bf16.msra.mxu0 %v3195
    %3257 = vmatprep.subr.bf16.mxu0 %v3192
    %3258 = vmatpush1.bf16.msra.mxu0 %v3191
    %3259 = vmatprep.subr.bf16.mxu0 %v3188
    %3260 = vmatpush1.bf16.msra.mxu0 %v3187
    %3261 = vmatprep.subr.bf16.mxu0 %v3184
    %3262 = vmatpush1.bf16.msra.mxu0 %v3183
    %3263 = vmatprep.subr.bf16.mxu0 0
    %3264 = vmatpush2.bf16.msra.mxu0 0
    %3265 = vmatprep.subr.bf16.mxu0 0
    %3266 = vmatpush2.bf16.msra.mxu0 0
    %3267 = vmatprep.subr.bf16.mxu0 0
    %3268 = vmatpush2.bf16.msra.mxu0 0
    %3269 = vmatprep.subr.bf16.mxu0 0
    %3270 = vmatpush2.bf16.msra.mxu0 0
    %3271 = vmatprep.subr.bf16.mxu0 0
    %3272 = vmatpush2.bf16.msra.mxu0 0
    %3273 = vmatprep.subr.bf16.mxu0 0
    %3274 = vmatpush2.bf16.msra.mxu0 0
    %3275 = vmatprep.subr.bf16.mxu0 0
    %3276 = vmatpush2.bf16.msra.mxu0 0
    %3277 = vmatprep.subr.bf16.mxu0 0
    %3278 = vmatpush2.bf16.msra.mxu0 0
    %3279 = vmatprep.mubr.bf16.mxu0 0
    %3280 = vmatmul.mubr.bf16.gmra.mxu0 %v3065
    %v3281 = vpop.f32.mrf.mxu0
    %v3282 = vadd.f32 %v3070, %v3281
    %v3283 = vpop.f32.mrf.mxu0
    %v3284 = vadd.f32 %v3074, %v3283
    %v3285 = vpop.f32.mrf.mxu0
    %v3286 = vpop.f32.mrf.mxu0
    %3287 = vdwg.mxu0
    %3288 = vmatprep.subr.bf16.mxu0 %v3214
    %3289 = vmatpush1.bf16.msra.mxu0 %v3213
    %3290 = vmatprep.subr.bf16.mxu0 %v3210
    %3291 = vmatpush1.bf16.msra.mxu0 %v3209
    %3292 = vmatprep.subr.bf16.mxu0 %v3206
    %3293 = vmatpush1.bf16.msra.mxu0 %v3205
    %3294 = vmatprep.subr.bf16.mxu0 %v3202
    %3295 = vmatpush1.bf16.msra.mxu0 %v3201
    %3296 = vmatprep.subr.bf16.mxu0 %v3198
    %3297 = vmatpush1.bf16.msra.mxu0 %v3197
    %3298 = vmatprep.subr.bf16.mxu0 %v3194
    %3299 = vmatpush1.bf16.msra.mxu0 %v3193
    %3300 = vmatprep.subr.bf16.mxu0 %v3190
    %3301 = vmatpush1.bf16.msra.mxu0 %v3189
    %3302 = vmatprep.subr.bf16.mxu0 %v3186
    %3303 = vmatpush1.bf16.msra.mxu0 %v3185
    %3304 = vmatprep.subr.bf16.mxu0 0
    %3305 = vmatpush2.bf16.msra.mxu0 0
    %3306 = vmatprep.subr.bf16.mxu0 0
    %3307 = vmatpush2.bf16.msra.mxu0 0
    %3308 = vmatprep.subr.bf16.mxu0 0
    %3309 = vmatpush2.bf16.msra.mxu0 0
    %3310 = vmatprep.subr.bf16.mxu0 0
    %3311 = vmatpush2.bf16.msra.mxu0 0
    %3312 = vmatprep.subr.bf16.mxu0 0
    %3313 = vmatpush2.bf16.msra.mxu0 0
    %3314 = vmatprep.subr.bf16.mxu0 0
    %3315 = vmatpush2.bf16.msra.mxu0 0
    %3316 = vmatprep.subr.bf16.mxu0 0
    %3317 = vmatpush2.bf16.msra.mxu0 0
    %3318 = vmatprep.subr.bf16.mxu0 0
    %3319 = vmatpush2.bf16.msra.mxu0 0
    %3320 = vmatprep.mubr.bf16.mxu0 0
    %3321 = vmatmul.mubr.bf16.gmra.mxu0 %v3065
    %v3322 = vpop.f32.mrf.mxu0
    %v3323 = vadd.f32 %v3078, %v3322
    %v3324 = vpop.f32.mrf.mxu0
    %v3325 = vadd.f32 %v3082, %v3324
    %v3326 = vpop.f32.mrf.mxu0
    %v3327 = vpop.f32.mrf.mxu0
    %3328 = vdwg.mxu0
    %v3329 = vmax.f32 %v3282, 0.0
    %v3330 = vmax.f32 %v3284, 0.0
    %v3331 = vmax.f32 %v3323, 0.0
    %v3332 = vmax.f32 %v3325, 0.0
    %v3333 = vand.u32 2147483647, %v3282
    %v3334 = vand.u32 2147483647, %v3284
    %v3335 = vand.u32 2147483647, %v3323
    %v3336 = vand.u32 2147483647, %v3325
    %v3337 = vsub.f32 0.0, %v3333
    %v3338 = vsub.f32 0.0, %v3334
    %v3339 = vsub.f32 0.0, %v3335
    %v3340 = vsub.f32 0.0, %v3336
    %v3341 = vmul.f32 %v3337, 1.442695
    %v3342 = vpow.pop %v3341
    %v3343 = vmul.f32 %v3338, 1.442695
    %v3344 = vpow.pop %v3343
    %v3345 = vmul.f32 %v3339, 1.442695
    %v3346 = vpow.pop %v3345
    %v3347 = vmul.f32 %v3340, 1.442695
    %v3348 = vpow.pop %v3347
    %v3349 = vadd.f32 %v3342, 1.0
    %v3350 = vlog2.pop %v3349
    %v3351 = vmul.f32 %v3350, 0.6931472
    %v3352 = vmul.f32 -0.5, %v3342
    %v3353 = vadd.f32 %v3352, 1.0
    %v3354 = vmul.f32 %v3353, %v3342
    %v3355 = vand.u32 2147483647, %v3342
    %vm3356 = vcmp.lt.f32.partialorder %v3355, 0.0004427343
    %v3357 = vsel %vm3356, %v3354, %v3351
    %v3358 = vadd.f32 %v3344, 1.0
    %v3359 = vlog2.pop %v3358
    %v3360 = vmul.f32 %v3359, 0.6931472
    %v3361 = vmul.f32 -0.5, %v3344
    %v3362 = vadd.f32 %v3361, 1.0
    %v3363 = vmul.f32 %v3362, %v3344
    %v3364 = vand.u32 2147483647, %v3344
    %vm3365 = vcmp.lt.f32.partialorder %v3364, 0.0004427343
    %v3366 = vsel %vm3365, %v3363, %v3360
    %v3367 = vadd.f32 %v3346, 1.0
    %v3368 = vlog2.pop %v3367
    %v3369 = vmul.f32 %v3368, 0.6931472
    %v3370 = vmul.f32 -0.5, %v3346
    %v3371 = vadd.f32 %v3370, 1.0
    %v3372 = vmul.f32 %v3371, %v3346
    %v3373 = vand.u32 2147483647, %v3346
    %vm3374 = vcmp.lt.f32.partialorder %v3373, 0.0004427343
    %v3375 = vsel %vm3374, %v3372, %v3369
    %v3376 = vadd.f32 %v3348, 1.0
    %v3377 = vlog2.pop %v3376
    %v3378 = vmul.f32 %v3377, 0.6931472
    %v3379 = vmul.f32 -0.5, %v3348
    %v3380 = vadd.f32 %v3379, 1.0
    %v3381 = vmul.f32 %v3380, %v3348
    %v3382 = vand.u32 2147483647, %v3348
    %vm3383 = vcmp.lt.f32.partialorder %v3382, 0.0004427343
    %v3384 = vsel %vm3383, %v3381, %v3378
    %v3385 = vadd.f32 %v3329, %v3357
    %v3386 = vadd.f32 %v3330, %v3366
    %v3387 = vadd.f32 %v3331, %v3375
    %v3388 = vadd.f32 %v3332, %v3384
    %v3389 = vld [vmem:[%s9] sm:$0xff]
    %v3390 = vld [vmem:[%s9 + $0x8] sm:$0xff]
    %v3391 = vld [vmem:[%s9 + $0x10] sm:$0xff]
    %v3392 = vld [vmem:[%s9 + $0x18] sm:$0xff]
    %v3393 = vld [vmem:[%s9 + $0x20] sm:$0xff]
    %v3394 = vld [vmem:[%s9 + $0x28] sm:$0xff]
    %v3395 = vld [vmem:[%s9 + $0x30] sm:$0xff]
    %v3396 = vld [vmem:[%s9 + $0x38] sm:$0xff]
    %v3397 = vld [vmem:[%s9 + $0x40] sm:$0xff]
    %v3398 = vld [vmem:[%s9 + $0x48] sm:$0xff]
    %v3399 = vld [vmem:[%s9 + $0x50] sm:$0xff]
    %v3400 = vld [vmem:[%s9 + $0x58] sm:$0xff]
    %v3401 = vld [vmem:[%s9 + $0x60] sm:$0xff]
    %v3402 = vld [vmem:[%s9 + $0x68] sm:$0xff]
    %v3403 = vld [vmem:[%s9 + $0x70] sm:$0xff]
    %v3404 = vld [vmem:[%s9 + $0x78] sm:$0xff]
    %v3405 = vld [vmem:[%s9 + $0x80] sm:$0xff]
    %v3406 = vld [vmem:[%s9 + $0x88] sm:$0xff]
    %v3407 = vld [vmem:[%s9 + $0x90] sm:$0xff]
    %v3408 = vld [vmem:[%s9 + $0x98] sm:$0xff]
    %v3409 = vld [vmem:[%s9 + $0xa0] sm:$0xff]
    %v3410 = vld [vmem:[%s9 + $0xa8] sm:$0xff]
    %v3411 = vld [vmem:[%s9 + $0xb0] sm:$0xff]
    %v3412 = vld [vmem:[%s9 + $0xb8] sm:$0xff]
    %v3413 = vld [vmem:[%s9 + $0xc0] sm:$0xff]
    %v3414 = vld [vmem:[%s9 + $0xc8] sm:$0xff]
    %v3415 = vld [vmem:[%s9 + $0xd0] sm:$0xff]
    %v3416 = vld [vmem:[%s9 + $0xd8] sm:$0xff]
    %v3417 = vld [vmem:[%s9 + $0xe0] sm:$0xff]
    %v3418 = vld [vmem:[%s9 + $0xe8] sm:$0xff]
    %v3419 = vld [vmem:[%s9 + $0xf0] sm:$0xff]
    %v3420 = vld [vmem:[%s9 + $0xf8] sm:$0xff]
    %v3421 = vld [vmem:[%s9 + $0x100] sm:$0xff]
    %v3422 = vld [vmem:[%s9 + $0x108] sm:$0xff]
    %v3423 = vld [vmem:[%s9 + $0x110] sm:$0xff]
    %v3424 = vld [vmem:[%s9 + $0x118] sm:$0xff]
    %v3425 = vld [vmem:[%s9 + $0x120] sm:$0xff]
    %v3426 = vld [vmem:[%s9 + $0x128] sm:$0xff]
    %v3427 = vld [vmem:[%s9 + $0x130] sm:$0xff]
    %v3428 = vld [vmem:[%s9 + $0x138] sm:$0xff]
    %v3429 = vld [vmem:[%s9 + $0x140] sm:$0xff]
    %v3430 = vld [vmem:[%s9 + $0x148] sm:$0xff]
    %v3431 = vld [vmem:[%s9 + $0x150] sm:$0xff]
    %v3432 = vld [vmem:[%s9 + $0x158] sm:$0xff]
    %v3433 = vld [vmem:[%s9 + $0x160] sm:$0xff]
    %v3434 = vld [vmem:[%s9 + $0x168] sm:$0xff]
    %v3435 = vld [vmem:[%s9 + $0x170] sm:$0xff]
    %v3436 = vld [vmem:[%s9 + $0x178] sm:$0xff]
    %v3437 = vld [vmem:[%s9 + $0x180] sm:$0xff]
    %v3438 = vld [vmem:[%s9 + $0x188] sm:$0xff]
    %v3439 = vld [vmem:[%s9 + $0x190] sm:$0xff]
    %v3440 = vld [vmem:[%s9 + $0x198] sm:$0xff]
    %v3441 = vld [vmem:[%s9 + $0x1a0] sm:$0xff]
    %v3442 = vld [vmem:[%s9 + $0x1a8] sm:$0xff]
    %v3443 = vld [vmem:[%s9 + $0x1b0] sm:$0xff]
    %v3444 = vld [vmem:[%s9 + $0x1b8] sm:$0xff]
    %v3445 = vld [vmem:[%s9 + $0x1c0] sm:$0xff]
    %v3446 = vld [vmem:[%s9 + $0x1c8] sm:$0xff]
    %v3447 = vld [vmem:[%s9 + $0x1d0] sm:$0xff]
    %v3448 = vld [vmem:[%s9 + $0x1d8] sm:$0xff]
    %v3449 = vld [vmem:[%s9 + $0x1e0] sm:$0xff]
    %v3450 = vld [vmem:[%s9 + $0x1e8] sm:$0xff]
    %v3451 = vld [vmem:[%s9 + $0x1f0] sm:$0xff]
    %v3452 = vld [vmem:[%s9 + $0x1f8] sm:$0xff]
    %v3453 = vld [vmem:[%s9 + $0x200] sm:$0xff]
    %v3454 = vld [vmem:[%s9 + $0x208] sm:$0xff]
    %v3455 = vld [vmem:[%s9 + $0x210] sm:$0xff]
    %v3456 = vld [vmem:[%s9 + $0x218] sm:$0xff]
    %v3457 = vld [vmem:[%s9 + $0x220] sm:$0xff]
    %v3458 = vld [vmem:[%s9 + $0x228] sm:$0xff]
    %v3459 = vld [vmem:[%s9 + $0x230] sm:$0xff]
    %v3460 = vld [vmem:[%s9 + $0x238] sm:$0xff]
    %v3461 = vld [vmem:[%s9 + $0x240] sm:$0xff]
    %v3462 = vld [vmem:[%s9 + $0x248] sm:$0xff]
    %v3463 = vld [vmem:[%s9 + $0x250] sm:$0xff]
    %v3464 = vld [vmem:[%s9 + $0x258] sm:$0xff]
    %v3465 = vld [vmem:[%s9 + $0x260] sm:$0xff]
    %v3466 = vld [vmem:[%s9 + $0x268] sm:$0xff]
    %v3467 = vld [vmem:[%s9 + $0x270] sm:$0xff]
    %v3468 = vld [vmem:[%s9 + $0x278] sm:$0xff]
    %v3469 = vld [vmem:[%s9 + $0x280] sm:$0xff]
    %v3470 = vld [vmem:[%s9 + $0x288] sm:$0xff]
    %v3471 = vld [vmem:[%s9 + $0x290] sm:$0xff]
    %v3472 = vld [vmem:[%s9 + $0x298] sm:$0xff]
    %v3473 = vld [vmem:[%s9 + $0x2a0] sm:$0xff]
    %v3474 = vld [vmem:[%s9 + $0x2a8] sm:$0xff]
    %v3475 = vld [vmem:[%s9 + $0x2b0] sm:$0xff]
    %v3476 = vld [vmem:[%s9 + $0x2b8] sm:$0xff]
    %v3477 = vld [vmem:[%s9 + $0x2c0] sm:$0xff]
    %v3478 = vld [vmem:[%s9 + $0x2c8] sm:$0xff]
    %v3479 = vld [vmem:[%s9 + $0x2d0] sm:$0xff]
    %v3480 = vld [vmem:[%s9 + $0x2d8] sm:$0xff]
    %v3481 = vld [vmem:[%s9 + $0x2e0] sm:$0xff]
    %v3482 = vld [vmem:[%s9 + $0x2e8] sm:$0xff]
    %v3483 = vld [vmem:[%s9 + $0x2f0] sm:$0xff]
    %v3484 = vld [vmem:[%s9 + $0x2f8] sm:$0xff]
    %v3485 = vld [vmem:[%s9 + $0x300] sm:$0xff]
    %v3486 = vld [vmem:[%s9 + $0x308] sm:$0xff]
    %v3487 = vld [vmem:[%s9 + $0x310] sm:$0xff]
    %v3488 = vld [vmem:[%s9 + $0x318] sm:$0xff]
    %v3489 = vld [vmem:[%s9 + $0x320] sm:$0xff]
    %v3490 = vld [vmem:[%s9 + $0x328] sm:$0xff]
    %v3491 = vld [vmem:[%s9 + $0x330] sm:$0xff]
    %v3492 = vld [vmem:[%s9 + $0x338] sm:$0xff]
    %v3493 = vld [vmem:[%s9 + $0x340] sm:$0xff]
    %v3494 = vld [vmem:[%s9 + $0x348] sm:$0xff]
    %v3495 = vld [vmem:[%s9 + $0x350] sm:$0xff]
    %v3496 = vld [vmem:[%s9 + $0x358] sm:$0xff]
    %v3497 = vld [vmem:[%s9 + $0x360] sm:$0xff]
    %v3498 = vld [vmem:[%s9 + $0x368] sm:$0xff]
    %v3499 = vld [vmem:[%s9 + $0x370] sm:$0xff]
    %v3500 = vld [vmem:[%s9 + $0x378] sm:$0xff]
    %v3501 = vld [vmem:[%s9 + $0x380] sm:$0xff]
    %v3502 = vld [vmem:[%s9 + $0x388] sm:$0xff]
    %v3503 = vld [vmem:[%s9 + $0x390] sm:$0xff]
    %v3504 = vld [vmem:[%s9 + $0x398] sm:$0xff]
    %v3505 = vld [vmem:[%s9 + $0x3a0] sm:$0xff]
    %v3506 = vld [vmem:[%s9 + $0x3a8] sm:$0xff]
    %v3507 = vld [vmem:[%s9 + $0x3b0] sm:$0xff]
    %v3508 = vld [vmem:[%s9 + $0x3b8] sm:$0xff]
    %v3509 = vld [vmem:[%s9 + $0x3c0] sm:$0xff]
    %v3510 = vld [vmem:[%s9 + $0x3c8] sm:$0xff]
    %v3511 = vld [vmem:[%s9 + $0x3d0] sm:$0xff]
    %v3512 = vld [vmem:[%s9 + $0x3d8] sm:$0xff]
    %v3513 = vld [vmem:[%s9 + $0x3e0] sm:$0xff]
    %v3514 = vld [vmem:[%s9 + $0x3e8] sm:$0xff]
    %v3515 = vld [vmem:[%s9 + $0x3f0] sm:$0xff]
    %v3516 = vld [vmem:[%s9 + $0x3f8] sm:$0xff]
    %v3517 = vld [vmem:[%s10] sm:$0xf]
    %v3518 = vpack.c.bf16 %v3385, %v3385
    %v3519 = vpack.c.bf16 %v3386, %v3386
    %v3520 = vpack.c.bf16 %v3387, %v3387
    %v3521 = vpack.c.bf16 %v3388, %v3388
    %v3523 = vlaneseq
    %v3524 = vshrl.u32 %v3523, 7
    %v3525 = vsub.s32 0, %v3524
    %v3526 = vrot.slane %v3517, %v3525
    %v3527 = vlaneseq
    %v3528 = vshrl.u32 %v3527, 7
    %v3529 = vsub.s32 1, %v3528
    %v3530 = vrot.slane %v3517, %v3529
    %v3531 = vlaneseq
    %v3532 = vshrl.u32 %v3531, 7
    %v3533 = vsub.s32 2, %v3532
    %v3534 = vrot.slane %v3517, %v3533
    %v3535 = vlaneseq
    %v3536 = vshrl.u32 %v3535, 7
    %v3537 = vsub.s32 3, %v3536
    %v3538 = vrot.slane %v3517, %v3537
    %v3671 = vunpack.c.l.b16 %v3389
    %v3672 = vunpack.c.h.b16 %v3389
    %v3673 = vunpack.c.l.b16 %v3390
    %v3674 = vunpack.c.h.b16 %v3390
    %v3675 = vunpack.c.l.b16 %v3391
    %v3676 = vunpack.c.h.b16 %v3391
    %v3677 = vunpack.c.l.b16 %v3392
    %v3678 = vunpack.c.h.b16 %v3392
    %v3679 = vunpack.c.l.b16 %v3393
    %v3680 = vunpack.c.h.b16 %v3393
    %v3681 = vunpack.c.l.b16 %v3394
    %v3682 = vunpack.c.h.b16 %v3394
    %v3683 = vunpack.c.l.b16 %v3395
    %v3684 = vunpack.c.h.b16 %v3395
    %v3685 = vunpack.c.l.b16 %v3396
    %v3686 = vunpack.c.h.b16 %v3396
    %v3687 = vunpack.c.l.b16 %v3397
    %v3688 = vunpack.c.h.b16 %v3397
    %v3689 = vunpack.c.l.b16 %v3398
    %v3690 = vunpack.c.h.b16 %v3398
    %v3691 = vunpack.c.l.b16 %v3399
    %v3692 = vunpack.c.h.b16 %v3399
    %v3693 = vunpack.c.l.b16 %v3400
    %v3694 = vunpack.c.h.b16 %v3400
    %v3695 = vunpack.c.l.b16 %v3401
    %v3696 = vunpack.c.h.b16 %v3401
    %v3697 = vunpack.c.l.b16 %v3402
    %v3698 = vunpack.c.h.b16 %v3402
    %v3699 = vunpack.c.l.b16 %v3403
    %v3700 = vunpack.c.h.b16 %v3403
    %v3701 = vunpack.c.l.b16 %v3404
    %v3702 = vunpack.c.h.b16 %v3404
    %v3703 = vunpack.c.l.b16 %v3405
    %v3704 = vunpack.c.h.b16 %v3405
    %v3705 = vunpack.c.l.b16 %v3406
    %v3706 = vunpack.c.h.b16 %v3406
    %v3707 = vunpack.c.l.b16 %v3407
    %v3708 = vunpack.c.h.b16 %v3407
    %v3709 = vunpack.c.l.b16 %v3408
    %v3710 = vunpack.c.h.b16 %v3408
    %v3711 = vunpack.c.l.b16 %v3409
    %v3712 = vunpack.c.h.b16 %v3409
    %v3713 = vunpack.c.l.b16 %v3410
    %v3714 = vunpack.c.h.b16 %v3410
    %v3715 = vunpack.c.l.b16 %v3411
    %v3716 = vunpack.c.h.b16 %v3411
    %v3717 = vunpack.c.l.b16 %v3412
    %v3718 = vunpack.c.h.b16 %v3412
    %v3719 = vunpack.c.l.b16 %v3413
    %v3720 = vunpack.c.h.b16 %v3413
    %v3721 = vunpack.c.l.b16 %v3414
    %v3722 = vunpack.c.h.b16 %v3414
    %v3723 = vunpack.c.l.b16 %v3415
    %v3724 = vunpack.c.h.b16 %v3415
    %v3725 = vunpack.c.l.b16 %v3416
    %v3726 = vunpack.c.h.b16 %v3416
    %v3727 = vunpack.c.l.b16 %v3417
    %v3728 = vunpack.c.h.b16 %v3417
    %v3729 = vunpack.c.l.b16 %v3418
    %v3730 = vunpack.c.h.b16 %v3418
    %v3731 = vunpack.c.l.b16 %v3419
    %v3732 = vunpack.c.h.b16 %v3419
    %v3733 = vunpack.c.l.b16 %v3420
    %v3734 = vunpack.c.h.b16 %v3420
    %v3735 = vunpack.c.l.b16 %v3421
    %v3736 = vunpack.c.h.b16 %v3421
    %v3737 = vunpack.c.l.b16 %v3422
    %v3738 = vunpack.c.h.b16 %v3422
    %v3739 = vunpack.c.l.b16 %v3423
    %v3740 = vunpack.c.h.b16 %v3423
    %v3741 = vunpack.c.l.b16 %v3424
    %v3742 = vunpack.c.h.b16 %v3424
    %v3743 = vunpack.c.l.b16 %v3425
    %v3744 = vunpack.c.h.b16 %v3425
    %v3745 = vunpack.c.l.b16 %v3426
    %v3746 = vunpack.c.h.b16 %v3426
    %v3747 = vunpack.c.l.b16 %v3427
    %v3748 = vunpack.c.h.b16 %v3427
    %v3749 = vunpack.c.l.b16 %v3428
    %v3750 = vunpack.c.h.b16 %v3428
    %v3751 = vunpack.c.l.b16 %v3429
    %v3752 = vunpack.c.h.b16 %v3429
    %v3753 = vunpack.c.l.b16 %v3430
    %v3754 = vunpack.c.h.b16 %v3430
    %v3755 = vunpack.c.l.b16 %v3431
    %v3756 = vunpack.c.h.b16 %v3431
    %v3757 = vunpack.c.l.b16 %v3432
    %v3758 = vunpack.c.h.b16 %v3432
    %v3759 = vunpack.c.l.b16 %v3433
    %v3760 = vunpack.c.h.b16 %v3433
    %v3761 = vunpack.c.l.b16 %v3434
    %v3762 = vunpack.c.h.b16 %v3434
    %v3763 = vunpack.c.l.b16 %v3435
    %v3764 = vunpack.c.h.b16 %v3435
    %v3765 = vunpack.c.l.b16 %v3436
    %v3766 = vunpack.c.h.b16 %v3436
    %v3767 = vunpack.c.l.b16 %v3437
    %v3768 = vunpack.c.h.b16 %v3437
    %v3769 = vunpack.c.l.b16 %v3438
    %v3770 = vunpack.c.h.b16 %v3438
    %v3771 = vunpack.c.l.b16 %v3439
    %v3772 = vunpack.c.h.b16 %v3439
    %v3773 = vunpack.c.l.b16 %v3440
    %v3774 = vunpack.c.h.b16 %v3440
    %v3775 = vunpack.c.l.b16 %v3441
    %v3776 = vunpack.c.h.b16 %v3441
    %v3777 = vunpack.c.l.b16 %v3442
    %v3778 = vunpack.c.h.b16 %v3442
    %v3779 = vunpack.c.l.b16 %v3443
    %v3780 = vunpack.c.h.b16 %v3443
    %v3781 = vunpack.c.l.b16 %v3444
    %v3782 = vunpack.c.h.b16 %v3444
    %v3783 = vunpack.c.l.b16 %v3445
    %v3784 = vunpack.c.h.b16 %v3445
    %v3785 = vunpack.c.l.b16 %v3446
    %v3786 = vunpack.c.h.b16 %v3446
    %v3787 = vunpack.c.l.b16 %v3447
    %v3788 = vunpack.c.h.b16 %v3447
    %v3789 = vunpack.c.l.b16 %v3448
    %v3790 = vunpack.c.h.b16 %v3448
    %v3791 = vunpack.c.l.b16 %v3449
    %v3792 = vunpack.c.h.b16 %v3449
    %v3793 = vunpack.c.l.b16 %v3450
    %v3794 = vunpack.c.h.b16 %v3450
    %v3795 = vunpack.c.l.b16 %v3451
    %v3796 = vunpack.c.h.b16 %v3451
    %v3797 = vunpack.c.l.b16 %v3452
    %v3798 = vunpack.c.h.b16 %v3452
    %v3799 = vunpack.c.l.b16 %v3453
    %v3800 = vunpack.c.h.b16 %v3453
    %v3801 = vunpack.c.l.b16 %v3454
    %v3802 = vunpack.c.h.b16 %v3454
    %v3803 = vunpack.c.l.b16 %v3455
    %v3804 = vunpack.c.h.b16 %v3455
    %v3805 = vunpack.c.l.b16 %v3456
    %v3806 = vunpack.c.h.b16 %v3456
    %v3807 = vunpack.c.l.b16 %v3457
    %v3808 = vunpack.c.h.b16 %v3457
    %v3809 = vunpack.c.l.b16 %v3458
    %v3810 = vunpack.c.h.b16 %v3458
    %v3811 = vunpack.c.l.b16 %v3459
    %v3812 = vunpack.c.h.b16 %v3459
    %v3813 = vunpack.c.l.b16 %v3460
    %v3814 = vunpack.c.h.b16 %v3460
    %v3815 = vunpack.c.l.b16 %v3461
    %v3816 = vunpack.c.h.b16 %v3461
    %v3817 = vunpack.c.l.b16 %v3462
    %v3818 = vunpack.c.h.b16 %v3462
    %v3819 = vunpack.c.l.b16 %v3463
    %v3820 = vunpack.c.h.b16 %v3463
    %v3821 = vunpack.c.l.b16 %v3464
    %v3822 = vunpack.c.h.b16 %v3464
    %v3823 = vunpack.c.l.b16 %v3465
    %v3824 = vunpack.c.h.b16 %v3465
    %v3825 = vunpack.c.l.b16 %v3466
    %v3826 = vunpack.c.h.b16 %v3466
    %v3827 = vunpack.c.l.b16 %v3467
    %v3828 = vunpack.c.h.b16 %v3467
    %v3829 = vunpack.c.l.b16 %v3468
    %v3830 = vunpack.c.h.b16 %v3468
    %v3831 = vunpack.c.l.b16 %v3469
    %v3832 = vunpack.c.h.b16 %v3469
    %v3833 = vunpack.c.l.b16 %v3470
    %v3834 = vunpack.c.h.b16 %v3470
    %v3835 = vunpack.c.l.b16 %v3471
    %v3836 = vunpack.c.h.b16 %v3471
    %v3837 = vunpack.c.l.b16 %v3472
    %v3838 = vunpack.c.h.b16 %v3472
    %v3839 = vunpack.c.l.b16 %v3473
    %v3840 = vunpack.c.h.b16 %v3473
    %v3841 = vunpack.c.l.b16 %v3474
    %v3842 = vunpack.c.h.b16 %v3474
    %v3843 = vunpack.c.l.b16 %v3475
    %v3844 = vunpack.c.h.b16 %v3475
    %v3845 = vunpack.c.l.b16 %v3476
    %v3846 = vunpack.c.h.b16 %v3476
    %v3847 = vunpack.c.l.b16 %v3477
    %v3848 = vunpack.c.h.b16 %v3477
    %v3849 = vunpack.c.l.b16 %v3478
    %v3850 = vunpack.c.h.b16 %v3478
    %v3851 = vunpack.c.l.b16 %v3479
    %v3852 = vunpack.c.h.b16 %v3479
    %v3853 = vunpack.c.l.b16 %v3480
    %v3854 = vunpack.c.h.b16 %v3480
    %v3855 = vunpack.c.l.b16 %v3481
    %v3856 = vunpack.c.h.b16 %v3481
    %v3857 = vunpack.c.l.b16 %v3482
    %v3858 = vunpack.c.h.b16 %v3482
    %v3859 = vunpack.c.l.b16 %v3483
    %v3860 = vunpack.c.h.b16 %v3483
    %v3861 = vunpack.c.l.b16 %v3484
    %v3862 = vunpack.c.h.b16 %v3484
    %v3863 = vunpack.c.l.b16 %v3485
    %v3864 = vunpack.c.h.b16 %v3485
    %v3865 = vunpack.c.l.b16 %v3486
    %v3866 = vunpack.c.h.b16 %v3486
    %v3867 = vunpack.c.l.b16 %v3487
    %v3868 = vunpack.c.h.b16 %v3487
    %v3869 = vunpack.c.l.b16 %v3488
    %v3870 = vunpack.c.h.b16 %v3488
    %v3871 = vunpack.c.l.b16 %v3489
    %v3872 = vunpack.c.h.b16 %v3489
    %v3873 = vunpack.c.l.b16 %v3490
    %v3874 = vunpack.c.h.b16 %v3490
    %v3875 = vunpack.c.l.b16 %v3491
    %v3876 = vunpack.c.h.b16 %v3491
    %v3877 = vunpack.c.l.b16 %v3492
    %v3878 = vunpack.c.h.b16 %v3492
    %v3879 = vunpack.c.l.b16 %v3493
    %v3880 = vunpack.c.h.b16 %v3493
    %v3881 = vunpack.c.l.b16 %v3494
    %v3882 = vunpack.c.h.b16 %v3494
    %v3883 = vunpack.c.l.b16 %v3495
    %v3884 = vunpack.c.h.b16 %v3495
    %v3885 = vunpack.c.l.b16 %v3496
    %v3886 = vunpack.c.h.b16 %v3496
    %v3887 = vunpack.c.l.b16 %v3497
    %v3888 = vunpack.c.h.b16 %v3497
    %v3889 = vunpack.c.l.b16 %v3498
    %v3890 = vunpack.c.h.b16 %v3498
    %v3891 = vunpack.c.l.b16 %v3499
    %v3892 = vunpack.c.h.b16 %v3499
    %v3893 = vunpack.c.l.b16 %v3500
    %v3894 = vunpack.c.h.b16 %v3500
    %v3895 = vunpack.c.l.b16 %v3501
    %v3896 = vunpack.c.h.b16 %v3501
    %v3897 = vunpack.c.l.b16 %v3502
    %v3898 = vunpack.c.h.b16 %v3502
    %v3899 = vunpack.c.l.b16 %v3503
    %v3900 = vunpack.c.h.b16 %v3503
    %v3901 = vunpack.c.l.b16 %v3504
    %v3902 = vunpack.c.h.b16 %v3504
    %v3903 = vunpack.c.l.b16 %v3505
    %v3904 = vunpack.c.h.b16 %v3505
    %v3905 = vunpack.c.l.b16 %v3506
    %v3906 = vunpack.c.h.b16 %v3506
    %v3907 = vunpack.c.l.b16 %v3507
    %v3908 = vunpack.c.h.b16 %v3507
    %v3909 = vunpack.c.l.b16 %v3508
    %v3910 = vunpack.c.h.b16 %v3508
    %v3911 = vunpack.c.l.b16 %v3509
    %v3912 = vunpack.c.h.b16 %v3509
    %v3913 = vunpack.c.l.b16 %v3510
    %v3914 = vunpack.c.h.b16 %v3510
    %v3915 = vunpack.c.l.b16 %v3511
    %v3916 = vunpack.c.h.b16 %v3511
    %v3917 = vunpack.c.l.b16 %v3512
    %v3918 = vunpack.c.h.b16 %v3512
    %v3919 = vunpack.c.l.b16 %v3513
    %v3920 = vunpack.c.h.b16 %v3513
    %v3921 = vunpack.c.l.b16 %v3514
    %v3922 = vunpack.c.h.b16 %v3514
    %v3923 = vunpack.c.l.b16 %v3515
    %v3924 = vunpack.c.h.b16 %v3515
    %v3925 = vunpack.c.l.b16 %v3516
    %v3926 = vunpack.c.h.b16 %v3516
    %v3927 = vpack.c.b16 %v3675, %v3671
    %v3928 = vpack.c.b16 %v3676, %v3672
    %v3929 = vpack.c.b16 %v3677, %v3673
    %v3930 = vpack.c.b16 %v3678, %v3674
    %v3931 = vpack.c.b16 %v3683, %v3679
    %v3932 = vpack.c.b16 %v3684, %v3680
    %v3933 = vpack.c.b16 %v3685, %v3681
    %v3934 = vpack.c.b16 %v3686, %v3682
    %v3935 = vpack.c.b16 %v3691, %v3687
    %v3936 = vpack.c.b16 %v3692, %v3688
    %v3937 = vpack.c.b16 %v3693, %v3689
    %v3938 = vpack.c.b16 %v3694, %v3690
    %v3939 = vpack.c.b16 %v3699, %v3695
    %v3940 = vpack.c.b16 %v3700, %v3696
    %v3941 = vpack.c.b16 %v3701, %v3697
    %v3942 = vpack.c.b16 %v3702, %v3698
    %v3943 = vpack.c.b16 %v3707, %v3703
    %v3944 = vpack.c.b16 %v3708, %v3704
    %v3945 = vpack.c.b16 %v3709, %v3705
    %v3946 = vpack.c.b16 %v3710, %v3706
    %v3947 = vpack.c.b16 %v3715, %v3711
    %v3948 = vpack.c.b16 %v3716, %v3712
    %v3949 = vpack.c.b16 %v3717, %v3713
    %v3950 = vpack.c.b16 %v3718, %v3714
    %v3951 = vpack.c.b16 %v3723, %v3719
    %v3952 = vpack.c.b16 %v3724, %v3720
    %v3953 = vpack.c.b16 %v3725, %v3721
    %v3954 = vpack.c.b16 %v3726, %v3722
    %v3955 = vpack.c.b16 %v3731, %v3727
    %v3956 = vpack.c.b16 %v3732, %v3728
    %v3957 = vpack.c.b16 %v3733, %v3729
    %v3958 = vpack.c.b16 %v3734, %v3730
    %v3959 = vpack.c.b16 %v3739, %v3735
    %v3960 = vpack.c.b16 %v3740, %v3736
    %v3961 = vpack.c.b16 %v3741, %v3737
    %v3962 = vpack.c.b16 %v3742, %v3738
    %v3963 = vpack.c.b16 %v3747, %v3743
    %v3964 = vpack.c.b16 %v3748, %v3744
    %v3965 = vpack.c.b16 %v3749, %v3745
    %v3966 = vpack.c.b16 %v3750, %v3746
    %v3967 = vpack.c.b16 %v3755, %v3751
    %v3968 = vpack.c.b16 %v3756, %v3752
    %v3969 = vpack.c.b16 %v3757, %v3753
    %v3970 = vpack.c.b16 %v3758, %v3754
    %v3971 = vpack.c.b16 %v3763, %v3759
    %v3972 = vpack.c.b16 %v3764, %v3760
    %v3973 = vpack.c.b16 %v3765, %v3761
    %v3974 = vpack.c.b16 %v3766, %v3762
    %v3975 = vpack.c.b16 %v3771, %v3767
    %v3976 = vpack.c.b16 %v3772, %v3768
    %v3977 = vpack.c.b16 %v3773, %v3769
    %v3978 = vpack.c.b16 %v3774, %v3770
    %v3979 = vpack.c.b16 %v3779, %v3775
    %v3980 = vpack.c.b16 %v3780, %v3776
    %v3981 = vpack.c.b16 %v3781, %v3777
    %v3982 = vpack.c.b16 %v3782, %v3778
    %v3983 = vpack.c.b16 %v3787, %v3783
    %v3984 = vpack.c.b16 %v3788, %v3784
    %v3985 = vpack.c.b16 %v3789, %v3785
    %v3986 = vpack.c.b16 %v3790, %v3786
    %v3987 = vpack.c.b16 %v3795, %v3791
    %v3988 = vpack.c.b16 %v3796, %v3792
    %v3989 = vpack.c.b16 %v3797, %v3793
    %v3990 = vpack.c.b16 %v3798, %v3794
    %v3991 = vpack.c.b16 %v3803, %v3799
    %v3992 = vpack.c.b16 %v3804, %v3800
    %v3993 = vpack.c.b16 %v3805, %v3801
    %v3994 = vpack.c.b16 %v3806, %v3802
    %v3995 = vpack.c.b16 %v3811, %v3807
    %v3996 = vpack.c.b16 %v3812, %v3808
    %v3997 = vpack.c.b16 %v3813, %v3809
    %v3998 = vpack.c.b16 %v3814, %v3810
    %v3999 = vpack.c.b16 %v3819, %v3815
    %v4000 = vpack.c.b16 %v3820, %v3816
    %v4001 = vpack.c.b16 %v3821, %v3817
    %v4002 = vpack.c.b16 %v3822, %v3818
    %v4003 = vpack.c.b16 %v3827, %v3823
    %v4004 = vpack.c.b16 %v3828, %v3824
    %v4005 = vpack.c.b16 %v3829, %v3825
    %v4006 = vpack.c.b16 %v3830, %v3826
    %v4007 = vpack.c.b16 %v3835, %v3831
    %v4008 = vpack.c.b16 %v3836, %v3832
    %v4009 = vpack.c.b16 %v3837, %v3833
    %v4010 = vpack.c.b16 %v3838, %v3834
    %v4011 = vpack.c.b16 %v3843, %v3839
    %v4012 = vpack.c.b16 %v3844, %v3840
    %v4013 = vpack.c.b16 %v3845, %v3841
    %v4014 = vpack.c.b16 %v3846, %v3842
    %v4015 = vpack.c.b16 %v3851, %v3847
    %v4016 = vpack.c.b16 %v3852, %v3848
    %v4017 = vpack.c.b16 %v3853, %v3849
    %v4018 = vpack.c.b16 %v3854, %v3850
    %v4019 = vpack.c.b16 %v3859, %v3855
    %v4020 = vpack.c.b16 %v3860, %v3856
    %v4021 = vpack.c.b16 %v3861, %v3857
    %v4022 = vpack.c.b16 %v3862, %v3858
    %v4023 = vpack.c.b16 %v3867, %v3863
    %v4024 = vpack.c.b16 %v3868, %v3864
    %v4025 = vpack.c.b16 %v3869, %v3865
    %v4026 = vpack.c.b16 %v3870, %v3866
    %v4027 = vpack.c.b16 %v3875, %v3871
    %v4028 = vpack.c.b16 %v3876, %v3872
    %v4029 = vpack.c.b16 %v3877, %v3873
    %v4030 = vpack.c.b16 %v3878, %v3874
    %v4031 = vpack.c.b16 %v3883, %v3879
    %v4032 = vpack.c.b16 %v3884, %v3880
    %v4033 = vpack.c.b16 %v3885, %v3881
    %v4034 = vpack.c.b16 %v3886, %v3882
    %v4035 = vpack.c.b16 %v3891, %v3887
    %v4036 = vpack.c.b16 %v3892, %v3888
    %v4037 = vpack.c.b16 %v3893, %v3889
    %v4038 = vpack.c.b16 %v3894, %v3890
    %v4039 = vpack.c.b16 %v3899, %v3895
    %v4040 = vpack.c.b16 %v3900, %v3896
    %v4041 = vpack.c.b16 %v3901, %v3897
    %v4042 = vpack.c.b16 %v3902, %v3898
    %v4043 = vpack.c.b16 %v3907, %v3903
    %v4044 = vpack.c.b16 %v3908, %v3904
    %v4045 = vpack.c.b16 %v3909, %v3905
    %v4046 = vpack.c.b16 %v3910, %v3906
    %v4047 = vpack.c.b16 %v3915, %v3911
    %v4048 = vpack.c.b16 %v3916, %v3912
    %v4049 = vpack.c.b16 %v3917, %v3913
    %v4050 = vpack.c.b16 %v3918, %v3914
    %v4051 = vpack.c.b16 %v3923, %v3919
    %v4052 = vpack.c.b16 %v3924, %v3920
    %v4053 = vpack.c.b16 %v3925, %v3921
    %v4054 = vpack.c.b16 %v3926, %v3922
    %4183 = vmatprep.subr.bf16.mxu0 %v3956
    %4184 = vmatpush1.bf16.msra.mxu0 %v3955
    %4185 = vmatprep.subr.bf16.mxu0 %v3952
    %4186 = vmatpush1.bf16.msra.mxu0 %v3951
    %4187 = vmatprep.subr.bf16.mxu0 %v3948
    %4188 = vmatpush1.bf16.msra.mxu0 %v3947
    %4189 = vmatprep.subr.bf16.mxu0 %v3944
    %4190 = vmatpush1.bf16.msra.mxu0 %v3943
    %4191 = vmatprep.subr.bf16.mxu0 %v3940
    %4192 = vmatpush1.bf16.msra.mxu0 %v3939
    %4193 = vmatprep.subr.bf16.mxu0 %v3936
    %4194 = vmatpush1.bf16.msra.mxu0 %v3935
    %4195 = vmatprep.subr.bf16.mxu0 %v3932
    %4196 = vmatpush1.bf16.msra.mxu0 %v3931
    %4197 = vmatprep.subr.bf16.mxu0 %v3928
    %4198 = vmatpush1.bf16.msra.mxu0 %v3927
    %4199 = vmatprep.subr.bf16.mxu0 %v3988
    %4200 = vmatpush2.bf16.msra.mxu0 %v3987
    %4201 = vmatprep.subr.bf16.mxu0 %v3984
    %4202 = vmatpush2.bf16.msra.mxu0 %v3983
    %4203 = vmatprep.subr.bf16.mxu0 %v3980
    %4204 = vmatpush2.bf16.msra.mxu0 %v3979
    %4205 = vmatprep.subr.bf16.mxu0 %v3976
    %4206 = vmatpush2.bf16.msra.mxu0 %v3975
    %4207 = vmatprep.subr.bf16.mxu0 %v3972
    %4208 = vmatpush2.bf16.msra.mxu0 %v3971
    %4209 = vmatprep.subr.bf16.mxu0 %v3968
    %4210 = vmatpush2.bf16.msra.mxu0 %v3967
    %4211 = vmatprep.subr.bf16.mxu0 %v3964
    %4212 = vmatpush2.bf16.msra.mxu0 %v3963
    %4213 = vmatprep.subr.bf16.mxu0 %v3960
    %4214 = vmatpush2.bf16.msra.mxu0 %v3959
    %4215 = vmatprep.mubr.bf16.mxu0 %v3519
    %4216 = vmatmul.mubr.bf16.gmra.mxu0 %v3518
    %v4217 = vpop.f32.mrf.mxu0
    %v4218 = vadd.f32 %v3526, %v4217
    %v4219 = vpop.f32.mrf.mxu0
    %v4220 = vadd.f32 %v3530, %v4219
    %v4221 = vpop.f32.mrf.mxu0
    %v4222 = vpop.f32.mrf.mxu0
    %4223 = vdwg.mxu0
    %4224 = vmatprep.subr.bf16.mxu0 %v4020
    %4225 = vmatpush1.bf16.msra.mxu0 %v4019
    %4226 = vmatprep.subr.bf16.mxu0 %v4016
    %4227 = vmatpush1.bf16.msra.mxu0 %v4015
    %4228 = vmatprep.subr.bf16.mxu0 %v4012
    %4229 = vmatpush1.bf16.msra.mxu0 %v4011
    %4230 = vmatprep.subr.bf16.mxu0 %v4008
    %4231 = vmatpush1.bf16.msra.mxu0 %v4007
    %4232 = vmatprep.subr.bf16.mxu0 %v4004
    %4233 = vmatpush1.bf16.msra.mxu0 %v4003
    %4234 = vmatprep.subr.bf16.mxu0 %v4000
    %4235 = vmatpush1.bf16.msra.mxu0 %v3999
    %4236 = vmatprep.subr.bf16.mxu0 %v3996
    %4237 = vmatpush1.bf16.msra.mxu0 %v3995
    %4238 = vmatprep.subr.bf16.mxu0 %v3992
    %4239 = vmatpush1.bf16.msra.mxu0 %v3991
    %4240 = vmatprep.subr.bf16.mxu0 %v4052
    %4241 = vmatpush2.bf16.msra.mxu0 %v4051
    %4242 = vmatprep.subr.bf16.mxu0 %v4048
    %4243 = vmatpush2.bf16.msra.mxu0 %v4047
    %4244 = vmatprep.subr.bf16.mxu0 %v4044
    %4245 = vmatpush2.bf16.msra.mxu0 %v4043
    %4246 = vmatprep.subr.bf16.mxu0 %v4040
    %4247 = vmatpush2.bf16.msra.mxu0 %v4039
    %4248 = vmatprep.subr.bf16.mxu0 %v4036
    %4249 = vmatpush2.bf16.msra.mxu0 %v4035
    %4250 = vmatprep.subr.bf16.mxu0 %v4032
    %4251 = vmatpush2.bf16.msra.mxu0 %v4031
    %4252 = vmatprep.subr.bf16.mxu0 %v4028
    %4253 = vmatpush2.bf16.msra.mxu0 %v4027
    %4254 = vmatprep.subr.bf16.mxu0 %v4024
    %4255 = vmatpush2.bf16.msra.mxu0 %v4023
    %4256 = vmatprep.mubr.bf16.mxu0 %v3521
    %4257 = vmatmul.mubr.bf16.gmra.mxu0 %v3520
    %v4258 = vpop.f32.mrf.mxu0
    %v4259 = vadd.f32 %v4218, %v4258
    %v4260 = vpop.f32.mrf.mxu0
    %v4261 = vadd.f32 %v4220, %v4260
    %v4262 = vpop.f32.mrf.mxu0
    %v4263 = vpop.f32.mrf.mxu0
    %4264 = vdwg.mxu0
    %4265 = vmatprep.subr.bf16.mxu0 %v3958
    %4266 = vmatpush1.bf16.msra.mxu0 %v3957
    %4267 = vmatprep.subr.bf16.mxu0 %v3954
    %4268 = vmatpush1.bf16.msra.mxu0 %v3953
    %4269 = vmatprep.subr.bf16.mxu0 %v3950
    %4270 = vmatpush1.bf16.msra.mxu0 %v3949
    %4271 = vmatprep.subr.bf16.mxu0 %v3946
    %4272 = vmatpush1.bf16.msra.mxu0 %v3945
    %4273 = vmatprep.subr.bf16.mxu0 %v3942
    %4274 = vmatpush1.bf16.msra.mxu0 %v3941
    %4275 = vmatprep.subr.bf16.mxu0 %v3938
    %4276 = vmatpush1.bf16.msra.mxu0 %v3937
    %4277 = vmatprep.subr.bf16.mxu0 %v3934
    %4278 = vmatpush1.bf16.msra.mxu0 %v3933
    %4279 = vmatprep.subr.bf16.mxu0 %v3930
    %4280 = vmatpush1.bf16.msra.mxu0 %v3929
    %4281 = vmatprep.subr.bf16.mxu0 %v3990
    %4282 = vmatpush2.bf16.msra.mxu0 %v3989
    %4283 = vmatprep.subr.bf16.mxu0 %v3986
    %4284 = vmatpush2.bf16.msra.mxu0 %v3985
    %4285 = vmatprep.subr.bf16.mxu0 %v3982
    %4286 = vmatpush2.bf16.msra.mxu0 %v3981
    %4287 = vmatprep.subr.bf16.mxu0 %v3978
    %4288 = vmatpush2.bf16.msra.mxu0 %v3977
    %4289 = vmatprep.subr.bf16.mxu0 %v3974
    %4290 = vmatpush2.bf16.msra.mxu0 %v3973
    %4291 = vmatprep.subr.bf16.mxu0 %v3970
    %4292 = vmatpush2.bf16.msra.mxu0 %v3969
    %4293 = vmatprep.subr.bf16.mxu0 %v3966
    %4294 = vmatpush2.bf16.msra.mxu0 %v3965
    %4295 = vmatprep.subr.bf16.mxu0 %v3962
    %4296 = vmatpush2.bf16.msra.mxu0 %v3961
    %4297 = vmatprep.mubr.bf16.mxu0 %v3519
    %4298 = vmatmul.mubr.bf16.gmra.mxu0 %v3518
    %v4299 = vpop.f32.mrf.mxu0
    %v4300 = vadd.f32 %v3534, %v4299
    %v4301 = vpop.f32.mrf.mxu0
    %v4302 = vadd.f32 %v3538, %v4301
    %v4303 = vpop.f32.mrf.mxu0
    %v4304 = vpop.f32.mrf.mxu0
    %4305 = vdwg.mxu0
    %4306 = vmatprep.subr.bf16.mxu0 %v4022
    %4307 = vmatpush1.bf16.msra.mxu0 %v4021
    %4308 = vmatprep.subr.bf16.mxu0 %v4018
    %4309 = vmatpush1.bf16.msra.mxu0 %v4017
    %4310 = vmatprep.subr.bf16.mxu0 %v4014
    %4311 = vmatpush1.bf16.msra.mxu0 %v4013
    %4312 = vmatprep.subr.bf16.mxu0 %v4010
    %4313 = vmatpush1.bf16.msra.mxu0 %v4009
    %4314 = vmatprep.subr.bf16.mxu0 %v4006
    %4315 = vmatpush1.bf16.msra.mxu0 %v4005
    %4316 = vmatprep.subr.bf16.mxu0 %v4002
    %4317 = vmatpush1.bf16.msra.mxu0 %v4001
    %4318 = vmatprep.subr.bf16.mxu0 %v3998
    %4319 = vmatpush1.bf16.msra.mxu0 %v3997
    %4320 = vmatprep.subr.bf16.mxu0 %v3994
    %4321 = vmatpush1.bf16.msra.mxu0 %v3993
    %4322 = vmatprep.subr.bf16.mxu0 %v4054
    %4323 = vmatpush2.bf16.msra.mxu0 %v4053
    %4324 = vmatprep.subr.bf16.mxu0 %v4050
    %4325 = vmatpush2.bf16.msra.mxu0 %v4049
    %4326 = vmatprep.subr.bf16.mxu0 %v4046
    %4327 = vmatpush2.bf16.msra.mxu0 %v4045
    %4328 = vmatprep.subr.bf16.mxu0 %v4042
    %4329 = vmatpush2.bf16.msra.mxu0 %v4041
    %4330 = vmatprep.subr.bf16.mxu0 %v4038
    %4331 = vmatpush2.bf16.msra.mxu0 %v4037
    %4332 = vmatprep.subr.bf16.mxu0 %v4034
    %4333 = vmatpush2.bf16.msra.mxu0 %v4033
    %4334 = vmatprep.subr.bf16.mxu0 %v4030
    %4335 = vmatpush2.bf16.msra.mxu0 %v4029
    %4336 = vmatprep.subr.bf16.mxu0 %v4026
    %4337 = vmatpush2.bf16.msra.mxu0 %v4025
    %4338 = vmatprep.mubr.bf16.mxu0 %v3521
    %4339 = vmatmul.mubr.bf16.gmra.mxu0 %v3520
    %v4340 = vpop.f32.mrf.mxu0
    %v4341 = vadd.f32 %v4300, %v4340
    %v4342 = vpop.f32.mrf.mxu0
    %v4343 = vadd.f32 %v4302, %v4342
    %v4344 = vpop.f32.mrf.mxu0
    %v4345 = vpop.f32.mrf.mxu0
    %4346 = vdwg.mxu0
    %v4347 = vmax.f32 %v4259, 0.0
    %v4348 = vmax.f32 %v4261, 0.0
    %v4349 = vmax.f32 %v4341, 0.0
    %v4350 = vmax.f32 %v4343, 0.0
    %v4351 = vand.u32 2147483647, %v4259
    %v4352 = vand.u32 2147483647, %v4261
    %v4353 = vand.u32 2147483647, %v4341
    %v4354 = vand.u32 2147483647, %v4343
    %v4355 = vsub.f32 0.0, %v4351
    %v4356 = vsub.f32 0.0, %v4352
    %v4357 = vsub.f32 0.0, %v4353
    %v4358 = vsub.f32 0.0, %v4354
    %v4359 = vmul.f32 %v4355, 1.442695
    %v4360 = vpow.pop %v4359
    %v4361 = vmul.f32 %v4356, 1.442695
    %v4362 = vpow.pop %v4361
    %v4363 = vmul.f32 %v4357, 1.442695
    %v4364 = vpow.pop %v4363
    %v4365 = vmul.f32 %v4358, 1.442695
    %v4366 = vpow.pop %v4365
    %v4367 = vadd.f32 %v4360, 1.0
    %v4368 = vlog2.pop %v4367
    %v4369 = vmul.f32 %v4368, 0.6931472
    %v4370 = vmul.f32 -0.5, %v4360
    %v4371 = vadd.f32 %v4370, 1.0
    %v4372 = vmul.f32 %v4371, %v4360
    %v4373 = vand.u32 2147483647, %v4360
    %vm4374 = vcmp.lt.f32.partialorder %v4373, 0.0004427343
    %v4375 = vsel %vm4374, %v4372, %v4369
    %v4376 = vadd.f32 %v4362, 1.0
    %v4377 = vlog2.pop %v4376
    %v4378 = vmul.f32 %v4377, 0.6931472
    %v4379 = vmul.f32 -0.5, %v4362
    %v4380 = vadd.f32 %v4379, 1.0
    %v4381 = vmul.f32 %v4380, %v4362
    %v4382 = vand.u32 2147483647, %v4362
    %vm4383 = vcmp.lt.f32.partialorder %v4382, 0.0004427343
    %v4384 = vsel %vm4383, %v4381, %v4378
    %v4385 = vadd.f32 %v4364, 1.0
    %v4386 = vlog2.pop %v4385
    %v4387 = vmul.f32 %v4386, 0.6931472
    %v4388 = vmul.f32 -0.5, %v4364
    %v4389 = vadd.f32 %v4388, 1.0
    %v4390 = vmul.f32 %v4389, %v4364
    %v4391 = vand.u32 2147483647, %v4364
    %vm4392 = vcmp.lt.f32.partialorder %v4391, 0.0004427343
    %v4393 = vsel %vm4392, %v4390, %v4387
    %v4394 = vadd.f32 %v4366, 1.0
    %v4395 = vlog2.pop %v4394
    %v4396 = vmul.f32 %v4395, 0.6931472
    %v4397 = vmul.f32 -0.5, %v4366
    %v4398 = vadd.f32 %v4397, 1.0
    %v4399 = vmul.f32 %v4398, %v4366
    %v4400 = vand.u32 2147483647, %v4366
    %vm4401 = vcmp.lt.f32.partialorder %v4400, 0.0004427343
    %v4402 = vsel %vm4401, %v4399, %v4396
    %v4403 = vadd.f32 %v4347, %v4375
    %v4404 = vadd.f32 %v4348, %v4384
    %v4405 = vadd.f32 %v4349, %v4393
    %v4406 = vadd.f32 %v4350, %v4402
    %v4407 = vld [vmem:[%s11] sm:$0xff]
    %v4408 = vld [vmem:[%s11 + $0x8] sm:$0xff]
    %v4409 = vld [vmem:[%s11 + $0x10] sm:$0xff]
    %v4410 = vld [vmem:[%s11 + $0x18] sm:$0xf]
    %v4411 = vld [vmem:[%s11 + $0x1c] sm:$0xff]
    %v4412 = vld [vmem:[%s11 + $0x24] sm:$0xff]
    %v4413 = vld [vmem:[%s11 + $0x2c] sm:$0xff]
    %v4414 = vld [vmem:[%s11 + $0x34] sm:$0xf]
    %v4415 = vld [vmem:[%s11 + $0x38] sm:$0xff]
    %v4416 = vld [vmem:[%s11 + $0x40] sm:$0xff]
    %v4417 = vld [vmem:[%s11 + $0x48] sm:$0xff]
    %v4418 = vld [vmem:[%s11 + $0x50] sm:$0xf]
    %v4419 = vld [vmem:[%s11 + $0x54] sm:$0xff]
    %v4420 = vld [vmem:[%s11 + $0x5c] sm:$0xff]
    %v4421 = vld [vmem:[%s11 + $0x64] sm:$0xff]
    %v4422 = vld [vmem:[%s11 + $0x6c] sm:$0xf]
    %v4423 = vld [vmem:[%s11 + $0x70] sm:$0xff]
    %v4424 = vld [vmem:[%s11 + $0x78] sm:$0xff]
    %v4425 = vld [vmem:[%s11 + $0x80] sm:$0xff]
    %v4426 = vld [vmem:[%s11 + $0x88] sm:$0xf]
    %v4427 = vld [vmem:[%s11 + $0x8c] sm:$0xff]
    %v4428 = vld [vmem:[%s11 + $0x94] sm:$0xff]
    %v4429 = vld [vmem:[%s11 + $0x9c] sm:$0xff]
    %v4430 = vld [vmem:[%s11 + $0xa4] sm:$0xf]
    %v4431 = vld [vmem:[%s11 + $0xa8] sm:$0xff]
    %v4432 = vld [vmem:[%s11 + $0xb0] sm:$0xff]
    %v4433 = vld [vmem:[%s11 + $0xb8] sm:$0xff]
    %v4434 = vld [vmem:[%s11 + $0xc0] sm:$0xf]
    %v4435 = vld [vmem:[%s11 + $0xc4] sm:$0xff]
    %v4436 = vld [vmem:[%s11 + $0xcc] sm:$0xff]
    %v4437 = vld [vmem:[%s11 + $0xd4] sm:$0xff]
    %v4438 = vld [vmem:[%s11 + $0xdc] sm:$0xf]
    %v4439 = vld [vmem:[%s11 + $0xe0] sm:$0xff]
    %v4440 = vld [vmem:[%s11 + $0xe8] sm:$0xff]
    %v4441 = vld [vmem:[%s11 + $0xf0] sm:$0xff]
    %v4442 = vld [vmem:[%s11 + $0xf8] sm:$0xf]
    %v4443 = vld [vmem:[%s11 + $0xfc] sm:$0xff]
    %v4444 = vld [vmem:[%s11 + $0x104] sm:$0xff]
    %v4445 = vld [vmem:[%s11 + $0x10c] sm:$0xff]
    %v4446 = vld [vmem:[%s11 + $0x114] sm:$0xf]
    %v4447 = vld [vmem:[%s11 + $0x118] sm:$0xff]
    %v4448 = vld [vmem:[%s11 + $0x120] sm:$0xff]
    %v4449 = vld [vmem:[%s11 + $0x128] sm:$0xff]
    %v4450 = vld [vmem:[%s11 + $0x130] sm:$0xf]
    %v4451 = vld [vmem:[%s11 + $0x134] sm:$0xff]
    %v4452 = vld [vmem:[%s11 + $0x13c] sm:$0xff]
    %v4453 = vld [vmem:[%s11 + $0x144] sm:$0xff]
    %v4454 = vld [vmem:[%s11 + $0x14c] sm:$0xf]
    %v4455 = vld [vmem:[%s11 + $0x150] sm:$0xff]
    %v4456 = vld [vmem:[%s11 + $0x158] sm:$0xff]
    %v4457 = vld [vmem:[%s11 + $0x160] sm:$0xff]
    %v4458 = vld [vmem:[%s11 + $0x168] sm:$0xf]
    %v4459 = vld [vmem:[%s11 + $0x16c] sm:$0xff]
    %v4460 = vld [vmem:[%s11 + $0x174] sm:$0xff]
    %v4461 = vld [vmem:[%s11 + $0x17c] sm:$0xff]
    %v4462 = vld [vmem:[%s11 + $0x184] sm:$0xf]
    %v4463 = vld [vmem:[%s11 + $0x188] sm:$0xff]
    %v4464 = vld [vmem:[%s11 + $0x190] sm:$0xff]
    %v4465 = vld [vmem:[%s11 + $0x198] sm:$0xff]
    %v4466 = vld [vmem:[%s11 + $0x1a0] sm:$0xf]
    %v4467 = vld [vmem:[%s11 + $0x1a4] sm:$0xff]
    %v4468 = vld [vmem:[%s11 + $0x1ac] sm:$0xff]
    %v4469 = vld [vmem:[%s11 + $0x1b4] sm:$0xff]
    %v4470 = vld [vmem:[%s11 + $0x1bc] sm:$0xf]
    %v4471 = vld [vmem:[%s11 + $0x1c0] sm:$0xff]
    %v4472 = vld [vmem:[%s11 + $0x1c8] sm:$0xff]
    %v4473 = vld [vmem:[%s11 + $0x1d0] sm:$0xff]
    %v4474 = vld [vmem:[%s11 + $0x1d8] sm:$0xf]
    %v4475 = vld [vmem:[%s11 + $0x1dc] sm:$0xff]
    %v4476 = vld [vmem:[%s11 + $0x1e4] sm:$0xff]
    %v4477 = vld [vmem:[%s11 + $0x1ec] sm:$0xff]
    %v4478 = vld [vmem:[%s11 + $0x1f4] sm:$0xf]
    %v4479 = vld [vmem:[%s11 + $0x1f8] sm:$0xff]
    %v4480 = vld [vmem:[%s11 + $0x200] sm:$0xff]
    %v4481 = vld [vmem:[%s11 + $0x208] sm:$0xff]
    %v4482 = vld [vmem:[%s11 + $0x210] sm:$0xf]
    %v4483 = vld [vmem:[%s11 + $0x214] sm:$0xff]
    %v4484 = vld [vmem:[%s11 + $0x21c] sm:$0xff]
    %v4485 = vld [vmem:[%s11 + $0x224] sm:$0xff]
    %v4486 = vld [vmem:[%s11 + $0x22c] sm:$0xf]
    %v4487 = vld [vmem:[%s11 + $0x230] sm:$0xff]
    %v4488 = vld [vmem:[%s11 + $0x238] sm:$0xff]
    %v4489 = vld [vmem:[%s11 + $0x240] sm:$0xff]
    %v4490 = vld [vmem:[%s11 + $0x248] sm:$0xf]
    %v4491 = vld [vmem:[%s11 + $0x24c] sm:$0xff]
    %v4492 = vld [vmem:[%s11 + $0x254] sm:$0xff]
    %v4493 = vld [vmem:[%s11 + $0x25c] sm:$0xff]
    %v4494 = vld [vmem:[%s11 + $0x264] sm:$0xf]
    %v4495 = vld [vmem:[%s11 + $0x268] sm:$0xff]
    %v4496 = vld [vmem:[%s11 + $0x270] sm:$0xff]
    %v4497 = vld [vmem:[%s11 + $0x278] sm:$0xff]
    %v4498 = vld [vmem:[%s11 + $0x280] sm:$0xf]
    %v4499 = vld [vmem:[%s11 + $0x284] sm:$0xff]
    %v4500 = vld [vmem:[%s11 + $0x28c] sm:$0xff]
    %v4501 = vld [vmem:[%s11 + $0x294] sm:$0xff]
    %v4502 = vld [vmem:[%s11 + $0x29c] sm:$0xf]
    %v4503 = vld [vmem:[%s11 + $0x2a0] sm:$0xff]
    %v4504 = vld [vmem:[%s11 + $0x2a8] sm:$0xff]
    %v4505 = vld [vmem:[%s11 + $0x2b0] sm:$0xff]
    %v4506 = vld [vmem:[%s11 + $0x2b8] sm:$0xf]
    %v4507 = vld [vmem:[%s11 + $0x2bc] sm:$0xff]
    %v4508 = vld [vmem:[%s11 + $0x2c4] sm:$0xff]
    %v4509 = vld [vmem:[%s11 + $0x2cc] sm:$0xff]
    %v4510 = vld [vmem:[%s11 + $0x2d4] sm:$0xf]
    %v4511 = vld [vmem:[%s11 + $0x2d8] sm:$0xff]
    %v4512 = vld [vmem:[%s11 + $0x2e0] sm:$0xff]
    %v4513 = vld [vmem:[%s11 + $0x2e8] sm:$0xff]
    %v4514 = vld [vmem:[%s11 + $0x2f0] sm:$0xf]
    %v4515 = vld [vmem:[%s11 + $0x2f4] sm:$0xff]
    %v4516 = vld [vmem:[%s11 + $0x2fc] sm:$0xff]
    %v4517 = vld [vmem:[%s11 + $0x304] sm:$0xff]
    %v4518 = vld [vmem:[%s11 + $0x30c] sm:$0xf]
    %v4519 = vld [vmem:[%s11 + $0x310] sm:$0xff]
    %v4520 = vld [vmem:[%s11 + $0x318] sm:$0xff]
    %v4521 = vld [vmem:[%s11 + $0x320] sm:$0xff]
    %v4522 = vld [vmem:[%s11 + $0x328] sm:$0xf]
    %v4523 = vld [vmem:[%s11 + $0x32c] sm:$0xff]
    %v4524 = vld [vmem:[%s11 + $0x334] sm:$0xff]
    %v4525 = vld [vmem:[%s11 + $0x33c] sm:$0xff]
    %v4526 = vld [vmem:[%s11 + $0x344] sm:$0xf]
    %v4527 = vld [vmem:[%s11 + $0x348] sm:$0xff]
    %v4528 = vld [vmem:[%s11 + $0x350] sm:$0xff]
    %v4529 = vld [vmem:[%s11 + $0x358] sm:$0xff]
    %v4530 = vld [vmem:[%s11 + $0x360] sm:$0xf]
    %v4531 = vld [vmem:[%s11 + $0x364] sm:$0xff]
    %v4532 = vld [vmem:[%s11 + $0x36c] sm:$0xff]
    %v4533 = vld [vmem:[%s11 + $0x374] sm:$0xff]
    %v4534 = vld [vmem:[%s11 + $0x37c] sm:$0xf]
    %v4535 = vld [vmem:[%s11 + $0x380] sm:$0xff]
    %v4536 = vld [vmem:[%s11 + $0x388] sm:$0xff]
    %v4537 = vld [vmem:[%s11 + $0x390] sm:$0xff]
    %v4538 = vld [vmem:[%s11 + $0x398] sm:$0xf]
    %v4539 = vld [vmem:[%s11 + $0x39c] sm:$0xff]
    %v4540 = vld [vmem:[%s11 + $0x3a4] sm:$0xff]
    %v4541 = vld [vmem:[%s11 + $0x3ac] sm:$0xff]
    %v4542 = vld [vmem:[%s11 + $0x3b4] sm:$0xf]
    %v4543 = vld [vmem:[%s11 + $0x3b8] sm:$0xff]
    %v4544 = vld [vmem:[%s11 + $0x3c0] sm:$0xff]
    %v4545 = vld [vmem:[%s11 + $0x3c8] sm:$0xff]
    %v4546 = vld [vmem:[%s11 + $0x3d0] sm:$0xf]
    %v4547 = vld [vmem:[%s11 + $0x3d4] sm:$0xff]
    %v4548 = vld [vmem:[%s11 + $0x3dc] sm:$0xff]
    %v4549 = vld [vmem:[%s11 + $0x3e4] sm:$0xff]
    %v4550 = vld [vmem:[%s11 + $0x3ec] sm:$0xf]
    %v4551 = vld [vmem:[%s11 + $0x3f0] sm:$0xff]
    %v4552 = vld [vmem:[%s11 + $0x3f8] sm:$0xff]
    %v4553 = vld [vmem:[%s11 + $0x400] sm:$0xff]
    %v4554 = vld [vmem:[%s11 + $0x408] sm:$0xf]
    %v4555 = vld [vmem:[%s11 + $0x40c] sm:$0xff]
    %v4556 = vld [vmem:[%s11 + $0x414] sm:$0xff]
    %v4557 = vld [vmem:[%s11 + $0x41c] sm:$0xff]
    %v4558 = vld [vmem:[%s11 + $0x424] sm:$0xf]
    %v4559 = vld [vmem:[%s11 + $0x428] sm:$0xff]
    %v4560 = vld [vmem:[%s11 + $0x430] sm:$0xff]
    %v4561 = vld [vmem:[%s11 + $0x438] sm:$0xff]
    %v4562 = vld [vmem:[%s11 + $0x440] sm:$0xf]
    %v4563 = vld [vmem:[%s11 + $0x444] sm:$0xff]
    %v4564 = vld [vmem:[%s11 + $0x44c] sm:$0xff]
    %v4565 = vld [vmem:[%s11 + $0x454] sm:$0xff]
    %v4566 = vld [vmem:[%s11 + $0x45c] sm:$0xf]
    %v4567 = vld [vmem:[%s11 + $0x460] sm:$0xff]
    %v4568 = vld [vmem:[%s11 + $0x468] sm:$0xff]
    %v4569 = vld [vmem:[%s11 + $0x470] sm:$0xff]
    %v4570 = vld [vmem:[%s11 + $0x478] sm:$0xf]
    %v4571 = vld [vmem:[%s11 + $0x47c] sm:$0xff]
    %v4572 = vld [vmem:[%s11 + $0x484] sm:$0xff]
    %v4573 = vld [vmem:[%s11 + $0x48c] sm:$0xff]
    %v4574 = vld [vmem:[%s11 + $0x494] sm:$0xf]
    %v4575 = vld [vmem:[%s11 + $0x498] sm:$0xff]
    %v4576 = vld [vmem:[%s11 + $0x4a0] sm:$0xff]
    %v4577 = vld [vmem:[%s11 + $0x4a8] sm:$0xff]
    %v4578 = vld [vmem:[%s11 + $0x4b0] sm:$0xf]
    %v4579 = vld [vmem:[%s11 + $0x4b4] sm:$0xff]
    %v4580 = vld [vmem:[%s11 + $0x4bc] sm:$0xff]
    %v4581 = vld [vmem:[%s11 + $0x4c4] sm:$0xff]
    %v4582 = vld [vmem:[%s11 + $0x4cc] sm:$0xf]
    %v4583 = vld [vmem:[%s11 + $0x4d0] sm:$0xff]
    %v4584 = vld [vmem:[%s11 + $0x4d8] sm:$0xff]
    %v4585 = vld [vmem:[%s11 + $0x4e0] sm:$0xff]
    %v4586 = vld [vmem:[%s11 + $0x4e8] sm:$0xf]
    %v4587 = vld [vmem:[%s11 + $0x4ec] sm:$0xff]
    %v4588 = vld [vmem:[%s11 + $0x4f4] sm:$0xff]
    %v4589 = vld [vmem:[%s11 + $0x4fc] sm:$0xff]
    %v4590 = vld [vmem:[%s11 + $0x504] sm:$0xf]
    %v4591 = vld [vmem:[%s11 + $0x508] sm:$0xff]
    %v4592 = vld [vmem:[%s11 + $0x510] sm:$0xff]
    %v4593 = vld [vmem:[%s11 + $0x518] sm:$0xff]
    %v4594 = vld [vmem:[%s11 + $0x520] sm:$0xf]
    %v4595 = vld [vmem:[%s11 + $0x524] sm:$0xff]
    %v4596 = vld [vmem:[%s11 + $0x52c] sm:$0xff]
    %v4597 = vld [vmem:[%s11 + $0x534] sm:$0xff]
    %v4598 = vld [vmem:[%s11 + $0x53c] sm:$0xf]
    %v4599 = vld [vmem:[%s11 + $0x540] sm:$0xff]
    %v4600 = vld [vmem:[%s11 + $0x548] sm:$0xff]
    %v4601 = vld [vmem:[%s11 + $0x550] sm:$0xff]
    %v4602 = vld [vmem:[%s11 + $0x558] sm:$0xf]
    %v4603 = vld [vmem:[%s11 + $0x55c] sm:$0xff]
    %v4604 = vld [vmem:[%s11 + $0x564] sm:$0xff]
    %v4605 = vld [vmem:[%s11 + $0x56c] sm:$0xff]
    %v4606 = vld [vmem:[%s11 + $0x574] sm:$0xf]
    %v4607 = vld [vmem:[%s11 + $0x578] sm:$0xff]
    %v4608 = vld [vmem:[%s11 + $0x580] sm:$0xff]
    %v4609 = vld [vmem:[%s11 + $0x588] sm:$0xff]
    %v4610 = vld [vmem:[%s11 + $0x590] sm:$0xf]
    %v4611 = vld [vmem:[%s11 + $0x594] sm:$0xff]
    %v4612 = vld [vmem:[%s11 + $0x59c] sm:$0xff]
    %v4613 = vld [vmem:[%s11 + $0x5a4] sm:$0xff]
    %v4614 = vld [vmem:[%s11 + $0x5ac] sm:$0xf]
    %v4615 = vld [vmem:[%s11 + $0x5b0] sm:$0xff]
    %v4616 = vld [vmem:[%s11 + $0x5b8] sm:$0xff]
    %v4617 = vld [vmem:[%s11 + $0x5c0] sm:$0xff]
    %v4618 = vld [vmem:[%s11 + $0x5c8] sm:$0xf]
    %v4619 = vld [vmem:[%s11 + $0x5cc] sm:$0xff]
    %v4620 = vld [vmem:[%s11 + $0x5d4] sm:$0xff]
    %v4621 = vld [vmem:[%s11 + $0x5dc] sm:$0xff]
    %v4622 = vld [vmem:[%s11 + $0x5e4] sm:$0xf]
    %v4623 = vld [vmem:[%s11 + $0x5e8] sm:$0xff]
    %v4624 = vld [vmem:[%s11 + $0x5f0] sm:$0xff]
    %v4625 = vld [vmem:[%s11 + $0x5f8] sm:$0xff]
    %v4626 = vld [vmem:[%s11 + $0x600] sm:$0xf]
    %v4627 = vld [vmem:[%s11 + $0x604] sm:$0xff]
    %v4628 = vld [vmem:[%s11 + $0x60c] sm:$0xff]
    %v4629 = vld [vmem:[%s11 + $0x614] sm:$0xff]
    %v4630 = vld [vmem:[%s11 + $0x61c] sm:$0xf]
    %v4631 = vld [vmem:[%s11 + $0x620] sm:$0xff]
    %v4632 = vld [vmem:[%s11 + $0x628] sm:$0xff]
    %v4633 = vld [vmem:[%s11 + $0x630] sm:$0xff]
    %v4634 = vld [vmem:[%s11 + $0x638] sm:$0xf]
    %v4635 = vld [vmem:[%s11 + $0x63c] sm:$0xff]
    %v4636 = vld [vmem:[%s11 + $0x644] sm:$0xff]
    %v4637 = vld [vmem:[%s11 + $0x64c] sm:$0xff]
    %v4638 = vld [vmem:[%s11 + $0x654] sm:$0xf]
    %v4639 = vld [vmem:[%s11 + $0x658] sm:$0xff]
    %v4640 = vld [vmem:[%s11 + $0x660] sm:$0xff]
    %v4641 = vld [vmem:[%s11 + $0x668] sm:$0xff]
    %v4642 = vld [vmem:[%s11 + $0x670] sm:$0xf]
    %v4643 = vld [vmem:[%s11 + $0x674] sm:$0xff]
    %v4644 = vld [vmem:[%s11 + $0x67c] sm:$0xff]
    %v4645 = vld [vmem:[%s11 + $0x684] sm:$0xff]
    %v4646 = vld [vmem:[%s11 + $0x68c] sm:$0xf]
    %v4647 = vld [vmem:[%s11 + $0x690] sm:$0xff]
    %v4648 = vld [vmem:[%s11 + $0x698] sm:$0xff]
    %v4649 = vld [vmem:[%s11 + $0x6a0] sm:$0xff]
    %v4650 = vld [vmem:[%s11 + $0x6a8] sm:$0xf]
    %v4651 = vld [vmem:[%s11 + $0x6ac] sm:$0xff]
    %v4652 = vld [vmem:[%s11 + $0x6b4] sm:$0xff]
    %v4653 = vld [vmem:[%s11 + $0x6bc] sm:$0xff]
    %v4654 = vld [vmem:[%s11 + $0x6c4] sm:$0xf]
    %v4655 = vld [vmem:[%s11 + $0x6c8] sm:$0xff]
    %v4656 = vld [vmem:[%s11 + $0x6d0] sm:$0xff]
    %v4657 = vld [vmem:[%s11 + $0x6d8] sm:$0xff]
    %v4658 = vld [vmem:[%s11 + $0x6e0] sm:$0xf]
    %v4659 = vld [vmem:[%s11 + $0x6e4] sm:$0xff]
    %v4660 = vld [vmem:[%s11 + $0x6ec] sm:$0xff]
    %v4661 = vld [vmem:[%s11 + $0x6f4] sm:$0xff]
    %v4662 = vld [vmem:[%s11 + $0x6fc] sm:$0xf]
    %v4663 = vld [vmem:[%s12] sm:$0x7f]
    %v4664 = vpack.c.bf16 %v4403, %v4403
    %v4665 = vpack.c.bf16 %v4404, %v4404
    %v4666 = vpack.c.bf16 %v4405, %v4405
    %v4667 = vpack.c.bf16 %v4406, %v4406
    %v4669 = vlaneseq
    %v4670 = vshrl.u32 %v4669, 7
    %v4671 = vsub.s32 0, %v4670
    %v4672 = vrot.slane %v4663, %v4671
    %v4673 = vlaneseq
    %v4674 = vshrl.u32 %v4673, 7
    %v4675 = vsub.s32 1, %v4674
    %v4676 = vrot.slane %v4663, %v4675
    %v4677 = vlaneseq
    %v4678 = vshrl.u32 %v4677, 7
    %v4679 = vsub.s32 2, %v4678
    %v4680 = vrot.slane %v4663, %v4679
    %v4681 = vlaneseq
    %v4682 = vshrl.u32 %v4681, 7
    %v4683 = vsub.s32 3, %v4682
    %v4684 = vrot.slane %v4663, %v4683
    %v4685 = vlaneseq
    %v4686 = vshrl.u32 %v4685, 7
    %v4687 = vsub.s32 4, %v4686
    %v4688 = vrot.slane %v4663, %v4687
    %v4689 = vlaneseq
    %v4690 = vshrl.u32 %v4689, 7
    %v4691 = vsub.s32 5, %v4690
    %v4692 = vrot.slane %v4663, %v4691
    %v4693 = vlaneseq
    %v4694 = vshrl.u32 %v4693, 7
    %v4695 = vsub.s32 6, %v4694
    %v4696 = vrot.slane %v4663, %v4695
    %v4960 = vunpack.c.l.b16 %v4407
    %v4961 = vunpack.c.h.b16 %v4407
    %v4962 = vunpack.c.l.b16 %v4408
    %v4963 = vunpack.c.h.b16 %v4408
    %v4964 = vunpack.c.l.b16 %v4409
    %v4965 = vunpack.c.h.b16 %v4409
    %v4966 = vunpack.c.l.b16 %v4410
    %v4967 = vunpack.c.l.b16 %v4411
    %v4968 = vunpack.c.h.b16 %v4411
    %v4969 = vunpack.c.l.b16 %v4412
    %v4970 = vunpack.c.h.b16 %v4412
    %v4971 = vunpack.c.l.b16 %v4413
    %v4972 = vunpack.c.h.b16 %v4413
    %v4973 = vunpack.c.l.b16 %v4414
    %v4974 = vunpack.c.l.b16 %v4415
    %v4975 = vunpack.c.h.b16 %v4415
    %v4976 = vunpack.c.l.b16 %v4416
    %v4977 = vunpack.c.h.b16 %v4416
    %v4978 = vunpack.c.l.b16 %v4417
    %v4979 = vunpack.c.h.b16 %v4417
    %v4980 = vunpack.c.l.b16 %v4418
    %v4981 = vunpack.c.l.b16 %v4419
    %v4982 = vunpack.c.h.b16 %v4419
    %v4983 = vunpack.c.l.b16 %v4420
    %v4984 = vunpack.c.h.b16 %v4420
    %v4985 = vunpack.c.l.b16 %v4421
    %v4986 = vunpack.c.h.b16 %v4421
    %v4987 = vunpack.c.l.b16 %v4422
    %v4988 = vunpack.c.l.b16 %v4423
    %v4989 = vunpack.c.h.b16 %v4423
    %v4990 = vunpack.c.l.b16 %v4424
    %v4991 = vunpack.c.h.b16 %v4424
    %v4992 = vunpack.c.l.b16 %v4425
    %v4993 = vunpack.c.h.b16 %v4425
    %v4994 = vunpack.c.l.b16 %v4426
    %v4995 = vunpack.c.l.b16 %v4427
    %v4996 = vunpack.c.h.b16 %v4427
    %v4997 = vunpack.c.l.b16 %v4428
    %v4998 = vunpack.c.h.b16 %v4428
    %v4999 = vunpack.c.l.b16 %v4429
    %v5000 = vunpack.c.h.b16 %v4429
    %v5001 = vunpack.c.l.b16 %v4430
    %v5002 = vunpack.c.l.b16 %v4431
    %v5003 = vunpack.c.h.b16 %v4431
    %v5004 = vunpack.c.l.b16 %v4432
    %v5005 = vunpack.c.h.b16 %v4432
    %v5006 = vunpack.c.l.b16 %v4433
    %v5007 = vunpack.c.h.b16 %v4433
    %v5008 = vunpack.c.l.b16 %v4434
    %v5009 = vunpack.c.l.b16 %v4435
    %v5010 = vunpack.c.h.b16 %v4435
    %v5011 = vunpack.c.l.b16 %v4436
    %v5012 = vunpack.c.h.b16 %v4436
    %v5013 = vunpack.c.l.b16 %v4437
    %v5014 = vunpack.c.h.b16 %v4437
    %v5015 = vunpack.c.l.b16 %v4438
    %v5016 = vunpack.c.l.b16 %v4439
    %v5017 = vunpack.c.h.b16 %v4439
    %v5018 = vunpack.c.l.b16 %v4440
    %v5019 = vunpack.c.h.b16 %v4440
    %v5020 = vunpack.c.l.b16 %v4441
    %v5021 = vunpack.c.h.b16 %v4441
    %v5022 = vunpack.c.l.b16 %v4442
    %v5023 = vunpack.c.l.b16 %v4443
    %v5024 = vunpack.c.h.b16 %v4443
    %v5025 = vunpack.c.l.b16 %v4444
    %v5026 = vunpack.c.h.b16 %v4444
    %v5027 = vunpack.c.l.b16 %v4445
    %v5028 = vunpack.c.h.b16 %v4445
    %v5029 = vunpack.c.l.b16 %v4446
    %v5030 = vunpack.c.l.b16 %v4447
    %v5031 = vunpack.c.h.b16 %v4447
    %v5032 = vunpack.c.l.b16 %v4448
    %v5033 = vunpack.c.h.b16 %v4448
    %v5034 = vunpack.c.l.b16 %v4449
    %v5035 = vunpack.c.h.b16 %v4449
    %v5036 = vunpack.c.l.b16 %v4450
    %v5037 = vunpack.c.l.b16 %v4451
    %v5038 = vunpack.c.h.b16 %v4451
    %v5039 = vunpack.c.l.b16 %v4452
    %v5040 = vunpack.c.h.b16 %v4452
    %v5041 = vunpack.c.l.b16 %v4453
    %v5042 = vunpack.c.h.b16 %v4453
    %v5043 = vunpack.c.l.b16 %v4454
    %v5044 = vunpack.c.l.b16 %v4455
    %v5045 = vunpack.c.h.b16 %v4455
    %v5046 = vunpack.c.l.b16 %v4456
    %v5047 = vunpack.c.h.b16 %v4456
    %v5048 = vunpack.c.l.b16 %v4457
    %v5049 = vunpack.c.h.b16 %v4457
    %v5050 = vunpack.c.l.b16 %v4458
    %v5051 = vunpack.c.l.b16 %v4459
    %v5052 = vunpack.c.h.b16 %v4459
    %v5053 = vunpack.c.l.b16 %v4460
    %v5054 = vunpack.c.h.b16 %v4460
    %v5055 = vunpack.c.l.b16 %v4461
    %v5056 = vunpack.c.h.b16 %v4461
    %v5057 = vunpack.c.l.b16 %v4462
    %v5058 = vunpack.c.l.b16 %v4463
    %v5059 = vunpack.c.h.b16 %v4463
    %v5060 = vunpack.c.l.b16 %v4464
    %v5061 = vunpack.c.h.b16 %v4464
    %v5062 = vunpack.c.l.b16 %v4465
    %v5063 = vunpack.c.h.b16 %v4465
    %v5064 = vunpack.c.l.b16 %v4466
    %v5065 = vunpack.c.l.b16 %v4467
    %v5066 = vunpack.c.h.b16 %v4467
    %v5067 = vunpack.c.l.b16 %v4468
    %v5068 = vunpack.c.h.b16 %v4468
    %v5069 = vunpack.c.l.b16 %v4469
    %v5070 = vunpack.c.h.b16 %v4469
    %v5071 = vunpack.c.l.b16 %v4470
    %v5072 = vunpack.c.l.b16 %v4471
    %v5073 = vunpack.c.h.b16 %v4471
    %v5074 = vunpack.c.l.b16 %v4472
    %v5075 = vunpack.c.h.b16 %v4472
    %v5076 = vunpack.c.l.b16 %v4473
    %v5077 = vunpack.c.h.b16 %v4473
    %v5078 = vunpack.c.l.b16 %v4474
    %v5079 = vunpack.c.l.b16 %v4475
    %v5080 = vunpack.c.h.b16 %v4475
    %v5081 = vunpack.c.l.b16 %v4476
    %v5082 = vunpack.c.h.b16 %v4476
    %v5083 = vunpack.c.l.b16 %v4477
    %v5084 = vunpack.c.h.b16 %v4477
    %v5085 = vunpack.c.l.b16 %v4478
    %v5086 = vunpack.c.l.b16 %v4479
    %v5087 = vunpack.c.h.b16 %v4479
    %v5088 = vunpack.c.l.b16 %v4480
    %v5089 = vunpack.c.h.b16 %v4480
    %v5090 = vunpack.c.l.b16 %v4481
    %v5091 = vunpack.c.h.b16 %v4481
    %v5092 = vunpack.c.l.b16 %v4482
    %v5093 = vunpack.c.l.b16 %v4483
    %v5094 = vunpack.c.h.b16 %v4483
    %v5095 = vunpack.c.l.b16 %v4484
    %v5096 = vunpack.c.h.b16 %v4484
    %v5097 = vunpack.c.l.b16 %v4485
    %v5098 = vunpack.c.h.b16 %v4485
    %v5099 = vunpack.c.l.b16 %v4486
    %v5100 = vunpack.c.l.b16 %v4487
    %v5101 = vunpack.c.h.b16 %v4487
    %v5102 = vunpack.c.l.b16 %v4488
    %v5103 = vunpack.c.h.b16 %v4488
    %v5104 = vunpack.c.l.b16 %v4489
    %v5105 = vunpack.c.h.b16 %v4489
    %v5106 = vunpack.c.l.b16 %v4490
    %v5107 = vunpack.c.l.b16 %v4491
    %v5108 = vunpack.c.h.b16 %v4491
    %v5109 = vunpack.c.l.b16 %v4492
    %v5110 = vunpack.c.h.b16 %v4492
    %v5111 = vunpack.c.l.b16 %v4493
    %v5112 = vunpack.c.h.b16 %v4493
    %v5113 = vunpack.c.l.b16 %v4494
    %v5114 = vunpack.c.l.b16 %v4495
    %v5115 = vunpack.c.h.b16 %v4495
    %v5116 = vunpack.c.l.b16 %v4496
    %v5117 = vunpack.c.h.b16 %v4496
    %v5118 = vunpack.c.l.b16 %v4497
    %v5119 = vunpack.c.h.b16 %v4497
    %v5120 = vunpack.c.l.b16 %v4498
    %v5121 = vunpack.c.l.b16 %v4499
    %v5122 = vunpack.c.h.b16 %v4499
    %v5123 = vunpack.c.l.b16 %v4500
    %v5124 = vunpack.c.h.b16 %v4500
    %v5125 = vunpack.c.l.b16 %v4501
    %v5126 = vunpack.c.h.b16 %v4501
    %v5127 = vunpack.c.l.b16 %v4502
    %v5128 = vunpack.c.l.b16 %v4503
    %v5129 = vunpack.c.h.b16 %v4503
    %v5130 = vunpack.c.l.b16 %v4504
    %v5131 = vunpack.c.h.b16 %v4504
    %v5132 = vunpack.c.l.b16 %v4505
    %v5133 = vunpack.c.h.b16 %v4505
    %v5134 = vunpack.c.l.b16 %v4506
    %v5135 = vunpack.c.l.b16 %v4507
    %v5136 = vunpack.c.h.b16 %v4507
    %v5137 = vunpack.c.l.b16 %v4508
    %v5138 = vunpack.c.h.b16 %v4508
    %v5139 = vunpack.c.l.b16 %v4509
    %v5140 = vunpack.c.h.b16 %v4509
    %v5141 = vunpack.c.l.b16 %v4510
    %v5142 = vunpack.c.l.b16 %v4511
    %v5143 = vunpack.c.h.b16 %v4511
    %v5144 = vunpack.c.l.b16 %v4512
    %v5145 = vunpack.c.h.b16 %v4512
    %v5146 = vunpack.c.l.b16 %v4513
    %v5147 = vunpack.c.h.b16 %v4513
    %v5148 = vunpack.c.l.b16 %v4514
    %v5149 = vunpack.c.l.b16 %v4515
    %v5150 = vunpack.c.h.b16 %v4515
    %v5151 = vunpack.c.l.b16 %v4516
    %v5152 = vunpack.c.h.b16 %v4516
    %v5153 = vunpack.c.l.b16 %v4517
    %v5154 = vunpack.c.h.b16 %v4517
    %v5155 = vunpack.c.l.b16 %v4518
    %v5156 = vunpack.c.l.b16 %v4519
    %v5157 = vunpack.c.h.b16 %v4519
    %v5158 = vunpack.c.l.b16 %v4520
    %v5159 = vunpack.c.h.b16 %v4520
    %v5160 = vunpack.c.l.b16 %v4521
    %v5161 = vunpack.c.h.b16 %v4521
    %v5162 = vunpack.c.l.b16 %v4522
    %v5163 = vunpack.c.l.b16 %v4523
    %v5164 = vunpack.c.h.b16 %v4523
    %v5165 = vunpack.c.l.b16 %v4524
    %v5166 = vunpack.c.h.b16 %v4524
    %v5167 = vunpack.c.l.b16 %v4525
    %v5168 = vunpack.c.h.b16 %v4525
    %v5169 = vunpack.c.l.b16 %v4526
    %v5170 = vunpack.c.l.b16 %v4527
    %v5171 = vunpack.c.h.b16 %v4527
    %v5172 = vunpack.c.l.b16 %v4528
    %v5173 = vunpack.c.h.b16 %v4528
    %v5174 = vunpack.c.l.b16 %v4529
    %v5175 = vunpack.c.h.b16 %v4529
    %v5176 = vunpack.c.l.b16 %v4530
    %v5177 = vunpack.c.l.b16 %v4531
    %v5178 = vunpack.c.h.b16 %v4531
    %v5179 = vunpack.c.l.b16 %v4532
    %v5180 = vunpack.c.h.b16 %v4532
    %v5181 = vunpack.c.l.b16 %v4533
    %v5182 = vunpack.c.h.b16 %v4533
    %v5183 = vunpack.c.l.b16 %v4534
    %v5184 = vunpack.c.l.b16 %v4535
    %v5185 = vunpack.c.h.b16 %v4535
    %v5186 = vunpack.c.l.b16 %v4536
    %v5187 = vunpack.c.h.b16 %v4536
    %v5188 = vunpack.c.l.b16 %v4537
    %v5189 = vunpack.c.h.b16 %v4537
    %v5190 = vunpack.c.l.b16 %v4538
    %v5191 = vunpack.c.l.b16 %v4539
    %v5192 = vunpack.c.h.b16 %v4539
    %v5193 = vunpack.c.l.b16 %v4540
    %v5194 = vunpack.c.h.b16 %v4540
    %v5195 = vunpack.c.l.b16 %v4541
    %v5196 = vunpack.c.h.b16 %v4541
    %v5197 = vunpack.c.l.b16 %v4542
    %v5198 = vunpack.c.l.b16 %v4543
    %v5199 = vunpack.c.h.b16 %v4543
    %v5200 = vunpack.c.l.b16 %v4544
    %v5201 = vunpack.c.h.b16 %v4544
    %v5202 = vunpack.c.l.b16 %v4545
    %v5203 = vunpack.c.h.b16 %v4545
    %v5204 = vunpack.c.l.b16 %v4546
    %v5205 = vunpack.c.l.b16 %v4547
    %v5206 = vunpack.c.h.b16 %v4547
    %v5207 = vunpack.c.l.b16 %v4548
    %v5208 = vunpack.c.h.b16 %v4548
    %v5209 = vunpack.c.l.b16 %v4549
    %v5210 = vunpack.c.h.b16 %v4549
    %v5211 = vunpack.c.l.b16 %v4550
    %v5212 = vunpack.c.l.b16 %v4551
    %v5213 = vunpack.c.h.b16 %v4551
    %v5214 = vunpack.c.l.b16 %v4552
    %v5215 = vunpack.c.h.b16 %v4552
    %v5216 = vunpack.c.l.b16 %v4553
    %v5217 = vunpack.c.h.b16 %v4553
    %v5218 = vunpack.c.l.b16 %v4554
    %v5219 = vunpack.c.l.b16 %v4555
    %v5220 = vunpack.c.h.b16 %v4555
    %v5221 = vunpack.c.l.b16 %v4556
    %v5222 = vunpack.c.h.b16 %v4556
    %v5223 = vunpack.c.l.b16 %v4557
    %v5224 = vunpack.c.h.b16 %v4557
    %v5225 = vunpack.c.l.b16 %v4558
    %v5226 = vunpack.c.l.b16 %v4559
    %v5227 = vunpack.c.h.b16 %v4559
    %v5228 = vunpack.c.l.b16 %v4560
    %v5229 = vunpack.c.h.b16 %v4560
    %v5230 = vunpack.c.l.b16 %v4561
    %v5231 = vunpack.c.h.b16 %v4561
    %v5232 = vunpack.c.l.b16 %v4562
    %v5233 = vunpack.c.l.b16 %v4563
    %v5234 = vunpack.c.h.b16 %v4563
    %v5235 = vunpack.c.l.b16 %v4564
    %v5236 = vunpack.c.h.b16 %v4564
    %v5237 = vunpack.c.l.b16 %v4565
    %v5238 = vunpack.c.h.b16 %v4565
    %v5239 = vunpack.c.l.b16 %v4566
    %v5240 = vunpack.c.l.b16 %v4567
    %v5241 = vunpack.c.h.b16 %v4567
    %v5242 = vunpack.c.l.b16 %v4568
    %v5243 = vunpack.c.h.b16 %v4568
    %v5244 = vunpack.c.l.b16 %v4569
    %v5245 = vunpack.c.h.b16 %v4569
    %v5246 = vunpack.c.l.b16 %v4570
    %v5247 = vunpack.c.l.b16 %v4571
    %v5248 = vunpack.c.h.b16 %v4571
    %v5249 = vunpack.c.l.b16 %v4572
    %v5250 = vunpack.c.h.b16 %v4572
    %v5251 = vunpack.c.l.b16 %v4573
    %v5252 = vunpack.c.h.b16 %v4573
    %v5253 = vunpack.c.l.b16 %v4574
    %v5254 = vunpack.c.l.b16 %v4575
    %v5255 = vunpack.c.h.b16 %v4575
    %v5256 = vunpack.c.l.b16 %v4576
    %v5257 = vunpack.c.h.b16 %v4576
    %v5258 = vunpack.c.l.b16 %v4577
    %v5259 = vunpack.c.h.b16 %v4577
    %v5260 = vunpack.c.l.b16 %v4578
    %v5261 = vunpack.c.l.b16 %v4579
    %v5262 = vunpack.c.h.b16 %v4579
    %v5263 = vunpack.c.l.b16 %v4580
    %v5264 = vunpack.c.h.b16 %v4580
    %v5265 = vunpack.c.l.b16 %v4581
    %v5266 = vunpack.c.h.b16 %v4581
    %v5267 = vunpack.c.l.b16 %v4582
    %v5268 = vunpack.c.l.b16 %v4583
    %v5269 = vunpack.c.h.b16 %v4583
    %v5270 = vunpack.c.l.b16 %v4584
    %v5271 = vunpack.c.h.b16 %v4584
    %v5272 = vunpack.c.l.b16 %v4585
    %v5273 = vunpack.c.h.b16 %v4585
    %v5274 = vunpack.c.l.b16 %v4586
    %v5275 = vunpack.c.l.b16 %v4587
    %v5276 = vunpack.c.h.b16 %v4587
    %v5277 = vunpack.c.l.b16 %v4588
    %v5278 = vunpack.c.h.b16 %v4588
    %v5279 = vunpack.c.l.b16 %v4589
    %v5280 = vunpack.c.h.b16 %v4589
    %v5281 = vunpack.c.l.b16 %v4590
    %v5282 = vunpack.c.l.b16 %v4591
    %v5283 = vunpack.c.h.b16 %v4591
    %v5284 = vunpack.c.l.b16 %v4592
    %v5285 = vunpack.c.h.b16 %v4592
    %v5286 = vunpack.c.l.b16 %v4593
    %v5287 = vunpack.c.h.b16 %v4593
    %v5288 = vunpack.c.l.b16 %v4594
    %v5289 = vunpack.c.l.b16 %v4595
    %v5290 = vunpack.c.h.b16 %v4595
    %v5291 = vunpack.c.l.b16 %v4596
    %v5292 = vunpack.c.h.b16 %v4596
    %v5293 = vunpack.c.l.b16 %v4597
    %v5294 = vunpack.c.h.b16 %v4597
    %v5295 = vunpack.c.l.b16 %v4598
    %v5296 = vunpack.c.l.b16 %v4599
    %v5297 = vunpack.c.h.b16 %v4599
    %v5298 = vunpack.c.l.b16 %v4600
    %v5299 = vunpack.c.h.b16 %v4600
    %v5300 = vunpack.c.l.b16 %v4601
    %v5301 = vunpack.c.h.b16 %v4601
    %v5302 = vunpack.c.l.b16 %v4602
    %v5303 = vunpack.c.l.b16 %v4603
    %v5304 = vunpack.c.h.b16 %v4603
    %v5305 = vunpack.c.l.b16 %v4604
    %v5306 = vunpack.c.h.b16 %v4604
    %v5307 = vunpack.c.l.b16 %v4605
    %v5308 = vunpack.c.h.b16 %v4605
    %v5309 = vunpack.c.l.b16 %v4606
    %v5310 = vunpack.c.l.b16 %v4607
    %v5311 = vunpack.c.h.b16 %v4607
    %v5312 = vunpack.c.l.b16 %v4608
    %v5313 = vunpack.c.h.b16 %v4608
    %v5314 = vunpack.c.l.b16 %v4609
    %v5315 = vunpack.c.h.b16 %v4609
    %v5316 = vunpack.c.l.b16 %v4610
    %v5317 = vunpack.c.l.b16 %v4611
    %v5318 = vunpack.c.h.b16 %v4611
    %v5319 = vunpack.c.l.b16 %v4612
    %v5320 = vunpack.c.h.b16 %v4612
    %v5321 = vunpack.c.l.b16 %v4613
    %v5322 = vunpack.c.h.b16 %v4613
    %v5323 = vunpack.c.l.b16 %v4614
    %v5324 = vunpack.c.l.b16 %v4615
    %v5325 = vunpack.c.h.b16 %v4615
    %v5326 = vunpack.c.l.b16 %v4616
    %v5327 = vunpack.c.h.b16 %v4616
    %v5328 = vunpack.c.l.b16 %v4617
    %v5329 = vunpack.c.h.b16 %v4617
    %v5330 = vunpack.c.l.b16 %v4618
    %v5331 = vunpack.c.l.b16 %v4619
    %v5332 = vunpack.c.h.b16 %v4619
    %v5333 = vunpack.c.l.b16 %v4620
    %v5334 = vunpack.c.h.b16 %v4620
    %v5335 = vunpack.c.l.b16 %v4621
    %v5336 = vunpack.c.h.b16 %v4621
    %v5337 = vunpack.c.l.b16 %v4622
    %v5338 = vunpack.c.l.b16 %v4623
    %v5339 = vunpack.c.h.b16 %v4623
    %v5340 = vunpack.c.l.b16 %v4624
    %v5341 = vunpack.c.h.b16 %v4624
    %v5342 = vunpack.c.l.b16 %v4625
    %v5343 = vunpack.c.h.b16 %v4625
    %v5344 = vunpack.c.l.b16 %v4626
    %v5345 = vunpack.c.l.b16 %v4627
    %v5346 = vunpack.c.h.b16 %v4627
    %v5347 = vunpack.c.l.b16 %v4628
    %v5348 = vunpack.c.h.b16 %v4628
    %v5349 = vunpack.c.l.b16 %v4629
    %v5350 = vunpack.c.h.b16 %v4629
    %v5351 = vunpack.c.l.b16 %v4630
    %v5352 = vunpack.c.l.b16 %v4631
    %v5353 = vunpack.c.h.b16 %v4631
    %v5354 = vunpack.c.l.b16 %v4632
    %v5355 = vunpack.c.h.b16 %v4632
    %v5356 = vunpack.c.l.b16 %v4633
    %v5357 = vunpack.c.h.b16 %v4633
    %v5358 = vunpack.c.l.b16 %v4634
    %v5359 = vunpack.c.l.b16 %v4635
    %v5360 = vunpack.c.h.b16 %v4635
    %v5361 = vunpack.c.l.b16 %v4636
    %v5362 = vunpack.c.h.b16 %v4636
    %v5363 = vunpack.c.l.b16 %v4637
    %v5364 = vunpack.c.h.b16 %v4637
    %v5365 = vunpack.c.l.b16 %v4638
    %v5366 = vunpack.c.l.b16 %v4639
    %v5367 = vunpack.c.h.b16 %v4639
    %v5368 = vunpack.c.l.b16 %v4640
    %v5369 = vunpack.c.h.b16 %v4640
    %v5370 = vunpack.c.l.b16 %v4641
    %v5371 = vunpack.c.h.b16 %v4641
    %v5372 = vunpack.c.l.b16 %v4642
    %v5373 = vunpack.c.l.b16 %v4643
    %v5374 = vunpack.c.h.b16 %v4643
    %v5375 = vunpack.c.l.b16 %v4644
    %v5376 = vunpack.c.h.b16 %v4644
    %v5377 = vunpack.c.l.b16 %v4645
    %v5378 = vunpack.c.h.b16 %v4645
    %v5379 = vunpack.c.l.b16 %v4646
    %v5380 = vunpack.c.l.b16 %v4647
    %v5381 = vunpack.c.h.b16 %v4647
    %v5382 = vunpack.c.l.b16 %v4648
    %v5383 = vunpack.c.h.b16 %v4648
    %v5384 = vunpack.c.l.b16 %v4649
    %v5385 = vunpack.c.h.b16 %v4649
    %v5386 = vunpack.c.l.b16 %v4650
    %v5387 = vunpack.c.l.b16 %v4651
    %v5388 = vunpack.c.h.b16 %v4651
    %v5389 = vunpack.c.l.b16 %v4652
    %v5390 = vunpack.c.h.b16 %v4652
    %v5391 = vunpack.c.l.b16 %v4653
    %v5392 = vunpack.c.h.b16 %v4653
    %v5393 = vunpack.c.l.b16 %v4654
    %v5394 = vunpack.c.l.b16 %v4655
    %v5395 = vunpack.c.h.b16 %v4655
    %v5396 = vunpack.c.l.b16 %v4656
    %v5397 = vunpack.c.h.b16 %v4656
    %v5398 = vunpack.c.l.b16 %v4657
    %v5399 = vunpack.c.h.b16 %v4657
    %v5400 = vunpack.c.l.b16 %v4658
    %v5401 = vunpack.c.l.b16 %v4659
    %v5402 = vunpack.c.h.b16 %v4659
    %v5403 = vunpack.c.l.b16 %v4660
    %v5404 = vunpack.c.h.b16 %v4660
    %v5405 = vunpack.c.l.b16 %v4661
    %v5406 = vunpack.c.h.b16 %v4661
    %v5407 = vunpack.c.l.b16 %v4662
    %v5408 = vpack.c.b16 %v4967, %v4960
    %v5409 = vpack.c.b16 %v4968, %v4961
    %v5410 = vpack.c.b16 %v4969, %v4962
    %v5411 = vpack.c.b16 %v4970, %v4963
    %v5412 = vpack.c.b16 %v4971, %v4964
    %v5413 = vpack.c.b16 %v4972, %v4965
    %v5414 = vpack.c.b16 %v4973, %v4966
    %v5415 = vpack.c.b16 %v4981, %v4974
    %v5416 = vpack.c.b16 %v4982, %v4975
    %v5417 = vpack.c.b16 %v4983, %v4976
    %v5418 = vpack.c.b16 %v4984, %v4977
    %v5419 = vpack.c.b16 %v4985, %v4978
    %v5420 = vpack.c.b16 %v4986, %v4979
    %v5421 = vpack.c.b16 %v4987, %v4980
    %v5422 = vpack.c.b16 %v4995, %v4988
    %v5423 = vpack.c.b16 %v4996, %v4989
    %v5424 = vpack.c.b16 %v4997, %v4990
    %v5425 = vpack.c.b16 %v4998, %v4991
    %v5426 = vpack.c.b16 %v4999, %v4992
    %v5427 = vpack.c.b16 %v5000, %v4993
    %v5428 = vpack.c.b16 %v5001, %v4994
    %v5429 = vpack.c.b16 %v5009, %v5002
    %v5430 = vpack.c.b16 %v5010, %v5003
    %v5431 = vpack.c.b16 %v5011, %v5004
    %v5432 = vpack.c.b16 %v5012, %v5005
    %v5433 = vpack.c.b16 %v5013, %v5006
    %v5434 = vpack.c.b16 %v5014, %v5007
    %v5435 = vpack.c.b16 %v5015, %v5008
    %v5436 = vpack.c.b16 %v5023, %v5016
    %v5437 = vpack.c.b16 %v5024, %v5017
    %v5438 = vpack.c.b16 %v5025, %v5018
    %v5439 = vpack.c.b16 %v5026, %v5019
    %v5440 = vpack.c.b16 %v5027, %v5020
    %v5441 = vpack.c.b16 %v5028, %v5021
    %v5442 = vpack.c.b16 %v5029, %v5022
    %v5443 = vpack.c.b16 %v5037, %v5030
    %v5444 = vpack.c.b16 %v5038, %v5031
    %v5445 = vpack.c.b16 %v5039, %v5032
    %v5446 = vpack.c.b16 %v5040, %v5033
    %v5447 = vpack.c.b16 %v5041, %v5034
    %v5448 = vpack.c.b16 %v5042, %v5035
    %v5449 = vpack.c.b16 %v5043, %v5036
    %v5450 = vpack.c.b16 %v5051, %v5044
    %v5451 = vpack.c.b16 %v5052, %v5045
    %v5452 = vpack.c.b16 %v5053, %v5046
    %v5453 = vpack.c.b16 %v5054, %v5047
    %v5454 = vpack.c.b16 %v5055, %v5048
    %v5455 = vpack.c.b16 %v5056, %v5049
    %v5456 = vpack.c.b16 %v5057, %v5050
    %v5457 = vpack.c.b16 %v5065, %v5058
    %v5458 = vpack.c.b16 %v5066, %v5059
    %v5459 = vpack.c.b16 %v5067, %v5060
    %v5460 = vpack.c.b16 %v5068, %v5061
    %v5461 = vpack.c.b16 %v5069, %v5062
    %v5462 = vpack.c.b16 %v5070, %v5063
    %v5463 = vpack.c.b16 %v5071, %v5064
    %v5464 = vpack.c.b16 %v5079, %v5072
    %v5465 = vpack.c.b16 %v5080, %v5073
    %v5466 = vpack.c.b16 %v5081, %v5074
    %v5467 = vpack.c.b16 %v5082, %v5075
    %v5468 = vpack.c.b16 %v5083, %v5076
    %v5469 = vpack.c.b16 %v5084, %v5077
    %v5470 = vpack.c.b16 %v5085, %v5078
    %v5471 = vpack.c.b16 %v5093, %v5086
    %v5472 = vpack.c.b16 %v5094, %v5087
    %v5473 = vpack.c.b16 %v5095, %v5088
    %v5474 = vpack.c.b16 %v5096, %v5089
    %v5475 = vpack.c.b16 %v5097, %v5090
    %v5476 = vpack.c.b16 %v5098, %v5091
    %v5477 = vpack.c.b16 %v5099, %v5092
    %v5478 = vpack.c.b16 %v5107, %v5100
    %v5479 = vpack.c.b16 %v5108, %v5101
    %v5480 = vpack.c.b16 %v5109, %v5102
    %v5481 = vpack.c.b16 %v5110, %v5103
    %v5482 = vpack.c.b16 %v5111, %v5104
    %v5483 = vpack.c.b16 %v5112, %v5105
    %v5484 = vpack.c.b16 %v5113, %v5106
    %v5485 = vpack.c.b16 %v5121, %v5114
    %v5486 = vpack.c.b16 %v5122, %v5115
    %v5487 = vpack.c.b16 %v5123, %v5116
    %v5488 = vpack.c.b16 %v5124, %v5117
    %v5489 = vpack.c.b16 %v5125, %v5118
    %v5490 = vpack.c.b16 %v5126, %v5119
    %v5491 = vpack.c.b16 %v5127, %v5120
    %v5492 = vpack.c.b16 %v5135, %v5128
    %v5493 = vpack.c.b16 %v5136, %v5129
    %v5494 = vpack.c.b16 %v5137, %v5130
    %v5495 = vpack.c.b16 %v5138, %v5131
    %v5496 = vpack.c.b16 %v5139, %v5132
    %v5497 = vpack.c.b16 %v5140, %v5133
    %v5498 = vpack.c.b16 %v5141, %v5134
    %v5499 = vpack.c.b16 %v5149, %v5142
    %v5500 = vpack.c.b16 %v5150, %v5143
    %v5501 = vpack.c.b16 %v5151, %v5144
    %v5502 = vpack.c.b16 %v5152, %v5145
    %v5503 = vpack.c.b16 %v5153, %v5146
    %v5504 = vpack.c.b16 %v5154, %v5147
    %v5505 = vpack.c.b16 %v5155, %v5148
    %v5506 = vpack.c.b16 %v5163, %v5156
    %v5507 = vpack.c.b16 %v5164, %v5157
    %v5508 = vpack.c.b16 %v5165, %v5158
    %v5509 = vpack.c.b16 %v5166, %v5159
    %v5510 = vpack.c.b16 %v5167, %v5160
    %v5511 = vpack.c.b16 %v5168, %v5161
    %v5512 = vpack.c.b16 %v5169, %v5162
    %v5513 = vpack.c.b16 %v5177, %v5170
    %v5514 = vpack.c.b16 %v5178, %v5171
    %v5515 = vpack.c.b16 %v5179, %v5172
    %v5516 = vpack.c.b16 %v5180, %v5173
    %v5517 = vpack.c.b16 %v5181, %v5174
    %v5518 = vpack.c.b16 %v5182, %v5175
    %v5519 = vpack.c.b16 %v5183, %v5176
    %v5520 = vpack.c.b16 %v5191, %v5184
    %v5521 = vpack.c.b16 %v5192, %v5185
    %v5522 = vpack.c.b16 %v5193, %v5186
    %v5523 = vpack.c.b16 %v5194, %v5187
    %v5524 = vpack.c.b16 %v5195, %v5188
    %v5525 = vpack.c.b16 %v5196, %v5189
    %v5526 = vpack.c.b16 %v5197, %v5190
    %v5527 = vpack.c.b16 %v5205, %v5198
    %v5528 = vpack.c.b16 %v5206, %v5199
    %v5529 = vpack.c.b16 %v5207, %v5200
    %v5530 = vpack.c.b16 %v5208, %v5201
    %v5531 = vpack.c.b16 %v5209, %v5202
    %v5532 = vpack.c.b16 %v5210, %v5203
    %v5533 = vpack.c.b16 %v5211, %v5204
    %v5534 = vpack.c.b16 %v5219, %v5212
    %v5535 = vpack.c.b16 %v5220, %v5213
    %v5536 = vpack.c.b16 %v5221, %v5214
    %v5537 = vpack.c.b16 %v5222, %v5215
    %v5538 = vpack.c.b16 %v5223, %v5216
    %v5539 = vpack.c.b16 %v5224, %v5217
    %v5540 = vpack.c.b16 %v5225, %v5218
    %v5541 = vpack.c.b16 %v5233, %v5226
    %v5542 = vpack.c.b16 %v5234, %v5227
    %v5543 = vpack.c.b16 %v5235, %v5228
    %v5544 = vpack.c.b16 %v5236, %v5229
    %v5545 = vpack.c.b16 %v5237, %v5230
    %v5546 = vpack.c.b16 %v5238, %v5231
    %v5547 = vpack.c.b16 %v5239, %v5232
    %v5548 = vpack.c.b16 %v5247, %v5240
    %v5549 = vpack.c.b16 %v5248, %v5241
    %v5550 = vpack.c.b16 %v5249, %v5242
    %v5551 = vpack.c.b16 %v5250, %v5243
    %v5552 = vpack.c.b16 %v5251, %v5244
    %v5553 = vpack.c.b16 %v5252, %v5245
    %v5554 = vpack.c.b16 %v5253, %v5246
    %v5555 = vpack.c.b16 %v5261, %v5254
    %v5556 = vpack.c.b16 %v5262, %v5255
    %v5557 = vpack.c.b16 %v5263, %v5256
    %v5558 = vpack.c.b16 %v5264, %v5257
    %v5559 = vpack.c.b16 %v5265, %v5258
    %v5560 = vpack.c.b16 %v5266, %v5259
    %v5561 = vpack.c.b16 %v5267, %v5260
    %v5562 = vpack.c.b16 %v5275, %v5268
    %v5563 = vpack.c.b16 %v5276, %v5269
    %v5564 = vpack.c.b16 %v5277, %v5270
    %v5565 = vpack.c.b16 %v5278, %v5271
    %v5566 = vpack.c.b16 %v5279, %v5272
    %v5567 = vpack.c.b16 %v5280, %v5273
    %v5568 = vpack.c.b16 %v5281, %v5274
    %v5569 = vpack.c.b16 %v5289, %v5282
    %v5570 = vpack.c.b16 %v5290, %v5283
    %v5571 = vpack.c.b16 %v5291, %v5284
    %v5572 = vpack.c.b16 %v5292, %v5285
    %v5573 = vpack.c.b16 %v5293, %v5286
    %v5574 = vpack.c.b16 %v5294, %v5287
    %v5575 = vpack.c.b16 %v5295, %v5288
    %v5576 = vpack.c.b16 %v5303, %v5296
    %v5577 = vpack.c.b16 %v5304, %v5297
    %v5578 = vpack.c.b16 %v5305, %v5298
    %v5579 = vpack.c.b16 %v5306, %v5299
    %v5580 = vpack.c.b16 %v5307, %v5300
    %v5581 = vpack.c.b16 %v5308, %v5301
    %v5582 = vpack.c.b16 %v5309, %v5302
    %v5583 = vpack.c.b16 %v5317, %v5310
    %v5584 = vpack.c.b16 %v5318, %v5311
    %v5585 = vpack.c.b16 %v5319, %v5312
    %v5586 = vpack.c.b16 %v5320, %v5313
    %v5587 = vpack.c.b16 %v5321, %v5314
    %v5588 = vpack.c.b16 %v5322, %v5315
    %v5589 = vpack.c.b16 %v5323, %v5316
    %v5590 = vpack.c.b16 %v5331, %v5324
    %v5591 = vpack.c.b16 %v5332, %v5325
    %v5592 = vpack.c.b16 %v5333, %v5326
    %v5593 = vpack.c.b16 %v5334, %v5327
    %v5594 = vpack.c.b16 %v5335, %v5328
    %v5595 = vpack.c.b16 %v5336, %v5329
    %v5596 = vpack.c.b16 %v5337, %v5330
    %v5597 = vpack.c.b16 %v5345, %v5338
    %v5598 = vpack.c.b16 %v5346, %v5339
    %v5599 = vpack.c.b16 %v5347, %v5340
    %v5600 = vpack.c.b16 %v5348, %v5341
    %v5601 = vpack.c.b16 %v5349, %v5342
    %v5602 = vpack.c.b16 %v5350, %v5343
    %v5603 = vpack.c.b16 %v5351, %v5344
    %v5604 = vpack.c.b16 %v5359, %v5352
    %v5605 = vpack.c.b16 %v5360, %v5353
    %v5606 = vpack.c.b16 %v5361, %v5354
    %v5607 = vpack.c.b16 %v5362, %v5355
    %v5608 = vpack.c.b16 %v5363, %v5356
    %v5609 = vpack.c.b16 %v5364, %v5357
    %v5610 = vpack.c.b16 %v5365, %v5358
    %v5611 = vpack.c.b16 %v5373, %v5366
    %v5612 = vpack.c.b16 %v5374, %v5367
    %v5613 = vpack.c.b16 %v5375, %v5368
    %v5614 = vpack.c.b16 %v5376, %v5369
    %v5615 = vpack.c.b16 %v5377, %v5370
    %v5616 = vpack.c.b16 %v5378, %v5371
    %v5617 = vpack.c.b16 %v5379, %v5372
    %v5618 = vpack.c.b16 %v5387, %v5380
    %v5619 = vpack.c.b16 %v5388, %v5381
    %v5620 = vpack.c.b16 %v5389, %v5382
    %v5621 = vpack.c.b16 %v5390, %v5383
    %v5622 = vpack.c.b16 %v5391, %v5384
    %v5623 = vpack.c.b16 %v5392, %v5385
    %v5624 = vpack.c.b16 %v5393, %v5386
    %v5625 = vpack.c.b16 %v5401, %v5394
    %v5626 = vpack.c.b16 %v5402, %v5395
    %v5627 = vpack.c.b16 %v5403, %v5396
    %v5628 = vpack.c.b16 %v5404, %v5397
    %v5629 = vpack.c.b16 %v5405, %v5398
    %v5630 = vpack.c.b16 %v5406, %v5399
    %v5631 = vpack.c.b16 %v5407, %v5400
    %5856 = vmatprep.subr.bf16.mxu0 %v5458
    %5857 = vmatpush1.bf16.msra.mxu0 %v5457
    %5858 = vmatprep.subr.bf16.mxu0 %v5451
    %5859 = vmatpush1.bf16.msra.mxu0 %v5450
    %5860 = vmatprep.subr.bf16.mxu0 %v5444
    %5861 = vmatpush1.bf16.msra.mxu0 %v5443
    %5862 = vmatprep.subr.bf16.mxu0 %v5437
    %5863 = vmatpush1.bf16.msra.mxu0 %v5436
    %5864 = vmatprep.subr.bf16.mxu0 %v5430
    %5865 = vmatpush1.bf16.msra.mxu0 %v5429
    %5866 = vmatprep.subr.bf16.mxu0 %v5423
    %5867 = vmatpush1.bf16.msra.mxu0 %v5422
    %5868 = vmatprep.subr.bf16.mxu0 %v5416
    %5869 = vmatpush1.bf16.msra.mxu0 %v5415
    %5870 = vmatprep.subr.bf16.mxu0 %v5409
    %5871 = vmatpush1.bf16.msra.mxu0 %v5408
    %5872 = vmatprep.subr.bf16.mxu0 %v5514
    %5873 = vmatpush2.bf16.msra.mxu0 %v5513
    %5874 = vmatprep.subr.bf16.mxu0 %v5507
    %5875 = vmatpush2.bf16.msra.mxu0 %v5506
    %5876 = vmatprep.subr.bf16.mxu0 %v5500
    %5877 = vmatpush2.bf16.msra.mxu0 %v5499
    %5878 = vmatprep.subr.bf16.mxu0 %v5493
    %5879 = vmatpush2.bf16.msra.mxu0 %v5492
    %5880 = vmatprep.subr.bf16.mxu0 %v5486
    %5881 = vmatpush2.bf16.msra.mxu0 %v5485
    %5882 = vmatprep.subr.bf16.mxu0 %v5479
    %5883 = vmatpush2.bf16.msra.mxu0 %v5478
    %5884 = vmatprep.subr.bf16.mxu0 %v5472
    %5885 = vmatpush2.bf16.msra.mxu0 %v5471
    %5886 = vmatprep.subr.bf16.mxu0 %v5465
    %5887 = vmatpush2.bf16.msra.mxu0 %v5464
    %5888 = vmatprep.mubr.bf16.mxu0 %v4665
    %5889 = vmatmul.mubr.bf16.gmra.mxu0 %v4664
    %v5890 = vpop.f32.mrf.mxu0
    %v5891 = vadd.f32 %v4672, %v5890
    %v5892 = vpop.f32.mrf.mxu0
    %v5893 = vadd.f32 %v4676, %v5892
    %v5894 = vpop.f32.mrf.mxu0
    %v5895 = vpop.f32.mrf.mxu0
    %5896 = vdwg.mxu0
    %5897 = vmatprep.subr.bf16.mxu0 %v5570
    %5898 = vmatpush1.bf16.msra.mxu0 %v5569
    %5899 = vmatprep.subr.bf16.mxu0 %v5563
    %5900 = vmatpush1.bf16.msra.mxu0 %v5562
    %5901 = vmatprep.subr.bf16.mxu0 %v5556
    %5902 = vmatpush1.bf16.msra.mxu0 %v5555
    %5903 = vmatprep.subr.bf16.mxu0 %v5549
    %5904 = vmatpush1.bf16.msra.mxu0 %v5548
    %5905 = vmatprep.subr.bf16.mxu0 %v5542
    %5906 = vmatpush1.bf16.msra.mxu0 %v5541
    %5907 = vmatprep.subr.bf16.mxu0 %v5535
    %5908 = vmatpush1.bf16.msra.mxu0 %v5534
    %5909 = vmatprep.subr.bf16.mxu0 %v5528
    %5910 = vmatpush1.bf16.msra.mxu0 %v5527
    %5911 = vmatprep.subr.bf16.mxu0 %v5521
    %5912 = vmatpush1.bf16.msra.mxu0 %v5520
    %5913 = vmatprep.subr.bf16.mxu0 %v5626
    %5914 = vmatpush2.bf16.msra.mxu0 %v5625
    %5915 = vmatprep.subr.bf16.mxu0 %v5619
    %5916 = vmatpush2.bf16.msra.mxu0 %v5618
    %5917 = vmatprep.subr.bf16.mxu0 %v5612
    %5918 = vmatpush2.bf16.msra.mxu0 %v5611
    %5919 = vmatprep.subr.bf16.mxu0 %v5605
    %5920 = vmatpush2.bf16.msra.mxu0 %v5604
    %5921 = vmatprep.subr.bf16.mxu0 %v5598
    %5922 = vmatpush2.bf16.msra.mxu0 %v5597
    %5923 = vmatprep.subr.bf16.mxu0 %v5591
    %5924 = vmatpush2.bf16.msra.mxu0 %v5590
    %5925 = vmatprep.subr.bf16.mxu0 %v5584
    %5926 = vmatpush2.bf16.msra.mxu0 %v5583
    %5927 = vmatprep.subr.bf16.mxu0 %v5577
    %5928 = vmatpush2.bf16.msra.mxu0 %v5576
    %5929 = vmatprep.mubr.bf16.mxu0 %v4667
    %5930 = vmatmul.mubr.bf16.gmra.mxu0 %v4666
    %v5931 = vpop.f32.mrf.mxu0
    %v5932 = vadd.f32 %v5891, %v5931
    %v5933 = vpop.f32.mrf.mxu0
    %v5934 = vadd.f32 %v5893, %v5933
    %v5935 = vpop.f32.mrf.mxu0
    %v5936 = vpop.f32.mrf.mxu0
    %5937 = vdwg.mxu0
    %5938 = vmatprep.subr.bf16.mxu0 %v5460
    %5939 = vmatpush1.bf16.msra.mxu0 %v5459
    %5940 = vmatprep.subr.bf16.mxu0 %v5453
    %5941 = vmatpush1.bf16.msra.mxu0 %v5452
    %5942 = vmatprep.subr.bf16.mxu0 %v5446
    %5943 = vmatpush1.bf16.msra.mxu0 %v5445
    %5944 = vmatprep.subr.bf16.mxu0 %v5439
    %5945 = vmatpush1.bf16.msra.mxu0 %v5438
    %5946 = vmatprep.subr.bf16.mxu0 %v5432
    %5947 = vmatpush1.bf16.msra.mxu0 %v5431
    %5948 = vmatprep.subr.bf16.mxu0 %v5425
    %5949 = vmatpush1.bf16.msra.mxu0 %v5424
    %5950 = vmatprep.subr.bf16.mxu0 %v5418
    %5951 = vmatpush1.bf16.msra.mxu0 %v5417
    %5952 = vmatprep.subr.bf16.mxu0 %v5411
    %5953 = vmatpush1.bf16.msra.mxu0 %v5410
    %5954 = vmatprep.subr.bf16.mxu0 %v5516
    %5955 = vmatpush2.bf16.msra.mxu0 %v5515
    %5956 = vmatprep.subr.bf16.mxu0 %v5509
    %5957 = vmatpush2.bf16.msra.mxu0 %v5508
    %5958 = vmatprep.subr.bf16.mxu0 %v5502
    %5959 = vmatpush2.bf16.msra.mxu0 %v5501
    %5960 = vmatprep.subr.bf16.mxu0 %v5495
    %5961 = vmatpush2.bf16.msra.mxu0 %v5494
    %5962 = vmatprep.subr.bf16.mxu0 %v5488
    %5963 = vmatpush2.bf16.msra.mxu0 %v5487
    %5964 = vmatprep.subr.bf16.mxu0 %v5481
    %5965 = vmatpush2.bf16.msra.mxu0 %v5480
    %5966 = vmatprep.subr.bf16.mxu0 %v5474
    %5967 = vmatpush2.bf16.msra.mxu0 %v5473
    %5968 = vmatprep.subr.bf16.mxu0 %v5467
    %5969 = vmatpush2.bf16.msra.mxu0 %v5466
    %5970 = vmatprep.mubr.bf16.mxu0 %v4665
    %5971 = vmatmul.mubr.bf16.gmra.mxu0 %v4664
    %v5972 = vpop.f32.mrf.mxu0
    %v5973 = vadd.f32 %v4680, %v5972
    %v5974 = vpop.f32.mrf.mxu0
    %v5975 = vadd.f32 %v4684, %v5974
    %v5976 = vpop.f32.mrf.mxu0
    %v5977 = vpop.f32.mrf.mxu0
    %5978 = vdwg.mxu0
    %5979 = vmatprep.subr.bf16.mxu0 %v5572
    %5980 = vmatpush1.bf16.msra.mxu0 %v5571
    %5981 = vmatprep.subr.bf16.mxu0 %v5565
    %5982 = vmatpush1.bf16.msra.mxu0 %v5564
    %5983 = vmatprep.subr.bf16.mxu0 %v5558
    %5984 = vmatpush1.bf16.msra.mxu0 %v5557
    %5985 = vmatprep.subr.bf16.mxu0 %v5551
    %5986 = vmatpush1.bf16.msra.mxu0 %v5550
    %5987 = vmatprep.subr.bf16.mxu0 %v5544
    %5988 = vmatpush1.bf16.msra.mxu0 %v5543
    %5989 = vmatprep.subr.bf16.mxu0 %v5537
    %5990 = vmatpush1.bf16.msra.mxu0 %v5536
    %5991 = vmatprep.subr.bf16.mxu0 %v5530
    %5992 = vmatpush1.bf16.msra.mxu0 %v5529
    %5993 = vmatprep.subr.bf16.mxu0 %v5523
    %5994 = vmatpush1.bf16.msra.mxu0 %v5522
    %5995 = vmatprep.subr.bf16.mxu0 %v5628
    %5996 = vmatpush2.bf16.msra.mxu0 %v5627
    %5997 = vmatprep.subr.bf16.mxu0 %v5621
    %5998 = vmatpush2.bf16.msra.mxu0 %v5620
    %5999 = vmatprep.subr.bf16.mxu0 %v5614
    %6000 = vmatpush2.bf16.msra.mxu0 %v5613
    %6001 = vmatprep.subr.bf16.mxu0 %v5607
    %6002 = vmatpush2.bf16.msra.mxu0 %v5606
    %6003 = vmatprep.subr.bf16.mxu0 %v5600
    %6004 = vmatpush2.bf16.msra.mxu0 %v5599
    %6005 = vmatprep.subr.bf16.mxu0 %v5593
    %6006 = vmatpush2.bf16.msra.mxu0 %v5592
    %6007 = vmatprep.subr.bf16.mxu0 %v5586
    %6008 = vmatpush2.bf16.msra.mxu0 %v5585
    %6009 = vmatprep.subr.bf16.mxu0 %v5579
    %6010 = vmatpush2.bf16.msra.mxu0 %v5578
    %6011 = vmatprep.mubr.bf16.mxu0 %v4667
    %6012 = vmatmul.mubr.bf16.gmra.mxu0 %v4666
    %v6013 = vpop.f32.mrf.mxu0
    %v6014 = vadd.f32 %v5973, %v6013
    %v6015 = vpop.f32.mrf.mxu0
    %v6016 = vadd.f32 %v5975, %v6015
    %v6017 = vpop.f32.mrf.mxu0
    %v6018 = vpop.f32.mrf.mxu0
    %6019 = vdwg.mxu0
    %6020 = vmatprep.subr.bf16.mxu0 %v5462
    %6021 = vmatpush1.bf16.msra.mxu0 %v5461
    %6022 = vmatprep.subr.bf16.mxu0 %v5455
    %6023 = vmatpush1.bf16.msra.mxu0 %v5454
    %6024 = vmatprep.subr.bf16.mxu0 %v5448
    %6025 = vmatpush1.bf16.msra.mxu0 %v5447
    %6026 = vmatprep.subr.bf16.mxu0 %v5441
    %6027 = vmatpush1.bf16.msra.mxu0 %v5440
    %6028 = vmatprep.subr.bf16.mxu0 %v5434
    %6029 = vmatpush1.bf16.msra.mxu0 %v5433
    %6030 = vmatprep.subr.bf16.mxu0 %v5427
    %6031 = vmatpush1.bf16.msra.mxu0 %v5426
    %6032 = vmatprep.subr.bf16.mxu0 %v5420
    %6033 = vmatpush1.bf16.msra.mxu0 %v5419
    %6034 = vmatprep.subr.bf16.mxu0 %v5413
    %6035 = vmatpush1.bf16.msra.mxu0 %v5412
    %6036 = vmatprep.subr.bf16.mxu0 %v5518
    %6037 = vmatpush2.bf16.msra.mxu0 %v5517
    %6038 = vmatprep.subr.bf16.mxu0 %v5511
    %6039 = vmatpush2.bf16.msra.mxu0 %v5510
    %6040 = vmatprep.subr.bf16.mxu0 %v5504
    %6041 = vmatpush2.bf16.msra.mxu0 %v5503
    %6042 = vmatprep.subr.bf16.mxu0 %v5497
    %6043 = vmatpush2.bf16.msra.mxu0 %v5496
    %6044 = vmatprep.subr.bf16.mxu0 %v5490
    %6045 = vmatpush2.bf16.msra.mxu0 %v5489
    %6046 = vmatprep.subr.bf16.mxu0 %v5483
    %6047 = vmatpush2.bf16.msra.mxu0 %v5482
    %6048 = vmatprep.subr.bf16.mxu0 %v5476
    %6049 = vmatpush2.bf16.msra.mxu0 %v5475
    %6050 = vmatprep.subr.bf16.mxu0 %v5469
    %6051 = vmatpush2.bf16.msra.mxu0 %v5468
    %6052 = vmatprep.mubr.bf16.mxu0 %v4665
    %6053 = vmatmul.mubr.bf16.gmra.mxu0 %v4664
    %v6054 = vpop.f32.mrf.mxu0
    %v6055 = vadd.f32 %v4688, %v6054
    %v6056 = vpop.f32.mrf.mxu0
    %v6057 = vadd.f32 %v4692, %v6056
    %v6058 = vpop.f32.mrf.mxu0
    %v6059 = vpop.f32.mrf.mxu0
    %6060 = vdwg.mxu0
    %6061 = vmatprep.subr.bf16.mxu0 %v5574
    %6062 = vmatpush1.bf16.msra.mxu0 %v5573
    %6063 = vmatprep.subr.bf16.mxu0 %v5567
    %6064 = vmatpush1.bf16.msra.mxu0 %v5566
    %6065 = vmatprep.subr.bf16.mxu0 %v5560
    %6066 = vmatpush1.bf16.msra.mxu0 %v5559
    %6067 = vmatprep.subr.bf16.mxu0 %v5553
    %6068 = vmatpush1.bf16.msra.mxu0 %v5552
    %6069 = vmatprep.subr.bf16.mxu0 %v5546
    %6070 = vmatpush1.bf16.msra.mxu0 %v5545
    %6071 = vmatprep.subr.bf16.mxu0 %v5539
    %6072 = vmatpush1.bf16.msra.mxu0 %v5538
    %6073 = vmatprep.subr.bf16.mxu0 %v5532
    %6074 = vmatpush1.bf16.msra.mxu0 %v5531
    %6075 = vmatprep.subr.bf16.mxu0 %v5525
    %6076 = vmatpush1.bf16.msra.mxu0 %v5524
    %6077 = vmatprep.subr.bf16.mxu0 %v5630
    %6078 = vmatpush2.bf16.msra.mxu0 %v5629
    %6079 = vmatprep.subr.bf16.mxu0 %v5623
    %6080 = vmatpush2.bf16.msra.mxu0 %v5622
    %6081 = vmatprep.subr.bf16.mxu0 %v5616
    %6082 = vmatpush2.bf16.msra.mxu0 %v5615
    %6083 = vmatprep.subr.bf16.mxu0 %v5609
    %6084 = vmatpush2.bf16.msra.mxu0 %v5608
    %6085 = vmatprep.subr.bf16.mxu0 %v5602
    %6086 = vmatpush2.bf16.msra.mxu0 %v5601
    %6087 = vmatprep.subr.bf16.mxu0 %v5595
    %6088 = vmatpush2.bf16.msra.mxu0 %v5594
    %6089 = vmatprep.subr.bf16.mxu0 %v5588
    %6090 = vmatpush2.bf16.msra.mxu0 %v5587
    %6091 = vmatprep.subr.bf16.mxu0 %v5581
    %6092 = vmatpush2.bf16.msra.mxu0 %v5580
    %6093 = vmatprep.mubr.bf16.mxu0 %v4667
    %6094 = vmatmul.mubr.bf16.gmra.mxu0 %v4666
    %v6095 = vpop.f32.mrf.mxu0
    %v6096 = vadd.f32 %v6055, %v6095
    %v6097 = vpop.f32.mrf.mxu0
    %v6098 = vadd.f32 %v6057, %v6097
    %v6099 = vpop.f32.mrf.mxu0
    %v6100 = vpop.f32.mrf.mxu0
    %6101 = vdwg.mxu0
    %6102 = vmatprep.subr.bf16.mxu0 0
    %6103 = vmatpush1.bf16.msra.mxu0 %v5463
    %6104 = vmatprep.subr.bf16.mxu0 0
    %6105 = vmatpush1.bf16.msra.mxu0 %v5456
    %6106 = vmatprep.subr.bf16.mxu0 0
    %6107 = vmatpush1.bf16.msra.mxu0 %v5449
    %6108 = vmatprep.subr.bf16.mxu0 0
    %6109 = vmatpush1.bf16.msra.mxu0 %v5442
    %6110 = vmatprep.subr.bf16.mxu0 0
    %6111 = vmatpush1.bf16.msra.mxu0 %v5435
    %6112 = vmatprep.subr.bf16.mxu0 0
    %6113 = vmatpush1.bf16.msra.mxu0 %v5428
    %6114 = vmatprep.subr.bf16.mxu0 0
    %6115 = vmatpush1.bf16.msra.mxu0 %v5421
    %6116 = vmatprep.subr.bf16.mxu0 0
    %6117 = vmatpush1.bf16.msra.mxu0 %v5414
    %6118 = vmatprep.subr.bf16.mxu0 0
    %6119 = vmatpush2.bf16.msra.mxu0 %v5519
    %6120 = vmatprep.subr.bf16.mxu0 0
    %6121 = vmatpush2.bf16.msra.mxu0 %v5512
    %6122 = vmatprep.subr.bf16.mxu0 0
    %6123 = vmatpush2.bf16.msra.mxu0 %v5505
    %6124 = vmatprep.subr.bf16.mxu0 0
    %6125 = vmatpush2.bf16.msra.mxu0 %v5498
    %6126 = vmatprep.subr.bf16.mxu0 0
    %6127 = vmatpush2.bf16.msra.mxu0 %v5491
    %6128 = vmatprep.subr.bf16.mxu0 0
    %6129 = vmatpush2.bf16.msra.mxu0 %v5484
    %6130 = vmatprep.subr.bf16.mxu0 0
    %6131 = vmatpush2.bf16.msra.mxu0 %v5477
    %6132 = vmatprep.subr.bf16.mxu0 0
    %6133 = vmatpush2.bf16.msra.mxu0 %v5470
    %6134 = vmatprep.mubr.bf16.mxu0 %v4665
    %6135 = vmatmul.mubr.bf16.gmra.mxu0 %v4664
    %v6136 = vpop.f32.mrf.mxu0
    %v6137 = vadd.f32 %v4696, %v6136
    %v6138 = vpop.f32.mrf.mxu0
    %v6139 = vpop.f32.mrf.mxu0
    %v6140 = vpop.f32.mrf.mxu0
    %6141 = vdwg.mxu0
    %6142 = vmatprep.subr.bf16.mxu0 0
    %6143 = vmatpush1.bf16.msra.mxu0 %v5575
    %6144 = vmatprep.subr.bf16.mxu0 0
    %6145 = vmatpush1.bf16.msra.mxu0 %v5568
    %6146 = vmatprep.subr.bf16.mxu0 0
    %6147 = vmatpush1.bf16.msra.mxu0 %v5561
    %6148 = vmatprep.subr.bf16.mxu0 0
    %6149 = vmatpush1.bf16.msra.mxu0 %v5554
    %6150 = vmatprep.subr.bf16.mxu0 0
    %6151 = vmatpush1.bf16.msra.mxu0 %v5547
    %6152 = vmatprep.subr.bf16.mxu0 0
    %6153 = vmatpush1.bf16.msra.mxu0 %v5540
    %6154 = vmatprep.subr.bf16.mxu0 0
    %6155 = vmatpush1.bf16.msra.mxu0 %v5533
    %6156 = vmatprep.subr.bf16.mxu0 0
    %6157 = vmatpush1.bf16.msra.mxu0 %v5526
    %6158 = vmatprep.subr.bf16.mxu0 0
    %6159 = vmatpush2.bf16.msra.mxu0 %v5631
    %6160 = vmatprep.subr.bf16.mxu0 0
    %6161 = vmatpush2.bf16.msra.mxu0 %v5624
    %6162 = vmatprep.subr.bf16.mxu0 0
    %6163 = vmatpush2.bf16.msra.mxu0 %v5617
    %6164 = vmatprep.subr.bf16.mxu0 0
    %6165 = vmatpush2.bf16.msra.mxu0 %v5610
    %6166 = vmatprep.subr.bf16.mxu0 0
    %6167 = vmatpush2.bf16.msra.mxu0 %v5603
    %6168 = vmatprep.subr.bf16.mxu0 0
    %6169 = vmatpush2.bf16.msra.mxu0 %v5596
    %6170 = vmatprep.subr.bf16.mxu0 0
    %6171 = vmatpush2.bf16.msra.mxu0 %v5589
    %6172 = vmatprep.subr.bf16.mxu0 0
    %6173 = vmatpush2.bf16.msra.mxu0 %v5582
    %6174 = vmatprep.mubr.bf16.mxu0 %v4667
    %6175 = vmatmul.mubr.bf16.gmra.mxu0 %v4666
    %v6176 = vpop.f32.mrf.mxu0
    %v6177 = vadd.f32 %v6137, %v6176
    %v6178 = vpop.f32.mrf.mxu0
    %v6179 = vpop.f32.mrf.mxu0
    %v6180 = vpop.f32.mrf.mxu0
    %6181 = vdwg.mxu0
    %v6182 = vmul.f32 %v5932, 0.5
    %v6183 = vmul.f32 %v5934, 0.5
    %v6184 = vmul.f32 %v6014, 0.5
    %v6185 = vmul.f32 %v6016, 0.5
    %v6186 = vmul.f32 %v6096, 0.5
    %v6187 = vmul.f32 %v6098, 0.5
    %v6188 = vmul.f32 %v6177, 0.5
    %v6189 = vtanh.pop %v6182
    %v6190 = vtanh.pop %v6183
    %v6191 = vtanh.pop %v6184
    %v6192 = vtanh.pop %v6185
    %v6193 = vtanh.pop %v6186
    %v6194 = vtanh.pop %v6187
    %v6195 = vtanh.pop %v6188
    %v6196 = vmul.f32 %v6189, 0.5
    %v6197 = vmul.f32 %v6190, 0.5
    %v6198 = vmul.f32 %v6191, 0.5
    %v6199 = vmul.f32 %v6192, 0.5
    %v6200 = vmul.f32 %v6193, 0.5
    %v6201 = vmul.f32 %v6194, 0.5
    %v6202 = vmul.f32 %v6195, 0.5
    %v6203 = vadd.f32 %v6196, 0.5
    %v6204 = vadd.f32 %v6197, 0.5
    %v6205 = vadd.f32 %v6198, 0.5
    %v6206 = vadd.f32 %v6199, 0.5
    %v6207 = vadd.f32 %v6200, 0.5
    %v6208 = vadd.f32 %v6201, 0.5
    %v6209 = vadd.f32 %v6202, 0.5
    %v6210 = vpack.c.bf16 %v6203, %v6203
    %v6211 = vpack.c.bf16 %v6204, %v6204
    %v6212 = vpack.c.bf16 %v6205, %v6205
    %v6213 = vpack.c.bf16 %v6206, %v6206
    %v6214 = vpack.c.bf16 %v6207, %v6207
    %v6215 = vpack.c.bf16 %v6208, %v6208
    %v6216 = vpack.c.bf16 %v6209, %v6209
    %v6224 = vunpack.c.l.b16 %v6210
    %v6225 = vunpack.c.l.b16 %v6211
    %v6226 = vunpack.c.l.b16 %v6212
    %v6227 = vunpack.c.l.b16 %v6213
    %v6228 = vunpack.c.l.b16 %v6214
    %v6229 = vunpack.c.l.b16 %v6215
    %v6230 = vunpack.c.l.b16 %v6216
    %v6231 = vpack.c.b16 %v6225, %v6224
    %v6232 = vpack.c.b16 %v6227, %v6226
    %v6233 = vpack.c.b16 %v6229, %v6228
    %v6234 = vpack.c.b16 %v6230, %v6230
    %6239 = vst [vmem:[%s14] sm:$0xff] %v6231
    %6240 = vst [vmem:[%s14 + $0x8] sm:$0xff] %v6232
    %6241 = vst [vmem:[%s14 + $0x10] sm:$0xff] %v6233
    %vm6242 = vcmask 125952
    %6243 = vst.msk [vmem:[%s14 + $0x18] sm:$0xf] %vm6242, %v6234
    // Predicated region
    $region54: #{autoencoder_forward.1} parent=1 // pred_check
      _
    $region55: #{autoencoder_forward.1} parent=1 // pred_check_branch
      %6245 = sbr.rel (0) target = $region57
    $region56: #{autoencoder_forward.1} parent=1 // pred_region
      %s6247 = ssub.s32 128, 128
      %6248 = vsyncadd [#allocation3], %s6247
      %s6250 = sshll.u32 [#allocation2], 4
      %s6251 = int_to_ptr.vmem [resolvable:$true] %s6250
      %6253 = dma.vmem_to_hbm [thread:$0]  %s6251, 128, %s13, [#allocation3]
    $region57: #{autoencoder_forward.1} parent=1 // pred_fallthru
      _
    // Predicated region
    $region58: #{autoencoder_forward.1} parent=1 // pred_check
      _
    $region59: #{autoencoder_forward.1} parent=1 // pred_check_branch
      %6255 = sbr.rel (0) target = $region61
    $region60: #{autoencoder_forward.1} parent=1 // pred_region
      _
    $region61: #{autoencoder_forward.1} parent=1 // pred_fallthru
      _
    // Predicated region
    $region62: #{autoencoder_forward.1} parent=1 // pred_check
      _
    $region63: #{autoencoder_forward.1} parent=1 // pred_check_branch
      %6257 = sbr.rel (0) target = $region65
    $region64: #{autoencoder_forward.1} parent=1 // pred_region
      %6258 = dma.done [#allocation3], 128
    $region65: #{autoencoder_forward.1} parent=1 // pred_fallthru
      _
    // Predicated region
    $region66: #{autoencoder_forward.1} parent=1 // pred_check
      _
    $region67: #{autoencoder_forward.1} parent=1 // pred_check_branch
      %6260 = sbr.rel (0) target = $region69
    $region68: #{autoencoder_forward.1} parent=1 // pred_region
      _
    $region69: #{autoencoder_forward.1} parent=1 // pred_fallthru
      _
    %6261 = vsyncpa [#allocation3], 1

</llo_original>
